<compile_context>
chip_gen: v5e
topology: v5e:2x2
jax: 0.10.0
libtpu: 0.0.40
codegen_flags: <defaults>
</compile_context>

<pallas_src>
import functools

import jax
import jax.numpy as jnp
import numpy as np
from jax import lax
from jax.experimental import pallas as pl
from jax.experimental.pallas import tpu as pltpu

EPS = 1e-5
MATMUL_DTYPE = jnp.bfloat16   # MXU operand dtype (accumulation is f32)
IO_DTYPE = jnp.bfloat16       # activation dtype at the HBM boundary


def _silu_f32(v):
    # exp and the approximate reciprocal both run on the EUP (off the VALU slot).
    return v * pl.reciprocal(1.0 + jnp.exp(-v), approx=True)


# --------------------------------------------------------------------------
# Pallas kernel: one grid step == one batch element (whole sample in VMEM).
# --------------------------------------------------------------------------
def resnet_block_kernel(*refs, hw, has_conv_shortcut, inv_scale):
    (x_ref,       # [1, Cin, S]    bf16
     temb_ref,    # [1, 1, Tch]    f32
     gn1_g_ref,   # [Cin, 1]       f32
     gn1_b_ref,   # [Cin, 1]       f32
     m1_cg_ref,   # [Cin, G1]      f32  one-hot channel -> group
     m1_gc_ref,   # [G1, Cin]      f32  one-hot group  -> channel
     w1t_ref,     # [3*Cout, Cin]  bf16 (rows k*Cout:(k+1)*Cout = conv1 tap-k W^T)
     b1_ref,      # [Cout, 1]      f32
     wtT_ref,     # [Cout, Tch]    f32
     bt_ref,      # [Cout, 1]      f32
     gn2_g_ref,   # [Cout, 1]      f32
     gn2_b_ref,   # [Cout, 1]      f32
     m2_cg_ref,   # [Cout, G2]     f32
     m2_gc_ref,   # [G2, Cout]     f32
     w2t_ref,     # [3*Cout, Cout] bf16
     b2_ref,      # [Cout, 1]      f32
     ) = refs[:16]
    if has_conv_shortcut:
        wscT_ref, bsc_ref = refs[16], refs[17]   # [Cout, Cin] bf16, [Cout, 1] f32
        out_ref, acc_ref = refs[18], refs[19]    # [1, Cout, S] bf16, [Cout, S] f32
    else:
        out_ref, acc_ref = refs[16], refs[17]

    S = x_ref.shape[2]

    def group_norm(h, m_cg_r, m_gc_r, gamma_r, beta_r):
        # h: [C, S] f32; normalize over (channels-in-group, S).  Two-pass,
        # mean-subtracted statistics in f32; channel->group reductions ride
        # the MXU via one-hot membership matrices.
        C = h.shape[0]
        m_cg = m_cg_r[...]                                            # [C, G]
        m_gc = m_gc_r[...]                                            # [G, C]
        G = m_cg.shape[1]
        inv_cnt = 1.0 / float(S * (C // G))
        gsum = jnp.sum(jnp.dot(m_gc, h, preferred_element_type=jnp.float32),
                       axis=1, keepdims=True)                         # [G, 1]
        mean_c = jnp.dot(m_cg, gsum * inv_cnt,
                         preferred_element_type=jnp.float32)          # [C, 1]
        hc = h - mean_c
        gss = jnp.sum(jnp.dot(m_gc, hc * hc,
                              preferred_element_type=jnp.float32),
                      axis=1, keepdims=True)                          # [G, 1]
        ginv = lax.rsqrt(gss * inv_cnt + EPS)                         # [G, 1]
        inv_c = jnp.dot(m_cg, ginv, preferred_element_type=jnp.float32)
        return hc * (inv_c * gamma_r[...]) + beta_r[...]              # [C, S]

    def temporal_conv(g16, w_ref, bias_col):
        # (3,1,1) conv, padding (1,0,0): three [Co,Ci]@[Ci,S] bf16 MXU matmuls
        # (f32 accumulation) accumulated into the single f32 VMEM scratch.
        # One-frame tap shifts are ref-slice adds -> plain shifted loads/stores
        # when hw % 128 == 0.  Bias (incl. folded temb projection for conv1)
        # is added once, in the init.
        Co = acc_ref.shape[0]
        w = w_ref[...]                                                # [3*Co, Ci]
        acc_ref[...] = jnp.dot(w[Co:2 * Co], g16,
                               preferred_element_type=jnp.float32) + bias_col
        if S > hw:                                                    # > 1 frame
            y_prev = jnp.dot(w[:Co], g16,
                             preferred_element_type=jnp.float32)      # tap k=0
            y_next = jnp.dot(w[2 * Co:3 * Co], g16,
                             preferred_element_type=jnp.float32)      # tap k=2
            if hw % 128 == 0:
                # lane-aligned one-frame shifts
                acc_ref[:, hw:] = acc_ref[:, hw:] + y_prev[:, :S - hw]
                acc_ref[:, :S - hw] = acc_ref[:, :S - hw] + y_next[:, hw:]
            else:
                # TODO(synk): pad H*W up to a lane multiple upstream to avoid
                # this unaligned fallback.
                zeros_f = jnp.zeros((Co, hw), jnp.float32)
                acc_ref[...] = (
                    acc_ref[...]
                    + jnp.concatenate([zeros_f, y_prev[:, :S - hw]], axis=1)
                    + jnp.concatenate([y_next[:, hw:], zeros_f], axis=1))
        return acc_ref[...]                                           # [Co, S]

    # ---- main path ----
    x32 = x_ref[0].astype(jnp.float32)                                # [Cin, S]
    h = group_norm(x32, m1_cg_ref, m1_gc_ref, gn1_g_ref, gn1_b_ref)
    g1 = _silu_f32(h).astype(MATMUL_DTYPE)

    # time embedding: silu -> linear; broadcast over D*H*W is folded into the
    # conv1 bias column (per-channel constant).
    t = _silu_f32(temb_ref[0])                                        # [1, Tch]
    tproj = jnp.sum(wtT_ref[...] * t, axis=1, keepdims=True) + bt_ref[...]
    h = temporal_conv(g1, w1t_ref, b1_ref[...] + tproj)               # [Cout, S]

    h = group_norm(h, m2_cg_ref, m2_gc_ref, gn2_g_ref, gn2_b_ref)
    g2 = _silu_f32(h).astype(MATMUL_DTYPE)
    # dropout(p=0.0) is the identity in this configuration.
    h = temporal_conv(g2, w2t_ref, b2_ref[...])                       # [Cout, S]

    # ---- shortcut ----
    if has_conv_shortcut:
        # 1x1x1 conv == one matmul over all of D*H*W (bf16 operands straight
        # from the HBM-boundary input, f32 accumulation).
        sc = jnp.dot(wscT_ref[...], x_ref[0],
                     preferred_element_type=jnp.float32) + bsc_ref[...]
    else:
        sc = x_ref[0].astype(jnp.float32)                             # identity

    out = sc + h
    if inv_scale != 1.0:            # statically skipped for scale factor 1.0
        out = out * jnp.float32(inv_scale)
    out_ref[0] = out.astype(out_ref.dtype)


# --------------------------------------------------------------------------
# Wrapper
# --------------------------------------------------------------------------
def _vmem_limit_bytes():
    # Generation-aware scoped-VMEM budget: most of physical VMEM on 128 MiB
    # parts (v5e/v6e), ~7/8 of 64 MiB on v7x; conservative fallback otherwise.
    try:
        cap = int(pltpu.get_tpu_info().vmem_capacity_bytes)
    except Exception:
        cap = 64 * 1024 * 1024
    return int(min((cap * 7) // 8, 112 * 1024 * 1024))


def _full_spec(a):
    nd = a.ndim
    return pl.BlockSpec(a.shape, lambda i, _nd=nd: (0,) * _nd)


@functools.partial(
    jax.jit,
    static_argnames=("groups", "groups_out", "use_conv_shortcut",
                     "output_scale_factor"))
def resnet_block_3d(x_ncdhw, temb, params, *, groups, groups_out,
                    use_conv_shortcut=None, output_scale_factor=1.0):
    N, Cin, D, H, W = x_ncdhw.shape
    HW = H * W
    S = D * HW
    Cout = params["w1"].shape[2]
    Tch = params["wt"].shape[0]
    if use_conv_shortcut is None:
        use_conv_shortcut = (Cin != Cout)

    assert Cin % groups == 0 and Cout % groups_out == 0, \
        "GroupNorm requires channels divisible by groups (contiguous grouping)"
    if not use_conv_shortcut:
        assert Cin == Cout, "identity shortcut requires Cin == Cout"

    # NCDHW -> [N, C, D*H*W]: pure reshape.  HBM boundary is bf16 (the cast is
    # a no-op when the caller already supplies bf16 activations).
    x = x_ncdhw.reshape(N, Cin, S).astype(IO_DTYPE)
    temb3 = temb.reshape(N, 1, Tch).astype(jnp.float32)

    def grp_mats(C, G):
        cg = (jnp.arange(C)[:, None] // (C // G) == jnp.arange(G)[None, :])
        cg = cg.astype(jnp.float32)
        return cg, cg.T

    def col(v):
        return v.reshape(-1, 1).astype(jnp.float32)

    def conv_wT(w):  # [3, Ci, Co] -> [3*Co, Ci], tap-major, transposed, bf16
        return jnp.transpose(w, (0, 2, 1)).reshape(-1, w.shape[1]).astype(MATMUL_DTYPE)

    m1_cg, m1_gc = grp_mats(Cin, groups)
    m2_cg, m2_gc = grp_mats(Cout, groups_out)

    plist = [
        col(params["gn1_g"]), col(params["gn1_b"]), m1_cg, m1_gc,
        conv_wT(params["w1"]), col(params["b1"]),
        params["wt"].T.astype(jnp.float32), col(params["bt"]),
        col(params["gn2_g"]), col(params["gn2_b"]), m2_cg, m2_gc,
        conv_wT(params["w2"]), col(params["b2"]),
    ]
    if use_conv_shortcut:
        plist += [params["wsc"].T.astype(MATMUL_DTYPE), col(params["bsc"])]

    in_specs = [
        pl.BlockSpec((1, Cin, S), lambda i: (i, 0, 0)),
        pl.BlockSpec((1, 1, Tch), lambda i: (i, 0, 0)),
    ] + [_full_spec(p) for p in plist]

    kernel = functools.partial(
        resnet_block_kernel, hw=HW,
        has_conv_shortcut=use_conv_shortcut,
        inv_scale=float(1.0 / output_scale_factor))

    out = pl.pallas_call(
        kernel,
        out_shape=jax.ShapeDtypeStruct((N, Cout, S), IO_DTYPE),
        grid=(N,),
        in_specs=in_specs,
        out_specs=pl.BlockSpec((1, Cout, S), lambda i: (i, 0, 0)),
        scratch_shapes=[pltpu.VMEM((Cout, S), jnp.float32)],
        compiler_params=pltpu.CompilerParams(
            dimension_semantics=("parallel",),
            vmem_limit_bytes=_vmem_limit_bytes(),
        ),
    )(x, temb3, *plist)

    # [N, Cout, S] -> NCDHW: again a pure reshape.
    return out.reshape(N, Cout, D, H, W)


# --------------------------------------------------------------------------
# Pure-JAX f32 reference (NCDHW, mirrors the PyTorch forward exactly)
# --------------------------------------------------------------------------
def reference(x, temb, params, *, groups, groups_out, use_conv_shortcut=None,
              output_scale_factor=1.0):
    Cin = x.shape[1]
    Cout = params["w1"].shape[2]
    if use_conv_shortcut is None:
        use_conv_shortcut = (Cin != Cout)

    def silu(v):
        return v * jax.nn.sigmoid(v)

    def gn(h, gamma, beta, G):
        Nb = h.shape[0]
        hr = h.reshape(Nb, G, -1)
        m = hr.mean(axis=2, keepdims=True)
        v = ((hr - m) ** 2).mean(axis=2, keepdims=True)
        hn = ((hr - m) * lax.rsqrt(v + EPS)).reshape(h.shape)
        return hn * gamma[None, :, None, None, None] + beta[None, :, None, None, None]

    def tconv(h, w, b):
        Dl = h.shape[2]
        hp = jnp.pad(h, ((0, 0), (0, 0), (1, 1), (0, 0), (0, 0)))
        out = 0.0
        for k in range(3):
            out = out + jnp.einsum("nidhw,io->nodhw", hp[:, :, k:k + Dl], w[k])
        return out + b[None, :, None, None, None]

    h = gn(x, params["gn1_g"], params["gn1_b"], groups)
    h = silu(h)
    h = tconv(h, params["w1"], params["b1"])
    tp = silu(temb) @ params["wt"] + params["bt"]
    h = h + tp[:, :, None, None, None]
    h = gn(h, params["gn2_g"], params["gn2_b"], groups_out)
    h = silu(h)
    h = tconv(h, params["w2"], params["b2"])
    if use_conv_shortcut:
        sc = jnp.einsum("nidhw,io->nodhw", x, params["wsc"]) \
            + params["bsc"][None, :, None, None, None]
    else:
        sc = x
    return (sc + h) / output_scale_factor


# --------------------------------------------------------------------------
if __name__ == "__main__":
    def make_params(key, Cin, Cout, Tch, with_shortcut):
        ks = jax.random.split(key, 12)
        p = {
            "gn1_g": 1.0 + 0.1 * jax.random.normal(ks[0], (Cin,), jnp.float32),
            "gn1_b": 0.1 * jax.random.normal(ks[1], (Cin,), jnp.float32),
            "w1": 0.1 * jax.random.normal(ks[2], (3, Cin, Cout), jnp.float32),
            "b1": 0.05 * jax.random.normal(ks[3], (Cout,), jnp.float32),
            "wt": 0.1 * jax.random.normal(ks[4], (Tch, Cout), jnp.float32),
            "bt": 0.05 * jax.random.normal(ks[5], (Cout,), jnp.float32),
            "gn2_g": 1.0 + 0.1 * jax.random.normal(ks[6], (Cout,), jnp.float32),
            "gn2_b": 0.1 * jax.random.normal(ks[7], (Cout,), jnp.float32),
            "w2": 0.1 * jax.random.normal(ks[8], (3, Cout, Cout), jnp.float32),
            "b2": 0.05 * jax.random.normal(ks[9], (Cout,), jnp.float32),
        }
        if with_shortcut:
            p["wsc"] = 0.1 * jax.random.normal(ks[10], (Cin, Cout), jnp.float32)
            p["bsc"] = 0.05 * jax.random.normal(ks[11], (Cout,), jnp.float32)
        return p

    # Tolerance accounts for bf16 MXU operands (f32 accumulation), the approx
    # reciprocal in SiLU, and the bf16 output store.  The reference is computed
    # on the same bf16-rounded inputs so the comparison is apples-to-apples.
    RTOL = ATOL = 5e-2

    key = jax.random.PRNGKey(0)
    k_p1, k_p2, k_x1, k_t1, k_x2, k_t2 = jax.random.split(key, 6)

    # Config 1: in_channels != out_channels -> 1x1x1 conv-shortcut path.
    # H*W = 256 -> exercises the lane-aligned frame-shift path.
    N, Cin, Cout, D, H, W, Tch, G = 2, 32, 64, 4, 16, 16, 64, 8
    params1 = make_params(k_p1, Cin, Cout, Tch, with_shortcut=True)
    x1 = jax.random.normal(k_x1, (N, Cin, D, H, W), jnp.float32).astype(IO_DTYPE)
    t1 = jax.random.normal(k_t1, (N, Tch), jnp.float32)
    out1 = resnet_block_3d(x1, t1, params1, groups=G, groups_out=G)
    out1 = jax.block_until_ready(out1)
    ref1 = reference(x1.astype(jnp.float32), t1, params1, groups=G, groups_out=G)
    np.testing.assert_allclose(np.asarray(out1.astype(jnp.float32)),
                               np.asarray(ref1), rtol=RTOL, atol=ATOL)

    # Config 2: in_channels == out_channels -> identity shortcut path.
    # H*W = 64 -> exercises the unaligned-shift fallback path.
    Cin2 = Cout2 = 32
    D2, H2, W2 = 4, 8, 8
    params2 = make_params(k_p2, Cin2, Cout2, Tch, with_shortcut=False)
    x2 = jax.random.normal(k_x2, (N, Cin2, D2, H2, W2), jnp.float32).astype(IO_DTYPE)
    t2 = jax.random.normal(k_t2, (N, Tch), jnp.float32)
    out2 = resnet_block_3d(x2, t2, params2, groups=G, groups_out=G)
    out2 = jax.block_until_ready(out2)
    ref2 = reference(x2.astype(jnp.float32), t2, params2, groups=G, groups_out=G)
    np.testing.assert_allclose(np.asarray(out2.astype(jnp.float32)),
                               np.asarray(ref2), rtol=RTOL, atol=ATOL)

    print("KERNEL_OK")
</pallas_src>

<mosaic_0001>
module attributes {stable_mosaic.version = 11 : i64} {
  func.func @resnet_block_kernel(%arg0: i32, %arg1: memref<1x32x1024xbf16, #tpu.memory_space<vmem>>, %arg2: memref<1x1x64xf32, #tpu.memory_space<vmem>>, %arg3: memref<32x1xf32, #tpu.memory_space<vmem>>, %arg4: memref<32x1xf32, #tpu.memory_space<vmem>>, %arg5: memref<32x8xf32, #tpu.memory_space<vmem>>, %arg6: memref<8x32xf32, #tpu.memory_space<vmem>>, %arg7: memref<192x32xbf16, #tpu.memory_space<vmem>>, %arg8: memref<64x1xf32, #tpu.memory_space<vmem>>, %arg9: memref<64x64xf32, #tpu.memory_space<vmem>>, %arg10: memref<64x1xf32, #tpu.memory_space<vmem>>, %arg11: memref<64x1xf32, #tpu.memory_space<vmem>>, %arg12: memref<64x1xf32, #tpu.memory_space<vmem>>, %arg13: memref<64x8xf32, #tpu.memory_space<vmem>>, %arg14: memref<8x64xf32, #tpu.memory_space<vmem>>, %arg15: memref<192x64xbf16, #tpu.memory_space<vmem>>, %arg16: memref<64x1xf32, #tpu.memory_space<vmem>>, %arg17: memref<64x32xbf16, #tpu.memory_space<vmem>>, %arg18: memref<64x1xf32, #tpu.memory_space<vmem>>, %arg19: memref<1x64x1024xbf16, #tpu.memory_space<vmem>>, %arg20: memref<64x1024xf32, #tpu.memory_space<vmem>>) attributes {dimension_semantics = [#tpu.dimension_semantics<parallel>], iteration_bounds = array<i64: 2>, scalar_prefetch = 0 : i64, scratch_operands = 1 : i64, tpu.core_type = #tpu.core_type<tc>, window_params = [{transform_indices = @transform_0, window_bounds = array<i64: 1, 32, 1024>}, {transform_indices = @transform_1, window_bounds = array<i64: 1, 1, 64>}, {pipeline_mode = #tpu.pipeline_mode<synchronous>, transform_indices = @transform_2, window_bounds = array<i64: 32, 1>}, {pipeline_mode = #tpu.pipeline_mode<synchronous>, transform_indices = @transform_3, window_bounds = array<i64: 32, 1>}, {pipeline_mode = #tpu.pipeline_mode<synchronous>, transform_indices = @transform_4, window_bounds = array<i64: 32, 8>}, {pipeline_mode = #tpu.pipeline_mode<synchronous>, transform_indices = @transform_5, window_bounds = array<i64: 8, 32>}, {pipeline_mode = #tpu.pipeline_mode<synchronous>, transform_indices = @transform_6, window_bounds = array<i64: 192, 32>}, {pipeline_mode = #tpu.pipeline_mode<synchronous>, transform_indices = @transform_7, window_bounds = array<i64: 64, 1>}, {pipeline_mode = #tpu.pipeline_mode<synchronous>, transform_indices = @transform_8, window_bounds = array<i64: 64, 64>}, {pipeline_mode = #tpu.pipeline_mode<synchronous>, transform_indices = @transform_9, window_bounds = array<i64: 64, 1>}, {pipeline_mode = #tpu.pipeline_mode<synchronous>, transform_indices = @transform_10, window_bounds = array<i64: 64, 1>}, {pipeline_mode = #tpu.pipeline_mode<synchronous>, transform_indices = @transform_11, window_bounds = array<i64: 64, 1>}, {pipeline_mode = #tpu.pipeline_mode<synchronous>, transform_indices = @transform_12, window_bounds = array<i64: 64, 8>}, {pipeline_mode = #tpu.pipeline_mode<synchronous>, transform_indices = @transform_13, window_bounds = array<i64: 8, 64>}, {pipeline_mode = #tpu.pipeline_mode<synchronous>, transform_indices = @transform_14, window_bounds = array<i64: 192, 64>}, {pipeline_mode = #tpu.pipeline_mode<synchronous>, transform_indices = @transform_15, window_bounds = array<i64: 64, 1>}, {pipeline_mode = #tpu.pipeline_mode<synchronous>, transform_indices = @transform_16, window_bounds = array<i64: 64, 32>}, {pipeline_mode = #tpu.pipeline_mode<synchronous>, transform_indices = @transform_17, window_bounds = array<i64: 64, 1>}, {transform_indices = @transform_18, window_bounds = array<i64: 1, 64, 1024>}]} {
    %c0 = arith.constant 0 : index
    %c0_0 = arith.constant 0 : index
    %c0_1 = arith.constant 0 : index
    %0 = vector.load %arg1[%c0, %c0_0, %c0_1] : memref<1x32x1024xbf16, #tpu.memory_space<vmem>>, vector<1x32x1024xbf16>
    %1 = vector.shape_cast %0 : vector<1x32x1024xbf16> to vector<32x1024xbf16>
    %2 = arith.extf %1 : vector<32x1024xbf16> to vector<32x1024xf32>
    %c0_2 = arith.constant 0 : index
    %c0_3 = arith.constant 0 : index
    %3 = vector.load %arg5[%c0_2, %c0_3] : memref<32x8xf32, #tpu.memory_space<vmem>>, vector<32x8xf32>
    %c0_4 = arith.constant 0 : index
    %c0_5 = arith.constant 0 : index
    %4 = vector.load %arg6[%c0_4, %c0_5] : memref<8x32xf32, #tpu.memory_space<vmem>>, vector<8x32xf32>
    %cst = arith.constant dense<0.000000e+00> : vector<8x1024xf32>
    %5 = tpu.matmul %4, %2, %cst {dimension_numbers = #tpu.dot_dimension_numbers<[1], [0], [0], [1], [0, 0, 1, 1], [], []>} : vector<8x32xf32>, vector<32x1024xf32>, vector<8x1024xf32> -> vector<8x1024xf32>
    %cst_6 = arith.constant dense<0.000000e+00> : vector<8xf32>
    %6 = vector.multi_reduction <add>, %5, %cst_6 [1] : vector<8x1024xf32> to vector<8xf32>
    %7 = vector.shape_cast %6 : vector<8xf32> to vector<8x1xf32>
    %cst_7 = arith.constant 2.44140625E-4 : f32
    %8 = vector.broadcast %cst_7 : f32 to vector<8x1xf32>
    %9 = arith.mulf %7, %8 : vector<8x1xf32>
    %cst_8 = arith.constant dense<0.000000e+00> : vector<32x1xf32>
    %10 = tpu.matmul %3, %9, %cst_8 {dimension_numbers = #tpu.dot_dimension_numbers<[1], [0], [0], [1], [0, 0, 1, 1], [], []>} : vector<32x8xf32>, vector<8x1xf32>, vector<32x1xf32> -> vector<32x1xf32>
    %11 = vector.broadcast %10 : vector<32x1xf32> to vector<32x1024xf32>
    %12 = arith.subf %2, %11 : vector<32x1024xf32>
    %13 = arith.mulf %12, %12 : vector<32x1024xf32>
    %cst_9 = arith.constant dense<0.000000e+00> : vector<8x1024xf32>
    %14 = tpu.matmul %4, %13, %cst_9 {dimension_numbers = #tpu.dot_dimension_numbers<[1], [0], [0], [1], [0, 0, 1, 1], [], []>} : vector<8x32xf32>, vector<32x1024xf32>, vector<8x1024xf32> -> vector<8x1024xf32>
    %cst_10 = arith.constant dense<0.000000e+00> : vector<8xf32>
    %15 = vector.multi_reduction <add>, %14, %cst_10 [1] : vector<8x1024xf32> to vector<8xf32>
    %16 = vector.shape_cast %15 : vector<8xf32> to vector<8x1xf32>
    %cst_11 = arith.constant 2.44140625E-4 : f32
    %17 = vector.broadcast %cst_11 : f32 to vector<8x1xf32>
    %18 = arith.mulf %16, %17 : vector<8x1xf32>
    %cst_12 = arith.constant 9.99999974E-6 : f32
    %19 = vector.broadcast %cst_12 : f32 to vector<8x1xf32>
    %20 = arith.addf %18, %19 : vector<8x1xf32>
    %21 = math.rsqrt %20 : vector<8x1xf32>
    %cst_13 = arith.constant dense<0.000000e+00> : vector<32x1xf32>
    %22 = tpu.matmul %3, %21, %cst_13 {dimension_numbers = #tpu.dot_dimension_numbers<[1], [0], [0], [1], [0, 0, 1, 1], [], []>} : vector<32x8xf32>, vector<8x1xf32>, vector<32x1xf32> -> vector<32x1xf32>
    %c0_14 = arith.constant 0 : index
    %c0_15 = arith.constant 0 : index
    %23 = vector.load %arg3[%c0_14, %c0_15] : memref<32x1xf32, #tpu.memory_space<vmem>>, vector<32x1xf32>
    %24 = arith.mulf %22, %23 : vector<32x1xf32>
    %25 = vector.broadcast %24 : vector<32x1xf32> to vector<32x1024xf32>
    %26 = arith.mulf %12, %25 : vector<32x1024xf32>
    %c0_16 = arith.constant 0 : index
    %c0_17 = arith.constant 0 : index
    %27 = vector.load %arg4[%c0_16, %c0_17] : memref<32x1xf32, #tpu.memory_space<vmem>>, vector<32x1xf32>
    %28 = vector.broadcast %27 : vector<32x1xf32> to vector<32x1024xf32>
    %29 = arith.addf %26, %28 : vector<32x1024xf32>
    %cst_18 = arith.constant 0.000000e+00 : f32
    %30 = vector.broadcast %cst_18 : f32 to vector<32x1024xf32>
    %31 = arith.subf %30, %29 : vector<32x1024xf32>
    %32 = math.exp %31 : vector<32x1024xf32>
    %cst_19 = arith.constant 1.000000e+00 : f32
    %33 = vector.broadcast %cst_19 : f32 to vector<32x1024xf32>
    %34 = arith.addf %33, %32 : vector<32x1024xf32>
    %35 = tpu.reciprocal %34 {approx = true} : vector<32x1024xf32> -> vector<32x1024xf32>
    %36 = arith.mulf %29, %35 : vector<32x1024xf32>
    %37 = arith.truncf %36 : vector<32x1024xf32> to vector<32x1024xbf16>
    %c0_20 = arith.constant 0 : index
    %c0_21 = arith.constant 0 : index
    %c0_22 = arith.constant 0 : index
    %38 = vector.load %arg2[%c0_20, %c0_21, %c0_22] : memref<1x1x64xf32, #tpu.memory_space<vmem>>, vector<1x1x64xf32>
    %39 = vector.shape_cast %38 : vector<1x1x64xf32> to vector<1x64xf32>
    %cst_23 = arith.constant 0.000000e+00 : f32
    %40 = vector.broadcast %cst_23 : f32 to vector<1x64xf32>
    %41 = arith.subf %40, %39 : vector<1x64xf32>
    %42 = math.exp %41 : vector<1x64xf32>
    %cst_24 = arith.constant 1.000000e+00 : f32
    %43 = vector.broadcast %cst_24 : f32 to vector<1x64xf32>
    %44 = arith.addf %43, %42 : vector<1x64xf32>
    %45 = tpu.reciprocal %44 {approx = true} : vector<1x64xf32> -> vector<1x64xf32>
    %46 = arith.mulf %39, %45 : vector<1x64xf32>
    %c0_25 = arith.constant 0 : index
    %c0_26 = arith.constant 0 : index
    %47 = vector.load %arg9[%c0_25, %c0_26] : memref<64x64xf32, #tpu.memory_space<vmem>>, vector<64x64xf32>
    %48 = vector.broadcast %46 : vector<1x64xf32> to vector<64x64xf32>
    %49 = arith.mulf %47, %48 : vector<64x64xf32>
    %cst_27 = arith.constant dense<0.000000e+00> : vector<64xf32>
    %50 = vector.multi_reduction <add>, %49, %cst_27 [1] : vector<64x64xf32> to vector<64xf32>
    %51 = vector.shape_cast %50 : vector<64xf32> to vector<64x1xf32>
    %c0_28 = arith.constant 0 : index
    %c0_29 = arith.constant 0 : index
    %52 = vector.load %arg10[%c0_28, %c0_29] : memref<64x1xf32, #tpu.memory_space<vmem>>, vector<64x1xf32>
    %53 = arith.addf %51, %52 : vector<64x1xf32>
    %c0_30 = arith.constant 0 : index
    %c0_31 = arith.constant 0 : index
    %54 = vector.load %arg8[%c0_30, %c0_31] : memref<64x1xf32, #tpu.memory_space<vmem>>, vector<64x1xf32>
    %55 = arith.addf %54, %53 : vector<64x1xf32>
    %c0_32 = arith.constant 0 : index
    %c0_33 = arith.constant 0 : index
    %56 = vector.load %arg7[%c0_32, %c0_33] : memref<192x32xbf16, #tpu.memory_space<vmem>>, vector<192x32xbf16>
    %57 = vector.extract_strided_slice %56 {offsets = [64, 0], sizes = [64, 32], strides = [1, 1]} : vector<192x32xbf16> to vector<64x32xbf16>
    %cst_34 = arith.constant dense<0.000000e+00> : vector<64x1024xf32>
    %58 = tpu.matmul %57, %37, %cst_34 {dimension_numbers = #tpu.dot_dimension_numbers<[1], [0], [0], [1], [0, 0, 1, 1], [], []>} : vector<64x32xbf16>, vector<32x1024xbf16>, vector<64x1024xf32> -> vector<64x1024xf32>
    %59 = vector.broadcast %55 : vector<64x1xf32> to vector<64x1024xf32>
    %60 = arith.addf %58, %59 : vector<64x1024xf32>
    %c0_35 = arith.constant 0 : index
    %c0_36 = arith.constant 0 : index
    %61 = vector.load %arg20[%c0_35, %c0_36] : memref<64x1024xf32, #tpu.memory_space<vmem>>, vector<64x1024xf32>
    tpu.vector_store %arg20[%c0_35, %c0_36], %60 {strides = array<i32>} : memref<64x1024xf32, #tpu.memory_space<vmem>>, vector<64x1024xf32>,
    %62 = vector.extract_strided_slice %56 {offsets = [0, 0], sizes = [64, 32], strides = [1, 1]} : vector<192x32xbf16> to vector<64x32xbf16>
    %cst_37 = arith.constant dense<0.000000e+00> : vector<64x1024xf32>
    %63 = tpu.matmul %62, %37, %cst_37 {dimension_numbers = #tpu.dot_dimension_numbers<[1], [0], [0], [1], [0, 0, 1, 1], [], []>} : vector<64x32xbf16>, vector<32x1024xbf16>, vector<64x1024xf32> -> vector<64x1024xf32>
    %64 = vector.extract_strided_slice %56 {offsets = [128, 0], sizes = [64, 32], strides = [1, 1]} : vector<192x32xbf16> to vector<64x32xbf16>
    %cst_38 = arith.constant dense<0.000000e+00> : vector<64x1024xf32>
    %65 = tpu.matmul %64, %37, %cst_38 {dimension_numbers = #tpu.dot_dimension_numbers<[1], [0], [0], [1], [0, 0, 1, 1], [], []>} : vector<64x32xbf16>, vector<32x1024xbf16>, vector<64x1024xf32> -> vector<64x1024xf32>
    %c0_39 = arith.constant 0 : index
    %c256 = arith.constant 256 : index
    %66 = vector.load %arg20[%c0_39, %c256] : memref<64x1024xf32, #tpu.memory_space<vmem>>, vector<64x768xf32>
    %67 = vector.extract_strided_slice %63 {offsets = [0, 0], sizes = [64, 768], strides = [1, 1]} : vector<64x1024xf32> to vector<64x768xf32>
    %68 = arith.addf %66, %67 : vector<64x768xf32>
    %c0_40 = arith.constant 0 : index
    %c256_41 = arith.constant 256 : index
    %69 = vector.load %arg20[%c0_40, %c256_41] : memref<64x1024xf32, #tpu.memory_space<vmem>>, vector<64x768xf32>
    tpu.vector_store %arg20[%c0_40, %c256_41], %68 {strides = array<i32>} : memref<64x1024xf32, #tpu.memory_space<vmem>>, vector<64x768xf32>,
    %c0_42 = arith.constant 0 : index
    %c0_43 = arith.constant 0 : index
    %70 = vector.load %arg20[%c0_42, %c0_43] : memref<64x1024xf32, #tpu.memory_space<vmem>>, vector<64x768xf32>
    %71 = vector.extract_strided_slice %65 {offsets = [0, 256], sizes = [64, 768], strides = [1, 1]} : vector<64x1024xf32> to vector<64x768xf32>
    %72 = arith.addf %70, %71 : vector<64x768xf32>
    %c0_44 = arith.constant 0 : index
    %c0_45 = arith.constant 0 : index
    %73 = vector.load %arg20[%c0_44, %c0_45] : memref<64x1024xf32, #tpu.memory_space<vmem>>, vector<64x768xf32>
    tpu.vector_store %arg20[%c0_44, %c0_45], %72 {strides = array<i32>} : memref<64x1024xf32, #tpu.memory_space<vmem>>, vector<64x768xf32>,
    %c0_46 = arith.constant 0 : index
    %c0_47 = arith.constant 0 : index
    %74 = vector.load %arg20[%c0_46, %c0_47] : memref<64x1024xf32, #tpu.memory_space<vmem>>, vector<64x1024xf32>
    %c0_48 = arith.constant 0 : index
    %c0_49 = arith.constant 0 : index
    %75 = vector.load %arg13[%c0_48, %c0_49] : memref<64x8xf32, #tpu.memory_space<vmem>>, vector<64x8xf32>
    %c0_50 = arith.constant 0 : index
    %c0_51 = arith.constant 0 : index
    %76 = vector.load %arg14[%c0_50, %c0_51] : memref<8x64xf32, #tpu.memory_space<vmem>>, vector<8x64xf32>
    %cst_52 = arith.constant dense<0.000000e+00> : vector<8x1024xf32>
    %77 = tpu.matmul %76, %74, %cst_52 {dimension_numbers = #tpu.dot_dimension_numbers<[1], [0], [0], [1], [0, 0, 1, 1], [], []>} : vector<8x64xf32>, vector<64x1024xf32>, vector<8x1024xf32> -> vector<8x1024xf32>
    %cst_53 = arith.constant dense<0.000000e+00> : vector<8xf32>
    %78 = vector.multi_reduction <add>, %77, %cst_53 [1] : vector<8x1024xf32> to vector<8xf32>
    %79 = vector.shape_cast %78 : vector<8xf32> to vector<8x1xf32>
    %cst_54 = arith.constant 1.22070313E-4 : f32
    %80 = vector.broadcast %cst_54 : f32 to vector<8x1xf32>
    %81 = arith.mulf %79, %80 : vector<8x1xf32>
    %cst_55 = arith.constant dense<0.000000e+00> : vector<64x1xf32>
    %82 = tpu.matmul %75, %81, %cst_55 {dimension_numbers = #tpu.dot_dimension_numbers<[1], [0], [0], [1], [0, 0, 1, 1], [], []>} : vector<64x8xf32>, vector<8x1xf32>, vector<64x1xf32> -> vector<64x1xf32>
    %83 = vector.broadcast %82 : vector<64x1xf32> to vector<64x1024xf32>
    %84 = arith.subf %74, %83 : vector<64x1024xf32>
    %85 = arith.mulf %84, %84 : vector<64x1024xf32>
    %cst_56 = arith.constant dense<0.000000e+00> : vector<8x1024xf32>
    %86 = tpu.matmul %76, %85, %cst_56 {dimension_numbers = #tpu.dot_dimension_numbers<[1], [0], [0], [1], [0, 0, 1, 1], [], []>} : vector<8x64xf32>, vector<64x1024xf32>, vector<8x1024xf32> -> vector<8x1024xf32>
    %cst_57 = arith.constant dense<0.000000e+00> : vector<8xf32>
    %87 = vector.multi_reduction <add>, %86, %cst_57 [1] : vector<8x1024xf32> to vector<8xf32>
    %88 = vector.shape_cast %87 : vector<8xf32> to vector<8x1xf32>
    %cst_58 = arith.constant 1.22070313E-4 : f32
    %89 = vector.broadcast %cst_58 : f32 to vector<8x1xf32>
    %90 = arith.mulf %88, %89 : vector<8x1xf32>
    %cst_59 = arith.constant 9.99999974E-6 : f32
    %91 = vector.broadcast %cst_59 : f32 to vector<8x1xf32>
    %92 = arith.addf %90, %91 : vector<8x1xf32>
    %93 = math.rsqrt %92 : vector<8x1xf32>
    %cst_60 = arith.constant dense<0.000000e+00> : vector<64x1xf32>
    %94 = tpu.matmul %75, %93, %cst_60 {dimension_numbers = #tpu.dot_dimension_numbers<[1], [0], [0], [1], [0, 0, 1, 1], [], []>} : vector<64x8xf32>, vector<8x1xf32>, vector<64x1xf32> -> vector<64x1xf32>
    %c0_61 = arith.constant 0 : index
    %c0_62 = arith.constant 0 : index
    %95 = vector.load %arg11[%c0_61, %c0_62] : memref<64x1xf32, #tpu.memory_space<vmem>>, vector<64x1xf32>
    %96 = arith.mulf %94, %95 : vector<64x1xf32>
    %97 = vector.broadcast %96 : vector<64x1xf32> to vector<64x1024xf32>
    %98 = arith.mulf %84, %97 : vector<64x1024xf32>
    %c0_63 = arith.constant 0 : index
    %c0_64 = arith.constant 0 : index
    %99 = vector.load %arg12[%c0_63, %c0_64] : memref<64x1xf32, #tpu.memory_space<vmem>>, vector<64x1xf32>
    %100 = vector.broadcast %99 : vector<64x1xf32> to vector<64x1024xf32>
    %101 = arith.addf %98, %100 : vector<64x1024xf32>
    %cst_65 = arith.constant 0.000000e+00 : f32
    %102 = vector.broadcast %cst_65 : f32 to vector<64x1024xf32>
    %103 = arith.subf %102, %101 : vector<64x1024xf32>
    %104 = math.exp %103 : vector<64x1024xf32>
    %cst_66 = arith.constant 1.000000e+00 : f32
    %105 = vector.broadcast %cst_66 : f32 to vector<64x1024xf32>
    %106 = arith.addf %105, %104 : vector<64x1024xf32>
    %107 = tpu.reciprocal %106 {approx = true} : vector<64x1024xf32> -> vector<64x1024xf32>
    %108 = arith.mulf %101, %107 : vector<64x1024xf32>
    %109 = arith.truncf %108 : vector<64x1024xf32> to vector<64x1024xbf16>
    %c0_67 = arith.constant 0 : index
    %c0_68 = arith.constant 0 : index
    %110 = vector.load %arg16[%c0_67, %c0_68] : memref<64x1xf32, #tpu.memory_space<vmem>>, vector<64x1xf32>
    %c0_69 = arith.constant 0 : index
    %c0_70 = arith.constant 0 : index
    %111 = vector.load %arg15[%c0_69, %c0_70] : memref<192x64xbf16, #tpu.memory_space<vmem>>, vector<192x64xbf16>
    %112 = vector.extract_strided_slice %111 {offsets = [64, 0], sizes = [64, 64], strides = [1, 1]} : vector<192x64xbf16> to vector<64x64xbf16>
    %cst_71 = arith.constant dense<0.000000e+00> : vector<64x1024xf32>
    %113 = tpu.matmul %112, %109, %cst_71 {dimension_numbers = #tpu.dot_dimension_numbers<[1], [0], [0], [1], [0, 0, 1, 1], [], []>} : vector<64x64xbf16>, vector<64x1024xbf16>, vector<64x1024xf32> -> vector<64x1024xf32>
    %114 = vector.broadcast %110 : vector<64x1xf32> to vector<64x1024xf32>
    %115 = arith.addf %113, %114 : vector<64x1024xf32>
    %c0_72 = arith.constant 0 : index
    %c0_73 = arith.constant 0 : index
    %116 = vector.load %arg20[%c0_72, %c0_73] : memref<64x1024xf32, #tpu.memory_space<vmem>>, vector<64x1024xf32>
    tpu.vector_store %arg20[%c0_72, %c0_73], %115 {strides = array<i32>} : memref<64x1024xf32, #tpu.memory_space<vmem>>, vector<64x1024xf32>,
    %117 = vector.extract_strided_slice %111 {offsets = [0, 0], sizes = [64, 64], strides = [1, 1]} : vector<192x64xbf16> to vector<64x64xbf16>
    %cst_74 = arith.constant dense<0.000000e+00> : vector<64x1024xf32>
    %118 = tpu.matmul %117, %109, %cst_74 {dimension_numbers = #tpu.dot_dimension_numbers<[1], [0], [0], [1], [0, 0, 1, 1], [], []>} : vector<64x64xbf16>, vector<64x1024xbf16>, vector<64x1024xf32> -> vector<64x1024xf32>
    %119 = vector.extract_strided_slice %111 {offsets = [128, 0], sizes = [64, 64], strides = [1, 1]} : vector<192x64xbf16> to vector<64x64xbf16>
    %cst_75 = arith.constant dense<0.000000e+00> : vector<64x1024xf32>
    %120 = tpu.matmul %119, %109, %cst_75 {dimension_numbers = #tpu.dot_dimension_numbers<[1], [0], [0], [1], [0, 0, 1, 1], [], []>} : vector<64x64xbf16>, vector<64x1024xbf16>, vector<64x1024xf32> -> vector<64x1024xf32>
    %c0_76 = arith.constant 0 : index
    %c256_77 = arith.constant 256 : index
    %121 = vector.load %arg20[%c0_76, %c256_77] : memref<64x1024xf32, #tpu.memory_space<vmem>>, vector<64x768xf32>
    %122 = vector.extract_strided_slice %118 {offsets = [0, 0], sizes = [64, 768], strides = [1, 1]} : vector<64x1024xf32> to vector<64x768xf32>
    %123 = arith.addf %121, %122 : vector<64x768xf32>
    %c0_78 = arith.constant 0 : index
    %c256_79 = arith.constant 256 : index
    %124 = vector.load %arg20[%c0_78, %c256_79] : memref<64x1024xf32, #tpu.memory_space<vmem>>, vector<64x768xf32>
    tpu.vector_store %arg20[%c0_78, %c256_79], %123 {strides = array<i32>} : memref<64x1024xf32, #tpu.memory_space<vmem>>, vector<64x768xf32>,
    %c0_80 = arith.constant 0 : index
    %c0_81 = arith.constant 0 : index
    %125 = vector.load %arg20[%c0_80, %c0_81] : memref<64x1024xf32, #tpu.memory_space<vmem>>, vector<64x768xf32>
    %126 = vector.extract_strided_slice %120 {offsets = [0, 256], sizes = [64, 768], strides = [1, 1]} : vector<64x1024xf32> to vector<64x768xf32>
    %127 = arith.addf %125, %126 : vector<64x768xf32>
    %c0_82 = arith.constant 0 : index
    %c0_83 = arith.constant 0 : index
    %128 = vector.load %arg20[%c0_82, %c0_83] : memref<64x1024xf32, #tpu.memory_space<vmem>>, vector<64x768xf32>
    tpu.vector_store %arg20[%c0_82, %c0_83], %127 {strides = array<i32>} : memref<64x1024xf32, #tpu.memory_space<vmem>>, vector<64x768xf32>,
    %c0_84 = arith.constant 0 : index
    %c0_85 = arith.constant 0 : index
    %129 = vector.load %arg20[%c0_84, %c0_85] : memref<64x1024xf32, #tpu.memory_space<vmem>>, vector<64x1024xf32>
    %c0_86 = arith.constant 0 : index
    %c0_87 = arith.constant 0 : index
    %130 = vector.load %arg17[%c0_86, %c0_87] : memref<64x32xbf16, #tpu.memory_space<vmem>>, vector<64x32xbf16>
    %c0_88 = arith.constant 0 : index
    %c0_89 = arith.constant 0 : index
    %c0_90 = arith.constant 0 : index
    %131 = vector.load %arg1[%c0_88, %c0_89, %c0_90] : memref<1x32x1024xbf16, #tpu.memory_space<vmem>>, vector<1x32x1024xbf16>
    %132 = vector.shape_cast %131 : vector<1x32x1024xbf16> to vector<32x1024xbf16>
    %cst_91 = arith.constant dense<0.000000e+00> : vector<64x1024xf32>
    %133 = tpu.matmul %130, %132, %cst_91 {dimension_numbers = #tpu.dot_dimension_numbers<[1], [0], [0], [1], [0, 0, 1, 1], [], []>} : vector<64x32xbf16>, vector<32x1024xbf16>, vector<64x1024xf32> -> vector<64x1024xf32>
    %c0_92 = arith.constant 0 : index
    %c0_93 = arith.constant 0 : index
    %134 = vector.load %arg18[%c0_92, %c0_93] : memref<64x1xf32, #tpu.memory_space<vmem>>, vector<64x1xf32>
    %135 = vector.broadcast %134 : vector<64x1xf32> to vector<64x1024xf32>
    %136 = arith.addf %133, %135 : vector<64x1024xf32>
    %137 = arith.addf %136, %129 : vector<64x1024xf32>
    %138 = arith.truncf %137 : vector<64x1024xf32> to vector<64x1024xbf16>
    %c0_94 = arith.constant 0 : index
    %c0_95 = arith.constant 0 : index
    %c0_96 = arith.constant 0 : index
    %139 = vector.load %arg19[%c0_94, %c0_95, %c0_96] : memref<1x64x1024xbf16, #tpu.memory_space<vmem>>, vector<1x64x1024xbf16>
    %140 = vector.shape_cast %139 : vector<1x64x1024xbf16> to vector<64x1024xbf16>
    %141 = vector.shape_cast %138 : vector<64x1024xbf16> to vector<1x64x1024xbf16>
    tpu.vector_store %arg19[%c0_94, %c0_95, %c0_96], %141 {strides = array<i32>} : memref<1x64x1024xbf16, #tpu.memory_space<vmem>>, vector<1x64x1024xbf16>,
    return
  }
  func.func @transform_0(%arg0: i32) -> (i32, i32, i32) {
    %c0_i32 = arith.constant 0 : i32
    %c0_i32_0 = arith.constant 0 : i32
    %c0_i32_1 = arith.constant 0 : i32
    return %arg0, %c0_i32, %c0_i32_0 : i32, i32, i32
  }
  func.func @transform_1(%arg0: i32) -> (i32, i32, i32) {
    %c0_i32 = arith.constant 0 : i32
    %c0_i32_0 = arith.constant 0 : i32
    %c0_i32_1 = arith.constant 0 : i32
    return %arg0, %c0_i32, %c0_i32_0 : i32, i32, i32
  }
  func.func @transform_2(%arg0: i32) -> (i32, i32) {
    %c0_i32 = arith.constant 0 : i32
    %c0_i32_0 = arith.constant 0 : i32
    %c0_i32_1 = arith.constant 0 : i32
    return %c0_i32, %c0_i32_0 : i32, i32
  }
  func.func @transform_3(%arg0: i32) -> (i32, i32) {
    %c0_i32 = arith.constant 0 : i32
    %c0_i32_0 = arith.constant 0 : i32
    %c0_i32_1 = arith.constant 0 : i32
    return %c0_i32, %c0_i32_0 : i32, i32
  }
  func.func @transform_4(%arg0: i32) -> (i32, i32) {
    %c0_i32 = arith.constant 0 : i32
    %c0_i32_0 = arith.constant 0 : i32
    %c0_i32_1 = arith.constant 0 : i32
    return %c0_i32, %c0_i32_0 : i32, i32
  }
  func.func @transform_5(%arg0: i32) -> (i32, i32) {
    %c0_i32 = arith.constant 0 : i32
    %c0_i32_0 = arith.constant 0 : i32
    %c0_i32_1 = arith.constant 0 : i32
    return %c0_i32, %c0_i32_0 : i32, i32
  }
  func.func @transform_6(%arg0: i32) -> (i32, i32) {
    %c0_i32 = arith.constant 0 : i32
    %c0_i32_0 = arith.constant 0 : i32
    %c0_i32_1 = arith.constant 0 : i32
    return %c0_i32, %c0_i32_0 : i32, i32
  }
  func.func @transform_7(%arg0: i32) -> (i32, i32) {
    %c0_i32 = arith.constant 0 : i32
    %c0_i32_0 = arith.constant 0 : i32
    %c0_i32_1 = arith.constant 0 : i32
    return %c0_i32, %c0_i32_0 : i32, i32
  }
  func.func @transform_8(%arg0: i32) -> (i32, i32) {
    %c0_i32 = arith.constant 0 : i32
    %c0_i32_0 = arith.constant 0 : i32
    %c0_i32_1 = arith.constant 0 : i32
    return %c0_i32, %c0_i32_0 : i32, i32
  }
  func.func @transform_9(%arg0: i32) -> (i32, i32) {
    %c0_i32 = arith.constant 0 : i32
    %c0_i32_0 = arith.constant 0 : i32
    %c0_i32_1 = arith.constant 0 : i32
    return %c0_i32, %c0_i32_0 : i32, i32
  }
  func.func @transform_10(%arg0: i32) -> (i32, i32) {
    %c0_i32 = arith.constant 0 : i32
    %c0_i32_0 = arith.constant 0 : i32
    %c0_i32_1 = arith.constant 0 : i32
    return %c0_i32, %c0_i32_0 : i32, i32
  }
  func.func @transform_11(%arg0: i32) -> (i32, i32) {
    %c0_i32 = arith.constant 0 : i32
    %c0_i32_0 = arith.constant 0 : i32
    %c0_i32_1 = arith.constant 0 : i32
    return %c0_i32, %c0_i32_0 : i32, i32
  }
  func.func @transform_12(%arg0: i32) -> (i32, i32) {
    %c0_i32 = arith.constant 0 : i32
    %c0_i32_0 = arith.constant 0 : i32
    %c0_i32_1 = arith.constant 0 : i32
    return %c0_i32, %c0_i32_0 : i32, i32
  }
  func.func @transform_13(%arg0: i32) -> (i32, i32) {
    %c0_i32 = arith.constant 0 : i32
    %c0_i32_0 = arith.constant 0 : i32
    %c0_i32_1 = arith.constant 0 : i32
    return %c0_i32, %c0_i32_0 : i32, i32
  }
  func.func @transform_14(%arg0: i32) -> (i32, i32) {
    %c0_i32 = arith.constant 0 : i32
    %c0_i32_0 = arith.constant 0 : i32
    %c0_i32_1 = arith.constant 0 : i32
    return %c0_i32, %c0_i32_0 : i32, i32
  }
  func.func @transform_15(%arg0: i32) -> (i32, i32) {
    %c0_i32 = arith.constant 0 : i32
    %c0_i32_0 = arith.constant 0 : i32
    %c0_i32_1 = arith.constant 0 : i32
    return %c0_i32, %c0_i32_0 : i32, i32
  }
  func.func @transform_16(%arg0: i32) -> (i32, i32) {
    %c0_i32 = arith.constant 0 : i32
    %c0_i32_0 = arith.constant 0 : i32
    %c0_i32_1 = arith.constant 0 : i32
    return %c0_i32, %c0_i32_0 : i32, i32
  }
  func.func @transform_17(%arg0: i32) -> (i32, i32) {
    %c0_i32 = arith.constant 0 : i32
    %c0_i32_0 = arith.constant 0 : i32
    %c0_i32_1 = arith.constant 0 : i32
    return %c0_i32, %c0_i32_0 : i32, i32
  }
  func.func @transform_18(%arg0: i32) -> (i32, i32, i32) {
    %c0_i32 = arith.constant 0 : i32
    %c0_i32_0 = arith.constant 0 : i32
    %c0_i32_1 = arith.constant 0 : i32
    return %arg0, %c0_i32, %c0_i32_0 : i32, i32, i32
  }
}

</mosaic_0001>

<llo_original>
// kernel: resnet_block_3d.1
$region0: #{resnet_block_3d.1}
  #allocation0 [shape = 'u32[]', space=smem, size = 0x4, offset = 0x4, fixed_abs, tag = 'smem constant byte address 0x4 - core index']
  #allocation1 [shape = 'u32[72,128]{1,0:T(1,128)}', space=vmem, size = 0x9000, scoped, tag = 'internal scratch']
  #allocation2 [shape = 'f32[64,1024]{1,0:T(8,128)}', space=vmem, size = 0x40000, scoped, tag = 'scratch operand']
  %s0 = inlined_call_operand.vmem [shape: bf16[2,32,1024], index: 0, kind: input, shape index: {}]
  %s1 = inlined_call_operand.vmem [shape: f32[2,1,64], index: 1, kind: input, shape index: {}]
  %s2 = inlined_call_operand.vmem [shape: f32[32,1], index: 2, kind: input, shape index: {}]
  %s3 = inlined_call_operand.vmem [shape: f32[32,1], index: 3, kind: input, shape index: {}]
  %s4 = inlined_call_operand.vmem [shape: f32[32,8], index: 4, kind: input, shape index: {}]
  %s5 = inlined_call_operand.vmem [shape: f32[8,32], index: 5, kind: input, shape index: {}]
  %s6 = inlined_call_operand.vmem [shape: bf16[192,32], index: 6, kind: input, shape index: {}]
  %s7 = inlined_call_operand.vmem [shape: f32[64,1], index: 7, kind: input, shape index: {}]
  %s8 = inlined_call_operand.vmem [shape: f32[64,64], index: 8, kind: input, shape index: {}]
  %s9 = inlined_call_operand.vmem [shape: f32[64,1], index: 9, kind: input, shape index: {}]
  %s10 = inlined_call_operand.vmem [shape: f32[64,1], index: 10, kind: input, shape index: {}]
  %s11 = inlined_call_operand.vmem [shape: f32[64,1], index: 11, kind: input, shape index: {}]
  %s12 = inlined_call_operand.vmem [shape: f32[64,8], index: 12, kind: input, shape index: {}]
  %s13 = inlined_call_operand.vmem [shape: f32[8,64], index: 13, kind: input, shape index: {}]
  %s14 = inlined_call_operand.vmem [shape: bf16[192,64], index: 14, kind: input, shape index: {}]
  %s15 = inlined_call_operand.vmem [shape: f32[64,1], index: 15, kind: input, shape index: {}]
  %s16 = inlined_call_operand.vmem [shape: bf16[64,32], index: 16, kind: input, shape index: {}]
  %s17 = inlined_call_operand.vmem [shape: f32[64,1], index: 17, kind: input, shape index: {}]
  %s18 = inlined_call_operand.vmem [shape: bf16[2,64,1024], index: 18, kind: output, shape index: {}]
  %s19 = sld [smem:[#allocation0]]
  $region105: #{resnet_block_3d.1} parent=0
    _
  %s21 = ssub.s32 1, %s19
  %s22 = scalar_select 0, %s21, %s19
  loop: start=0, step=1, limit=4
  $region2: #{resnet_block_3d.1} parent=0 // loop_pre_header
    _
  $region3: #{resnet_block_3d.1} parent=0 // loop_header
    %s24 = sphi 0, %s28
    %p25 = scmp.ge.s32.totalorder %s24, 4
    %s34 = sphi 0, %s36
    %s37 = sphi 0, %s34
    %s38 = sphi 0, %s37
    %s54 = sphi 0, %s38
    %s60 = sphi 0, %s62
    %s63 = sphi 0, %s60
    %s64 = sphi 0, %s63
    %s80 = sphi 0, %s64
    %s84 = sphi 0, %s84
    %s86 = sphi 0, %s84
    %s87 = sphi 0, %s86
    %s101 = sphi 0, %s87
    %s105 = sphi 0, %s105
    %s107 = sphi 0, %s105
    %s108 = sphi 0, %s107
    %s122 = sphi 0, %s108
    %s126 = sphi 0, %s126
    %s128 = sphi 0, %s126
    %s129 = sphi 0, %s128
    %s143 = sphi 0, %s129
    %s147 = sphi 0, %s147
    %s149 = sphi 0, %s147
    %s150 = sphi 0, %s149
    %s164 = sphi 0, %s150
    %s168 = sphi 0, %s168
    %s170 = sphi 0, %s168
    %s171 = sphi 0, %s170
    %s185 = sphi 0, %s171
    %s189 = sphi 0, %s189
    %s191 = sphi 0, %s189
    %s192 = sphi 0, %s191
    %s206 = sphi 0, %s192
    %s210 = sphi 0, %s210
    %s212 = sphi 0, %s210
    %s213 = sphi 0, %s212
    %s227 = sphi 0, %s213
    %s231 = sphi 0, %s231
    %s233 = sphi 0, %s231
    %s234 = sphi 0, %s233
    %s248 = sphi 0, %s234
    %s252 = sphi 0, %s252
    %s254 = sphi 0, %s252
    %s255 = sphi 0, %s254
    %s269 = sphi 0, %s255
    %s273 = sphi 0, %s273
    %s275 = sphi 0, %s273
    %s276 = sphi 0, %s275
    %s290 = sphi 0, %s276
    %s294 = sphi 0, %s294
    %s296 = sphi 0, %s294
    %s297 = sphi 0, %s296
    %s311 = sphi 0, %s297
    %s315 = sphi 0, %s315
    %s317 = sphi 0, %s315
    %s318 = sphi 0, %s317
    %s332 = sphi 0, %s318
    %s336 = sphi 0, %s336
    %s338 = sphi 0, %s336
    %s339 = sphi 0, %s338
    %s353 = sphi 0, %s339
    %s357 = sphi 0, %s357
    %s359 = sphi 0, %s357
    %s360 = sphi 0, %s359
    %s374 = sphi 0, %s360
    %s378 = sphi 0, %s378
    %s380 = sphi 0, %s378
    %s381 = sphi 0, %s380
    %s395 = sphi 0, %s381
    %s399 = sphi 0, %s399
    %s401 = sphi 0, %s399
    %s402 = sphi 0, %s401
    %s416 = sphi 0, %s402
    %s422 = sphi 0, %s424
    %s425 = sphi 0, %s422
    %s426 = sphi 0, %s425
    %s442 = sphi 0, %s426
  $region4: #{resnet_block_3d.1} parent=0 // loop_header_branch
    %27 = sbr.rel (%p25) target = $region8
  $region5: #{resnet_block_3d.1} parent=0 // loop_body
    %s29 = ssub.s32 %s24, 1
    %s30 = ssub.s32 %s24, 2
    %s31 = sadd.s32 %s24, 1
    %s32 = ssub.s32 %s24, %s31
    %p33 = scmp.eq.s32.totalorder %s32, 0
    %s35 = sadd.s32 %s34, 1
    %s36 = scalar_select %p33, %s34, %s35
    %p39 = pneg %p33
    %p40 = scmp.eq.s32.totalorder %s24, 1
    %p41 = por %p39, %p40
    %p42 = scmp.ne.s32.totalorder %s34, %s37
    %p43 = scmp.eq.s32.totalorder %s24, 0
    %p44 = por %p42, %p43
    %p45 = scmp.ne.s32.totalorder %s34, %s37
    %p46 = scmp.eq.s32.totalorder %s29, 1
    %p47 = por %p45, %p46
    %p48 = scmp.ne.s32.totalorder %s37, %s38
    %p49 = scmp.eq.s32.totalorder %s29, 0
    %p50 = por %p48, %p49
    %p51 = scmp.ne.s32.totalorder %s37, %s38
    %p52 = scmp.eq.s32.totalorder %s30, 1
    %p53 = por %p51, %p52
    %p55 = scmp.ne.s32.totalorder %s38, %s54
    %p56 = scmp.eq.s32.totalorder %s30, 0
    %p57 = por %p55, %p56
    %s58 = ssub.s32 %s24, %s31
    %p59 = scmp.eq.s32.totalorder %s58, 0
    %s61 = sadd.s32 %s60, 1
    %s62 = scalar_select %p59, %s60, %s61
    %p65 = pneg %p59
    %p66 = scmp.eq.s32.totalorder %s24, 1
    %p67 = por %p65, %p66
    %p68 = scmp.ne.s32.totalorder %s60, %s63
    %p69 = scmp.eq.s32.totalorder %s24, 0
    %p70 = por %p68, %p69
    %p71 = scmp.ne.s32.totalorder %s60, %s63
    %p72 = scmp.eq.s32.totalorder %s29, 1
    %p73 = por %p71, %p72
    %p74 = scmp.ne.s32.totalorder %s63, %s64
    %p75 = scmp.eq.s32.totalorder %s29, 0
    %p76 = por %p74, %p75
    %p77 = scmp.ne.s32.totalorder %s63, %s64
    %p78 = scmp.eq.s32.totalorder %s30, 1
    %p79 = por %p77, %p78
    %p81 = scmp.ne.s32.totalorder %s64, %s80
    %p82 = scmp.eq.s32.totalorder %s30, 0
    %p83 = por %p81, %p82
    %s85 = sadd.s32 %s84, 1
    %p88 = scmp.eq.s32.totalorder %s24, 1
    %p89 = scmp.ne.s32.totalorder %s84, %s86
    %p90 = scmp.eq.s32.totalorder %s24, 0
    %p91 = por %p89, %p90
    %p92 = scmp.ne.s32.totalorder %s84, %s86
    %p93 = scmp.eq.s32.totalorder %s29, 1
    %p94 = por %p92, %p93
    %p95 = scmp.ne.s32.totalorder %s86, %s87
    %p96 = scmp.eq.s32.totalorder %s29, 0
    %p97 = por %p95, %p96
    %p98 = scmp.ne.s32.totalorder %s86, %s87
    %p99 = scmp.eq.s32.totalorder %s30, 1
    %p100 = por %p98, %p99
    %p102 = scmp.ne.s32.totalorder %s87, %s101
    %p103 = scmp.eq.s32.totalorder %s30, 0
    %p104 = por %p102, %p103
    %s106 = sadd.s32 %s105, 1
    %p109 = scmp.eq.s32.totalorder %s24, 1
    %p110 = scmp.ne.s32.totalorder %s105, %s107
    %p111 = scmp.eq.s32.totalorder %s24, 0
    %p112 = por %p110, %p111
    %p113 = scmp.ne.s32.totalorder %s105, %s107
    %p114 = scmp.eq.s32.totalorder %s29, 1
    %p115 = por %p113, %p114
    %p116 = scmp.ne.s32.totalorder %s107, %s108
    %p117 = scmp.eq.s32.totalorder %s29, 0
    %p118 = por %p116, %p117
    %p119 = scmp.ne.s32.totalorder %s107, %s108
    %p120 = scmp.eq.s32.totalorder %s30, 1
    %p121 = por %p119, %p120
    %p123 = scmp.ne.s32.totalorder %s108, %s122
    %p124 = scmp.eq.s32.totalorder %s30, 0
    %p125 = por %p123, %p124
    %s127 = sadd.s32 %s126, 1
    %p130 = scmp.eq.s32.totalorder %s24, 1
    %p131 = scmp.ne.s32.totalorder %s126, %s128
    %p132 = scmp.eq.s32.totalorder %s24, 0
    %p133 = por %p131, %p132
    %p134 = scmp.ne.s32.totalorder %s126, %s128
    %p135 = scmp.eq.s32.totalorder %s29, 1
    %p136 = por %p134, %p135
    %p137 = scmp.ne.s32.totalorder %s128, %s129
    %p138 = scmp.eq.s32.totalorder %s29, 0
    %p139 = por %p137, %p138
    %p140 = scmp.ne.s32.totalorder %s128, %s129
    %p141 = scmp.eq.s32.totalorder %s30, 1
    %p142 = por %p140, %p141
    %p144 = scmp.ne.s32.totalorder %s129, %s143
    %p145 = scmp.eq.s32.totalorder %s30, 0
    %p146 = por %p144, %p145
    %s148 = sadd.s32 %s147, 1
    %p151 = scmp.eq.s32.totalorder %s24, 1
    %p152 = scmp.ne.s32.totalorder %s147, %s149
    %p153 = scmp.eq.s32.totalorder %s24, 0
    %p154 = por %p152, %p153
    %p155 = scmp.ne.s32.totalorder %s147, %s149
    %p156 = scmp.eq.s32.totalorder %s29, 1
    %p157 = por %p155, %p156
    %p158 = scmp.ne.s32.totalorder %s149, %s150
    %p159 = scmp.eq.s32.totalorder %s29, 0
    %p160 = por %p158, %p159
    %p161 = scmp.ne.s32.totalorder %s149, %s150
    %p162 = scmp.eq.s32.totalorder %s30, 1
    %p163 = por %p161, %p162
    %p165 = scmp.ne.s32.totalorder %s150, %s164
    %p166 = scmp.eq.s32.totalorder %s30, 0
    %p167 = por %p165, %p166
    %s169 = sadd.s32 %s168, 1
    %p172 = scmp.eq.s32.totalorder %s24, 1
    %p173 = scmp.ne.s32.totalorder %s168, %s170
    %p174 = scmp.eq.s32.totalorder %s24, 0
    %p175 = por %p173, %p174
    %p176 = scmp.ne.s32.totalorder %s168, %s170
    %p177 = scmp.eq.s32.totalorder %s29, 1
    %p178 = por %p176, %p177
    %p179 = scmp.ne.s32.totalorder %s170, %s171
    %p180 = scmp.eq.s32.totalorder %s29, 0
    %p181 = por %p179, %p180
    %p182 = scmp.ne.s32.totalorder %s170, %s171
    %p183 = scmp.eq.s32.totalorder %s30, 1
    %p184 = por %p182, %p183
    %p186 = scmp.ne.s32.totalorder %s171, %s185
    %p187 = scmp.eq.s32.totalorder %s30, 0
    %p188 = por %p186, %p187
    %s190 = sadd.s32 %s189, 1
    %p193 = scmp.eq.s32.totalorder %s24, 1
    %p194 = scmp.ne.s32.totalorder %s189, %s191
    %p195 = scmp.eq.s32.totalorder %s24, 0
    %p196 = por %p194, %p195
    %p197 = scmp.ne.s32.totalorder %s189, %s191
    %p198 = scmp.eq.s32.totalorder %s29, 1
    %p199 = por %p197, %p198
    %p200 = scmp.ne.s32.totalorder %s191, %s192
    %p201 = scmp.eq.s32.totalorder %s29, 0
    %p202 = por %p200, %p201
    %p203 = scmp.ne.s32.totalorder %s191, %s192
    %p204 = scmp.eq.s32.totalorder %s30, 1
    %p205 = por %p203, %p204
    %p207 = scmp.ne.s32.totalorder %s192, %s206
    %p208 = scmp.eq.s32.totalorder %s30, 0
    %p209 = por %p207, %p208
    %s211 = sadd.s32 %s210, 1
    %p214 = scmp.eq.s32.totalorder %s24, 1
    %p215 = scmp.ne.s32.totalorder %s210, %s212
    %p216 = scmp.eq.s32.totalorder %s24, 0
    %p217 = por %p215, %p216
    %p218 = scmp.ne.s32.totalorder %s210, %s212
    %p219 = scmp.eq.s32.totalorder %s29, 1
    %p220 = por %p218, %p219
    %p221 = scmp.ne.s32.totalorder %s212, %s213
    %p222 = scmp.eq.s32.totalorder %s29, 0
    %p223 = por %p221, %p222
    %p224 = scmp.ne.s32.totalorder %s212, %s213
    %p225 = scmp.eq.s32.totalorder %s30, 1
    %p226 = por %p224, %p225
    %p228 = scmp.ne.s32.totalorder %s213, %s227
    %p229 = scmp.eq.s32.totalorder %s30, 0
    %p230 = por %p228, %p229
    %s232 = sadd.s32 %s231, 1
    %p235 = scmp.eq.s32.totalorder %s24, 1
    %p236 = scmp.ne.s32.totalorder %s231, %s233
    %p237 = scmp.eq.s32.totalorder %s24, 0
    %p238 = por %p236, %p237
    %p239 = scmp.ne.s32.totalorder %s231, %s233
    %p240 = scmp.eq.s32.totalorder %s29, 1
    %p241 = por %p239, %p240
    %p242 = scmp.ne.s32.totalorder %s233, %s234
    %p243 = scmp.eq.s32.totalorder %s29, 0
    %p244 = por %p242, %p243
    %p245 = scmp.ne.s32.totalorder %s233, %s234
    %p246 = scmp.eq.s32.totalorder %s30, 1
    %p247 = por %p245, %p246
    %p249 = scmp.ne.s32.totalorder %s234, %s248
    %p250 = scmp.eq.s32.totalorder %s30, 0
    %p251 = por %p249, %p250
    %s253 = sadd.s32 %s252, 1
    %p256 = scmp.eq.s32.totalorder %s24, 1
    %p257 = scmp.ne.s32.totalorder %s252, %s254
    %p258 = scmp.eq.s32.totalorder %s24, 0
    %p259 = por %p257, %p258
    %p260 = scmp.ne.s32.totalorder %s252, %s254
    %p261 = scmp.eq.s32.totalorder %s29, 1
    %p262 = por %p260, %p261
    %p263 = scmp.ne.s32.totalorder %s254, %s255
    %p264 = scmp.eq.s32.totalorder %s29, 0
    %p265 = por %p263, %p264
    %p266 = scmp.ne.s32.totalorder %s254, %s255
    %p267 = scmp.eq.s32.totalorder %s30, 1
    %p268 = por %p266, %p267
    %p270 = scmp.ne.s32.totalorder %s255, %s269
    %p271 = scmp.eq.s32.totalorder %s30, 0
    %p272 = por %p270, %p271
    %s274 = sadd.s32 %s273, 1
    %p277 = scmp.eq.s32.totalorder %s24, 1
    %p278 = scmp.ne.s32.totalorder %s273, %s275
    %p279 = scmp.eq.s32.totalorder %s24, 0
    %p280 = por %p278, %p279
    %p281 = scmp.ne.s32.totalorder %s273, %s275
    %p282 = scmp.eq.s32.totalorder %s29, 1
    %p283 = por %p281, %p282
    %p284 = scmp.ne.s32.totalorder %s275, %s276
    %p285 = scmp.eq.s32.totalorder %s29, 0
    %p286 = por %p284, %p285
    %p287 = scmp.ne.s32.totalorder %s275, %s276
    %p288 = scmp.eq.s32.totalorder %s30, 1
    %p289 = por %p287, %p288
    %p291 = scmp.ne.s32.totalorder %s276, %s290
    %p292 = scmp.eq.s32.totalorder %s30, 0
    %p293 = por %p291, %p292
    %s295 = sadd.s32 %s294, 1
    %p298 = scmp.eq.s32.totalorder %s24, 1
    %p299 = scmp.ne.s32.totalorder %s294, %s296
    %p300 = scmp.eq.s32.totalorder %s24, 0
    %p301 = por %p299, %p300
    %p302 = scmp.ne.s32.totalorder %s294, %s296
    %p303 = scmp.eq.s32.totalorder %s29, 1
    %p304 = por %p302, %p303
    %p305 = scmp.ne.s32.totalorder %s296, %s297
    %p306 = scmp.eq.s32.totalorder %s29, 0
    %p307 = por %p305, %p306
    %p308 = scmp.ne.s32.totalorder %s296, %s297
    %p309 = scmp.eq.s32.totalorder %s30, 1
    %p310 = por %p308, %p309
    %p312 = scmp.ne.s32.totalorder %s297, %s311
    %p313 = scmp.eq.s32.totalorder %s30, 0
    %p314 = por %p312, %p313
    %s316 = sadd.s32 %s315, 1
    %p319 = scmp.eq.s32.totalorder %s24, 1
    %p320 = scmp.ne.s32.totalorder %s315, %s317
    %p321 = scmp.eq.s32.totalorder %s24, 0
    %p322 = por %p320, %p321
    %p323 = scmp.ne.s32.totalorder %s315, %s317
    %p324 = scmp.eq.s32.totalorder %s29, 1
    %p325 = por %p323, %p324
    %p326 = scmp.ne.s32.totalorder %s317, %s318
    %p327 = scmp.eq.s32.totalorder %s29, 0
    %p328 = por %p326, %p327
    %p329 = scmp.ne.s32.totalorder %s317, %s318
    %p330 = scmp.eq.s32.totalorder %s30, 1
    %p331 = por %p329, %p330
    %p333 = scmp.ne.s32.totalorder %s318, %s332
    %p334 = scmp.eq.s32.totalorder %s30, 0
    %p335 = por %p333, %p334
    %s337 = sadd.s32 %s336, 1
    %p340 = scmp.eq.s32.totalorder %s24, 1
    %p341 = scmp.ne.s32.totalorder %s336, %s338
    %p342 = scmp.eq.s32.totalorder %s24, 0
    %p343 = por %p341, %p342
    %p344 = scmp.ne.s32.totalorder %s336, %s338
    %p345 = scmp.eq.s32.totalorder %s29, 1
    %p346 = por %p344, %p345
    %p347 = scmp.ne.s32.totalorder %s338, %s339
    %p348 = scmp.eq.s32.totalorder %s29, 0
    %p349 = por %p347, %p348
    %p350 = scmp.ne.s32.totalorder %s338, %s339
    %p351 = scmp.eq.s32.totalorder %s30, 1
    %p352 = por %p350, %p351
    %p354 = scmp.ne.s32.totalorder %s339, %s353
    %p355 = scmp.eq.s32.totalorder %s30, 0
    %p356 = por %p354, %p355
    %s358 = sadd.s32 %s357, 1
    %p361 = scmp.eq.s32.totalorder %s24, 1
    %p362 = scmp.ne.s32.totalorder %s357, %s359
    %p363 = scmp.eq.s32.totalorder %s24, 0
    %p364 = por %p362, %p363
    %p365 = scmp.ne.s32.totalorder %s357, %s359
    %p366 = scmp.eq.s32.totalorder %s29, 1
    %p367 = por %p365, %p366
    %p368 = scmp.ne.s32.totalorder %s359, %s360
    %p369 = scmp.eq.s32.totalorder %s29, 0
    %p370 = por %p368, %p369
    %p371 = scmp.ne.s32.totalorder %s359, %s360
    %p372 = scmp.eq.s32.totalorder %s30, 1
    %p373 = por %p371, %p372
    %p375 = scmp.ne.s32.totalorder %s360, %s374
    %p376 = scmp.eq.s32.totalorder %s30, 0
    %p377 = por %p375, %p376
    %s379 = sadd.s32 %s378, 1
    %p382 = scmp.eq.s32.totalorder %s24, 1
    %p383 = scmp.ne.s32.totalorder %s378, %s380
    %p384 = scmp.eq.s32.totalorder %s24, 0
    %p385 = por %p383, %p384
    %p386 = scmp.ne.s32.totalorder %s378, %s380
    %p387 = scmp.eq.s32.totalorder %s29, 1
    %p388 = por %p386, %p387
    %p389 = scmp.ne.s32.totalorder %s380, %s381
    %p390 = scmp.eq.s32.totalorder %s29, 0
    %p391 = por %p389, %p390
    %p392 = scmp.ne.s32.totalorder %s380, %s381
    %p393 = scmp.eq.s32.totalorder %s30, 1
    %p394 = por %p392, %p393
    %p396 = scmp.ne.s32.totalorder %s381, %s395
    %p397 = scmp.eq.s32.totalorder %s30, 0
    %p398 = por %p396, %p397
    %s400 = sadd.s32 %s399, 1
    %p403 = scmp.eq.s32.totalorder %s24, 1
    %p404 = scmp.ne.s32.totalorder %s399, %s401
    %p405 = scmp.eq.s32.totalorder %s24, 0
    %p406 = por %p404, %p405
    %p407 = scmp.ne.s32.totalorder %s399, %s401
    %p408 = scmp.eq.s32.totalorder %s29, 1
    %p409 = por %p407, %p408
    %p410 = scmp.ne.s32.totalorder %s401, %s402
    %p411 = scmp.eq.s32.totalorder %s29, 0
    %p412 = por %p410, %p411
    %p413 = scmp.ne.s32.totalorder %s401, %s402
    %p414 = scmp.eq.s32.totalorder %s30, 1
    %p415 = por %p413, %p414
    %p417 = scmp.ne.s32.totalorder %s402, %s416
    %p418 = scmp.eq.s32.totalorder %s30, 0
    %p419 = por %p417, %p418
    %s420 = ssub.s32 %s24, %s31
    %p421 = scmp.eq.s32.totalorder %s420, 0
    %s423 = sadd.s32 %s422, 1
    %s424 = scalar_select %p421, %s422, %s423
    %p427 = pneg %p421
    %p428 = scmp.eq.s32.totalorder %s24, 1
    %p429 = por %p427, %p428
    %p430 = scmp.ne.s32.totalorder %s422, %s425
    %p431 = scmp.eq.s32.totalorder %s24, 0
    %p432 = por %p430, %p431
    %p433 = scmp.ne.s32.totalorder %s422, %s425
    %p434 = scmp.eq.s32.totalorder %s29, 1
    %p435 = por %p433, %p434
    %p436 = scmp.ne.s32.totalorder %s425, %s426
    %p437 = scmp.eq.s32.totalorder %s29, 0
    %p438 = por %p436, %p437
    %p439 = scmp.ne.s32.totalorder %s425, %s426
    %p440 = scmp.eq.s32.totalorder %s30, 1
    %p441 = por %p439, %p440
    %p443 = scmp.ne.s32.totalorder %s426, %s442
    %p444 = scmp.eq.s32.totalorder %s30, 0
    %p445 = por %p443, %p444
    %p446 = scmp.le.s32.totalorder 1, %s24
    %p447 = scmp.lt.s32.totalorder %s24, 3
    %p448 = pnand %p446, %p447
    %p449 = pneg %p448
    // Predicated region
    $region9: #{resnet_block_3d.1} parent=5 // pred_check
      _
    $region10: #{resnet_block_3d.1} parent=5 // pred_check_branch
      %451 = sbr.rel (%p448) target = $region12
    $region11: #{resnet_block_3d.1} parent=5 // pred_region
      %s452 = ssub.s32 %s24, 1
      // Predicated region
      $region13: #{resnet_block_3d.1} parent=11 // pred_check
        %p453 = pneg %p97
      $region14: #{resnet_block_3d.1} parent=11 // pred_check_branch
        %455 = sbr.rel (%p453) target = $region16
      $region15: #{resnet_block_3d.1} parent=11 // pred_region
        _
      $region16: #{resnet_block_3d.1} parent=11 // pred_fallthru
        _
      // Predicated region
      $region17: #{resnet_block_3d.1} parent=11 // pred_check
        %p456 = pneg %p118
      $region18: #{resnet_block_3d.1} parent=11 // pred_check_branch
        %458 = sbr.rel (%p456) target = $region20
      $region19: #{resnet_block_3d.1} parent=11 // pred_region
        _
      $region20: #{resnet_block_3d.1} parent=11 // pred_fallthru
        _
      // Predicated region
      $region21: #{resnet_block_3d.1} parent=11 // pred_check
        %p459 = pneg %p139
      $region22: #{resnet_block_3d.1} parent=11 // pred_check_branch
        %461 = sbr.rel (%p459) target = $region24
      $region23: #{resnet_block_3d.1} parent=11 // pred_region
        _
      $region24: #{resnet_block_3d.1} parent=11 // pred_fallthru
        _
      // Predicated region
      $region25: #{resnet_block_3d.1} parent=11 // pred_check
        %p462 = pneg %p160
      $region26: #{resnet_block_3d.1} parent=11 // pred_check_branch
        %464 = sbr.rel (%p462) target = $region28
      $region27: #{resnet_block_3d.1} parent=11 // pred_region
        _
      $region28: #{resnet_block_3d.1} parent=11 // pred_fallthru
        _
      // Predicated region
      $region29: #{resnet_block_3d.1} parent=11 // pred_check
        %p465 = pneg %p181
      $region30: #{resnet_block_3d.1} parent=11 // pred_check_branch
        %467 = sbr.rel (%p465) target = $region32
      $region31: #{resnet_block_3d.1} parent=11 // pred_region
        _
      $region32: #{resnet_block_3d.1} parent=11 // pred_fallthru
        _
      // Predicated region
      $region33: #{resnet_block_3d.1} parent=11 // pred_check
        %p468 = pneg %p202
      $region34: #{resnet_block_3d.1} parent=11 // pred_check_branch
        %470 = sbr.rel (%p468) target = $region36
      $region35: #{resnet_block_3d.1} parent=11 // pred_region
        _
      $region36: #{resnet_block_3d.1} parent=11 // pred_fallthru
        _
      // Predicated region
      $region37: #{resnet_block_3d.1} parent=11 // pred_check
        %p471 = pneg %p223
      $region38: #{resnet_block_3d.1} parent=11 // pred_check_branch
        %473 = sbr.rel (%p471) target = $region40
      $region39: #{resnet_block_3d.1} parent=11 // pred_region
        _
      $region40: #{resnet_block_3d.1} parent=11 // pred_fallthru
        _
      // Predicated region
      $region41: #{resnet_block_3d.1} parent=11 // pred_check
        %p474 = pneg %p244
      $region42: #{resnet_block_3d.1} parent=11 // pred_check_branch
        %476 = sbr.rel (%p474) target = $region44
      $region43: #{resnet_block_3d.1} parent=11 // pred_region
        _
      $region44: #{resnet_block_3d.1} parent=11 // pred_fallthru
        _
      // Predicated region
      $region45: #{resnet_block_3d.1} parent=11 // pred_check
        %p477 = pneg %p265
      $region46: #{resnet_block_3d.1} parent=11 // pred_check_branch
        %479 = sbr.rel (%p477) target = $region48
      $region47: #{resnet_block_3d.1} parent=11 // pred_region
        _
      $region48: #{resnet_block_3d.1} parent=11 // pred_fallthru
        _
      // Predicated region
      $region49: #{resnet_block_3d.1} parent=11 // pred_check
        %p480 = pneg %p286
      $region50: #{resnet_block_3d.1} parent=11 // pred_check_branch
        %482 = sbr.rel (%p480) target = $region52
      $region51: #{resnet_block_3d.1} parent=11 // pred_region
        _
      $region52: #{resnet_block_3d.1} parent=11 // pred_fallthru
        _
      // Predicated region
      $region53: #{resnet_block_3d.1} parent=11 // pred_check
        %p483 = pneg %p307
      $region54: #{resnet_block_3d.1} parent=11 // pred_check_branch
        %485 = sbr.rel (%p483) target = $region56
      $region55: #{resnet_block_3d.1} parent=11 // pred_region
        _
      $region56: #{resnet_block_3d.1} parent=11 // pred_fallthru
        _
      // Predicated region
      $region57: #{resnet_block_3d.1} parent=11 // pred_check
        %p486 = pneg %p328
      $region58: #{resnet_block_3d.1} parent=11 // pred_check_branch
        %488 = sbr.rel (%p486) target = $region60
      $region59: #{resnet_block_3d.1} parent=11 // pred_region
        _
      $region60: #{resnet_block_3d.1} parent=11 // pred_fallthru
        _
      // Predicated region
      $region61: #{resnet_block_3d.1} parent=11 // pred_check
        %p489 = pneg %p349
      $region62: #{resnet_block_3d.1} parent=11 // pred_check_branch
        %491 = sbr.rel (%p489) target = $region64
      $region63: #{resnet_block_3d.1} parent=11 // pred_region
        _
      $region64: #{resnet_block_3d.1} parent=11 // pred_fallthru
        _
      // Predicated region
      $region65: #{resnet_block_3d.1} parent=11 // pred_check
        %p492 = pneg %p370
      $region66: #{resnet_block_3d.1} parent=11 // pred_check_branch
        %494 = sbr.rel (%p492) target = $region68
      $region67: #{resnet_block_3d.1} parent=11 // pred_region
        _
      $region68: #{resnet_block_3d.1} parent=11 // pred_fallthru
        _
      // Predicated region
      $region69: #{resnet_block_3d.1} parent=11 // pred_check
        %p495 = pneg %p391
      $region70: #{resnet_block_3d.1} parent=11 // pred_check_branch
        %497 = sbr.rel (%p495) target = $region72
      $region71: #{resnet_block_3d.1} parent=11 // pred_region
        _
      $region72: #{resnet_block_3d.1} parent=11 // pred_fallthru
        _
      // Predicated region
      $region73: #{resnet_block_3d.1} parent=11 // pred_check
        %p498 = pneg %p412
      $region74: #{resnet_block_3d.1} parent=11 // pred_check_branch
        %500 = sbr.rel (%p498) target = $region76
      $region75: #{resnet_block_3d.1} parent=11 // pred_region
        _
      $region76: #{resnet_block_3d.1} parent=11 // pred_fallthru
        _
    $region12: #{resnet_block_3d.1} parent=5 // pred_fallthru
      _
    %p501 = scmp.lt.s32.totalorder %s24, 2
    // Predicated region
    $region77: #{resnet_block_3d.1} parent=5 // pred_check
      %p502 = pneg %p501
    $region78: #{resnet_block_3d.1} parent=5 // pred_check_branch
      %504 = sbr.rel (%p502) target = $region80
    $region79: #{resnet_block_3d.1} parent=5 // pred_region
      // Predicated region
      $region81: #{resnet_block_3d.1} parent=79 // pred_check
        %p505 = pneg %p44
      $region82: #{resnet_block_3d.1} parent=79 // pred_check_branch
        %507 = sbr.rel (%p505) target = $region84
      $region83: #{resnet_block_3d.1} parent=79 // pred_region
        %p508 = scmp.lt.s32.totalorder %s24, 1
        %s509 = scalar_select %p508, %s24, 1
        %s510 = smul.addr %s509, 32
        %s511 = smul.addr %s510, 4
        %s512 = scalar_lea.vmem %s0, %s511
      $region84: #{resnet_block_3d.1} parent=79 // pred_fallthru
        _
      // Predicated region
      $region85: #{resnet_block_3d.1} parent=79 // pred_check
        %p513 = pneg %p70
      $region86: #{resnet_block_3d.1} parent=79 // pred_check_branch
        %515 = sbr.rel (%p513) target = $region88
      $region87: #{resnet_block_3d.1} parent=79 // pred_region
        %p516 = scmp.lt.s32.totalorder %s24, 1
        %s517 = scalar_select %p516, %s24, 1
        %s518 = scalar_lea.vmem %s1, %s517
      $region88: #{resnet_block_3d.1} parent=79 // pred_fallthru
        _
    $region80: #{resnet_block_3d.1} parent=5 // pred_fallthru
      _
    %p519 = scmp.le.s32.totalorder 1, %s24
    %p520 = scmp.lt.s32.totalorder %s24, 3
    %p521 = pnand %p519, %p520
    %p522 = pneg %p521
    // Predicated region
    $region89: #{resnet_block_3d.1} parent=5 // pred_check
      _
    $region90: #{resnet_block_3d.1} parent=5 // pred_check_branch
      %524 = sbr.rel (%p521) target = $region92
    $region91: #{resnet_block_3d.1} parent=5 // pred_region
      %s525 = ssub.s32 %s24, 1
      %p526 = scmp.lt.s32.totalorder %s29, 1
      %s527 = scalar_select %p526, %s29, 1
      %s528 = smul.addr %s527, 32
      %s529 = smul.addr %s528, 4
      %s530 = scalar_lea.vmem %s0, %s529
      %p531 = pneg %p50
      %p532 = pneg %p47
      %p533 = scmp.lt.s32.totalorder %s29, 1
      %s534 = scalar_select %p533, %s29, 1
      %s535 = scalar_lea.vmem %s1, %s534
      %p536 = pneg %p76
      %p537 = pneg %p73
      %p538 = pneg %p97
      %p539 = pneg %p94
      %p540 = pneg %p118
      %p541 = pneg %p115
      %p542 = pneg %p139
      %p543 = pneg %p136
      %p544 = pneg %p160
      %p545 = pneg %p157
      %p546 = pneg %p181
      %p547 = pneg %p178
      %p548 = pneg %p202
      %p549 = pneg %p199
      %p550 = pneg %p223
      %p551 = pneg %p220
      %p552 = pneg %p244
      %p553 = pneg %p241
      %p554 = pneg %p265
      %p555 = pneg %p262
      %p556 = pneg %p286
      %p557 = pneg %p283
      %p558 = pneg %p307
      %p559 = pneg %p304
      %p560 = pneg %p328
      %p561 = pneg %p325
      %p562 = pneg %p349
      %p563 = pneg %p346
      %p564 = pneg %p370
      %p565 = pneg %p367
      %p566 = pneg %p391
      %p567 = pneg %p388
      %p568 = pneg %p412
      %p569 = pneg %p409
      %p570 = pneg %p438
      %p571 = pneg %p435
      %p572 = scmp.lt.s32.totalorder %s29, 1
      %s573 = scalar_select %p572, %s29, 1
      %s574 = smul.addr %s573, 64
      %s575 = smul.addr %s574, 4
      %s576 = scalar_lea.vmem %s18, %s575
      %p577 = scmp.lt.s32.totalorder %s29, 1
      %s578 = scalar_select %p577, %s29, 1
      %s579 = smul.addr %s578, 32
      %s580 = smul.addr %s579, 4
      %s581 = scalar_lea.vmem %s0, %s580
      %p582 = scmp.lt.s32.totalorder %s29, 1
      %s583 = scalar_select %p582, %s29, 1
      %s584 = scalar_lea.vmem %s1, %s583
      %p585 = scmp.lt.s32.totalorder %s29, 1
      %s586 = scalar_select %p585, %s29, 1
      %s587 = smul.addr %s586, 64
      %s588 = smul.addr %s587, 4
      %s589 = scalar_lea.vmem %s18, %s588
      %v591 = vld [vmem:[%s581] sm:$0xff]
      %v592 = vld [vmem:[%s581 + $0x8] sm:$0xff]
      %v593 = vld [vmem:[%s581 + $0x10] sm:$0xff]
      %v594 = vld [vmem:[%s581 + $0x18] sm:$0xff]
      %v595 = vld [vmem:[%s581 + $0x20] sm:$0xff]
      %v596 = vld [vmem:[%s581 + $0x28] sm:$0xff]
      %v597 = vld [vmem:[%s581 + $0x30] sm:$0xff]
      %v598 = vld [vmem:[%s581 + $0x38] sm:$0xff]
      %v599 = vld [vmem:[%s581 + $0x40] sm:$0xff]
      %v600 = vld [vmem:[%s581 + $0x48] sm:$0xff]
      %v601 = vld [vmem:[%s581 + $0x50] sm:$0xff]
      %v602 = vld [vmem:[%s581 + $0x58] sm:$0xff]
      %v603 = vld [vmem:[%s581 + $0x60] sm:$0xff]
      %v604 = vld [vmem:[%s581 + $0x68] sm:$0xff]
      %v605 = vld [vmem:[%s581 + $0x70] sm:$0xff]
      %v606 = vld [vmem:[%s581 + $0x78] sm:$0xff]
      %v607 = vunpack.c.l.bf16 %v591
      %v608 = vunpack.c.h.bf16 %v591
      %v609 = vunpack.c.l.bf16 %v592
      %v610 = vunpack.c.h.bf16 %v592
      %v611 = vunpack.c.l.bf16 %v593
      %v612 = vunpack.c.h.bf16 %v593
      %v613 = vunpack.c.l.bf16 %v594
      %v614 = vunpack.c.h.bf16 %v594
      %v615 = vunpack.c.l.bf16 %v595
      %v616 = vunpack.c.h.bf16 %v595
      %v617 = vunpack.c.l.bf16 %v596
      %v618 = vunpack.c.h.bf16 %v596
      %v619 = vunpack.c.l.bf16 %v597
      %v620 = vunpack.c.h.bf16 %v597
      %v621 = vunpack.c.l.bf16 %v598
      %v622 = vunpack.c.h.bf16 %v598
      %v623 = vunpack.c.l.bf16 %v599
      %v624 = vunpack.c.h.bf16 %v599
      %v625 = vunpack.c.l.bf16 %v600
      %v626 = vunpack.c.h.bf16 %v600
      %v627 = vunpack.c.l.bf16 %v601
      %v628 = vunpack.c.h.bf16 %v601
      %v629 = vunpack.c.l.bf16 %v602
      %v630 = vunpack.c.h.bf16 %v602
      %v631 = vunpack.c.l.bf16 %v603
      %v632 = vunpack.c.h.bf16 %v603
      %v633 = vunpack.c.l.bf16 %v604
      %v634 = vunpack.c.h.bf16 %v604
      %v635 = vunpack.c.l.bf16 %v605
      %v636 = vunpack.c.h.bf16 %v605
      %v637 = vunpack.c.l.bf16 %v606
      %v638 = vunpack.c.h.bf16 %v606
      %v639 = vld [vmem:[%s4] sm:$0xff]
      %v640 = vld [vmem:[%s4 + $0x8] sm:$0xff]
      %v641 = vld [vmem:[%s4 + $0x10] sm:$0xff]
      %v642 = vld [vmem:[%s4 + $0x18] sm:$0xff]
      %v643 = vld [vmem:[%s5] sm:$0xff]
      %vm644 = vcmask 261120
      %v646 = vsel %vm644, %v643, 0
      %648 = vmatpush.msra.mxu0 0.0
      %649 = vmatpush.msra.mxu0 0.0
      %650 = vmatpush.msra.mxu0 0.0
      %651 = vmatpush.msra.mxu0 0.0
      %652 = vmatpush.msra.mxu0 0.0
      %653 = vmatpush.msra.mxu0 0.0
      %654 = vmatpush.msra.mxu0 0.0
      %655 = vmatpush.msra.mxu0 0.0
      %656 = vmatpush.msra.mxu0 0.0
      %657 = vmatpush.msra.mxu0 0.0
      %658 = vmatpush.msra.mxu0 0.0
      %659 = vmatpush.msra.mxu0 0.0
      %660 = vmatpush.msra.mxu0 %v631
      %661 = vmatpush.msra.mxu0 %v623
      %662 = vmatpush.msra.mxu0 %v615
      %663 = vmatpush.msra.mxu0 %v607
      %664 = vmatmul.f32.gmra.mxu0 %v646
      %v665 = vpop.f32.mrf.mxu0
      %v666 = vadd.f32 0.0, %v665
      %667 = vdwg.mxu0
      %668 = vmatpush.msra.mxu0 0.0
      %669 = vmatpush.msra.mxu0 0.0
      %670 = vmatpush.msra.mxu0 0.0
      %671 = vmatpush.msra.mxu0 0.0
      %672 = vmatpush.msra.mxu0 0.0
      %673 = vmatpush.msra.mxu0 0.0
      %674 = vmatpush.msra.mxu0 0.0
      %675 = vmatpush.msra.mxu0 0.0
      %676 = vmatpush.msra.mxu0 0.0
      %677 = vmatpush.msra.mxu0 0.0
      %678 = vmatpush.msra.mxu0 0.0
      %679 = vmatpush.msra.mxu0 0.0
      %680 = vmatpush.msra.mxu0 %v632
      %681 = vmatpush.msra.mxu0 %v624
      %682 = vmatpush.msra.mxu0 %v616
      %683 = vmatpush.msra.mxu0 %v608
      %684 = vmatmul.f32.gmra.mxu0 %v646
      %v685 = vpop.f32.mrf.mxu0
      %v686 = vadd.f32 0.0, %v685
      %687 = vdwg.mxu0
      %688 = vmatpush.msra.mxu0 0.0
      %689 = vmatpush.msra.mxu0 0.0
      %690 = vmatpush.msra.mxu0 0.0
      %691 = vmatpush.msra.mxu0 0.0
      %692 = vmatpush.msra.mxu0 0.0
      %693 = vmatpush.msra.mxu0 0.0
      %694 = vmatpush.msra.mxu0 0.0
      %695 = vmatpush.msra.mxu0 0.0
      %696 = vmatpush.msra.mxu0 0.0
      %697 = vmatpush.msra.mxu0 0.0
      %698 = vmatpush.msra.mxu0 0.0
      %699 = vmatpush.msra.mxu0 0.0
      %700 = vmatpush.msra.mxu0 %v633
      %701 = vmatpush.msra.mxu0 %v625
      %702 = vmatpush.msra.mxu0 %v617
      %703 = vmatpush.msra.mxu0 %v609
      %704 = vmatmul.f32.gmra.mxu0 %v646
      %v705 = vpop.f32.mrf.mxu0
      %v706 = vadd.f32 0.0, %v705
      %707 = vdwg.mxu0
      %708 = vmatpush.msra.mxu0 0.0
      %709 = vmatpush.msra.mxu0 0.0
      %710 = vmatpush.msra.mxu0 0.0
      %711 = vmatpush.msra.mxu0 0.0
      %712 = vmatpush.msra.mxu0 0.0
      %713 = vmatpush.msra.mxu0 0.0
      %714 = vmatpush.msra.mxu0 0.0
      %715 = vmatpush.msra.mxu0 0.0
      %716 = vmatpush.msra.mxu0 0.0
      %717 = vmatpush.msra.mxu0 0.0
      %718 = vmatpush.msra.mxu0 0.0
      %719 = vmatpush.msra.mxu0 0.0
      %720 = vmatpush.msra.mxu0 %v634
      %721 = vmatpush.msra.mxu0 %v626
      %722 = vmatpush.msra.mxu0 %v618
      %723 = vmatpush.msra.mxu0 %v610
      %724 = vmatmul.f32.gmra.mxu0 %v646
      %v725 = vpop.f32.mrf.mxu0
      %v726 = vadd.f32 0.0, %v725
      %727 = vdwg.mxu0
      %728 = vmatpush.msra.mxu0 0.0
      %729 = vmatpush.msra.mxu0 0.0
      %730 = vmatpush.msra.mxu0 0.0
      %731 = vmatpush.msra.mxu0 0.0
      %732 = vmatpush.msra.mxu0 0.0
      %733 = vmatpush.msra.mxu0 0.0
      %734 = vmatpush.msra.mxu0 0.0
      %735 = vmatpush.msra.mxu0 0.0
      %736 = vmatpush.msra.mxu0 0.0
      %737 = vmatpush.msra.mxu0 0.0
      %738 = vmatpush.msra.mxu0 0.0
      %739 = vmatpush.msra.mxu0 0.0
      %740 = vmatpush.msra.mxu0 %v635
      %741 = vmatpush.msra.mxu0 %v627
      %742 = vmatpush.msra.mxu0 %v619
      %743 = vmatpush.msra.mxu0 %v611
      %744 = vmatmul.f32.gmra.mxu0 %v646
      %v745 = vpop.f32.mrf.mxu0
      %v746 = vadd.f32 0.0, %v745
      %747 = vdwg.mxu0
      %748 = vmatpush.msra.mxu0 0.0
      %749 = vmatpush.msra.mxu0 0.0
      %750 = vmatpush.msra.mxu0 0.0
      %751 = vmatpush.msra.mxu0 0.0
      %752 = vmatpush.msra.mxu0 0.0
      %753 = vmatpush.msra.mxu0 0.0
      %754 = vmatpush.msra.mxu0 0.0
      %755 = vmatpush.msra.mxu0 0.0
      %756 = vmatpush.msra.mxu0 0.0
      %757 = vmatpush.msra.mxu0 0.0
      %758 = vmatpush.msra.mxu0 0.0
      %759 = vmatpush.msra.mxu0 0.0
      %760 = vmatpush.msra.mxu0 %v636
      %761 = vmatpush.msra.mxu0 %v628
      %762 = vmatpush.msra.mxu0 %v620
      %763 = vmatpush.msra.mxu0 %v612
      %764 = vmatmul.f32.gmra.mxu0 %v646
      %v765 = vpop.f32.mrf.mxu0
      %v766 = vadd.f32 0.0, %v765
      %767 = vdwg.mxu0
      %768 = vmatpush.msra.mxu0 0.0
      %769 = vmatpush.msra.mxu0 0.0
      %770 = vmatpush.msra.mxu0 0.0
      %771 = vmatpush.msra.mxu0 0.0
      %772 = vmatpush.msra.mxu0 0.0
      %773 = vmatpush.msra.mxu0 0.0
      %774 = vmatpush.msra.mxu0 0.0
      %775 = vmatpush.msra.mxu0 0.0
      %776 = vmatpush.msra.mxu0 0.0
      %777 = vmatpush.msra.mxu0 0.0
      %778 = vmatpush.msra.mxu0 0.0
      %779 = vmatpush.msra.mxu0 0.0
      %780 = vmatpush.msra.mxu0 %v637
      %781 = vmatpush.msra.mxu0 %v629
      %782 = vmatpush.msra.mxu0 %v621
      %783 = vmatpush.msra.mxu0 %v613
      %784 = vmatmul.f32.gmra.mxu0 %v646
      %v785 = vpop.f32.mrf.mxu0
      %v786 = vadd.f32 0.0, %v785
      %787 = vdwg.mxu0
      %788 = vmatpush.msra.mxu0 0.0
      %789 = vmatpush.msra.mxu0 0.0
      %790 = vmatpush.msra.mxu0 0.0
      %791 = vmatpush.msra.mxu0 0.0
      %792 = vmatpush.msra.mxu0 0.0
      %793 = vmatpush.msra.mxu0 0.0
      %794 = vmatpush.msra.mxu0 0.0
      %795 = vmatpush.msra.mxu0 0.0
      %796 = vmatpush.msra.mxu0 0.0
      %797 = vmatpush.msra.mxu0 0.0
      %798 = vmatpush.msra.mxu0 0.0
      %799 = vmatpush.msra.mxu0 0.0
      %800 = vmatpush.msra.mxu0 %v638
      %801 = vmatpush.msra.mxu0 %v630
      %802 = vmatpush.msra.mxu0 %v622
      %803 = vmatpush.msra.mxu0 %v614
      %804 = vmatmul.f32.gmra.mxu0 %v646
      %v805 = vpop.f32.mrf.mxu0
      %v806 = vadd.f32 0.0, %v805
      %807 = vdwg.mxu0
      %v808 = vadd.f32 %v666, %v686
      %v809 = vadd.f32 %v808, %v706
      %v810 = vadd.f32 %v809, %v726
      %v811 = vadd.f32 %v810, %v746
      %v812 = vadd.f32 %v811, %v766
      %v813 = vadd.f32 %v812, %v786
      %v814 = vadd.f32 %v813, %v806
      %815 = vadd.xlane.f32.xlu0 %v814
      %v816 = vpop.xlane.xlu0 %815
      %v817 = vmul.f32 %v816, 0.00024414063
      %vm818 = vcmask 64512
      %v820 = vsel %vm818, %v639, 0
      %v823 = vsel %vm818, %v640, 0
      %v826 = vsel %vm818, %v641, 0
      %v829 = vsel %vm818, %v642, 0
      %831 = vmatpush.msra.mxu0 0.0
      %832 = vmatpush.msra.mxu0 0.0
      %833 = vmatpush.msra.mxu0 0.0
      %834 = vmatpush.msra.mxu0 0.0
      %835 = vmatpush.msra.mxu0 0.0
      %836 = vmatpush.msra.mxu0 0.0
      %837 = vmatpush.msra.mxu0 0.0
      %838 = vmatpush.msra.mxu0 0.0
      %839 = vmatpush.msra.mxu0 0.0
      %840 = vmatpush.msra.mxu0 0.0
      %841 = vmatpush.msra.mxu0 0.0
      %842 = vmatpush.msra.mxu0 0.0
      %843 = vmatpush.msra.mxu0 0.0
      %844 = vmatpush.msra.mxu0 0.0
      %845 = vmatpush.msra.mxu0 0.0
      %846 = vmatpush.msra.mxu0 %v817
      %847 = vmatmul.f32.gmra.mxu0 %v820
      %v848 = vpop.f32.mrf.mxu0
      %v849 = vadd.f32 0.0, %v848
      %850 = vmatmul.f32.gmra.mxu0 %v823
      %v851 = vpop.f32.mrf.mxu0
      %v852 = vadd.f32 0.0, %v851
      %853 = vmatmul.f32.gmra.mxu0 %v826
      %v854 = vpop.f32.mrf.mxu0
      %v855 = vadd.f32 0.0, %v854
      %856 = vmatmul.f32.gmra.mxu0 %v829
      %v857 = vpop.f32.mrf.mxu0
      %v858 = vadd.f32 0.0, %v857
      %859 = vdwg.mxu0
      %861 = vset.pattern.permute.xlu0 0
      %862 = vperm.xlu0 %861, %v849
      %v863 = vpop.permute.xlu0 %862
      %866 = vset.pattern.permute.xlu0 0
      %867 = vperm.xlu0 %866, %v852
      %v868 = vpop.permute.xlu0 %867
      %871 = vset.pattern.permute.xlu0 0
      %872 = vperm.xlu0 %871, %v855
      %v873 = vpop.permute.xlu0 %872
      %876 = vset.pattern.permute.xlu0 0
      %877 = vperm.xlu0 %876, %v858
      %v878 = vpop.permute.xlu0 %877
      %v880 = vsub.f32 %v607, %v863
      %v881 = vsub.f32 %v608, %v863
      %v882 = vsub.f32 %v609, %v863
      %v883 = vsub.f32 %v610, %v863
      %v884 = vsub.f32 %v611, %v863
      %v885 = vsub.f32 %v612, %v863
      %v886 = vsub.f32 %v613, %v863
      %v887 = vsub.f32 %v614, %v863
      %v888 = vsub.f32 %v615, %v868
      %v889 = vsub.f32 %v616, %v868
      %v890 = vsub.f32 %v617, %v868
      %v891 = vsub.f32 %v618, %v868
      %v892 = vsub.f32 %v619, %v868
      %v893 = vsub.f32 %v620, %v868
      %v894 = vsub.f32 %v621, %v868
      %v895 = vsub.f32 %v622, %v868
      %v896 = vsub.f32 %v623, %v873
      %v897 = vsub.f32 %v624, %v873
      %v898 = vsub.f32 %v625, %v873
      %v899 = vsub.f32 %v626, %v873
      %v900 = vsub.f32 %v627, %v873
      %v901 = vsub.f32 %v628, %v873
      %v902 = vsub.f32 %v629, %v873
      %v903 = vsub.f32 %v630, %v873
      %v904 = vsub.f32 %v631, %v878
      %v905 = vsub.f32 %v632, %v878
      %v906 = vsub.f32 %v633, %v878
      %v907 = vsub.f32 %v634, %v878
      %v908 = vsub.f32 %v635, %v878
      %v909 = vsub.f32 %v636, %v878
      %v910 = vsub.f32 %v637, %v878
      %v911 = vsub.f32 %v638, %v878
      %v912 = vmul.f32 %v880, %v880
      %v913 = vmul.f32 %v881, %v881
      %v914 = vmul.f32 %v882, %v882
      %v915 = vmul.f32 %v883, %v883
      %v916 = vmul.f32 %v884, %v884
      %v917 = vmul.f32 %v885, %v885
      %v918 = vmul.f32 %v886, %v886
      %v919 = vmul.f32 %v887, %v887
      %v920 = vmul.f32 %v888, %v888
      %v921 = vmul.f32 %v889, %v889
      %v922 = vmul.f32 %v890, %v890
      %v923 = vmul.f32 %v891, %v891
      %v924 = vmul.f32 %v892, %v892
      %v925 = vmul.f32 %v893, %v893
      %v926 = vmul.f32 %v894, %v894
      %v927 = vmul.f32 %v895, %v895
      %v928 = vmul.f32 %v896, %v896
      %v929 = vmul.f32 %v897, %v897
      %v930 = vmul.f32 %v898, %v898
      %v931 = vmul.f32 %v899, %v899
      %v932 = vmul.f32 %v900, %v900
      %v933 = vmul.f32 %v901, %v901
      %v934 = vmul.f32 %v902, %v902
      %v935 = vmul.f32 %v903, %v903
      %v936 = vmul.f32 %v904, %v904
      %v937 = vmul.f32 %v905, %v905
      %v938 = vmul.f32 %v906, %v906
      %v939 = vmul.f32 %v907, %v907
      %v940 = vmul.f32 %v908, %v908
      %v941 = vmul.f32 %v909, %v909
      %v942 = vmul.f32 %v910, %v910
      %v943 = vmul.f32 %v911, %v911
      %944 = vmatpush.msra.mxu0 0.0
      %945 = vmatpush.msra.mxu0 0.0
      %946 = vmatpush.msra.mxu0 0.0
      %947 = vmatpush.msra.mxu0 0.0
      %948 = vmatpush.msra.mxu0 0.0
      %949 = vmatpush.msra.mxu0 0.0
      %950 = vmatpush.msra.mxu0 0.0
      %951 = vmatpush.msra.mxu0 0.0
      %952 = vmatpush.msra.mxu0 0.0
      %953 = vmatpush.msra.mxu0 0.0
      %954 = vmatpush.msra.mxu0 0.0
      %955 = vmatpush.msra.mxu0 0.0
      %956 = vmatpush.msra.mxu0 %v936
      %957 = vmatpush.msra.mxu0 %v928
      %958 = vmatpush.msra.mxu0 %v920
      %959 = vmatpush.msra.mxu0 %v912
      %960 = vmatmul.f32.gmra.mxu0 %v646
      %v961 = vpop.f32.mrf.mxu0
      %v962 = vadd.f32 0.0, %v961
      %963 = vdwg.mxu0
      %964 = vmatpush.msra.mxu0 0.0
      %965 = vmatpush.msra.mxu0 0.0
      %966 = vmatpush.msra.mxu0 0.0
      %967 = vmatpush.msra.mxu0 0.0
      %968 = vmatpush.msra.mxu0 0.0
      %969 = vmatpush.msra.mxu0 0.0
      %970 = vmatpush.msra.mxu0 0.0
      %971 = vmatpush.msra.mxu0 0.0
      %972 = vmatpush.msra.mxu0 0.0
      %973 = vmatpush.msra.mxu0 0.0
      %974 = vmatpush.msra.mxu0 0.0
      %975 = vmatpush.msra.mxu0 0.0
      %976 = vmatpush.msra.mxu0 %v937
      %977 = vmatpush.msra.mxu0 %v929
      %978 = vmatpush.msra.mxu0 %v921
      %979 = vmatpush.msra.mxu0 %v913
      %980 = vmatmul.f32.gmra.mxu0 %v646
      %v981 = vpop.f32.mrf.mxu0
      %v982 = vadd.f32 0.0, %v981
      %983 = vdwg.mxu0
      %984 = vmatpush.msra.mxu0 0.0
      %985 = vmatpush.msra.mxu0 0.0
      %986 = vmatpush.msra.mxu0 0.0
      %987 = vmatpush.msra.mxu0 0.0
      %988 = vmatpush.msra.mxu0 0.0
      %989 = vmatpush.msra.mxu0 0.0
      %990 = vmatpush.msra.mxu0 0.0
      %991 = vmatpush.msra.mxu0 0.0
      %992 = vmatpush.msra.mxu0 0.0
      %993 = vmatpush.msra.mxu0 0.0
      %994 = vmatpush.msra.mxu0 0.0
      %995 = vmatpush.msra.mxu0 0.0
      %996 = vmatpush.msra.mxu0 %v938
      %997 = vmatpush.msra.mxu0 %v930
      %998 = vmatpush.msra.mxu0 %v922
      %999 = vmatpush.msra.mxu0 %v914
      %1000 = vmatmul.f32.gmra.mxu0 %v646
      %v1001 = vpop.f32.mrf.mxu0
      %v1002 = vadd.f32 0.0, %v1001
      %1003 = vdwg.mxu0
      %1004 = vmatpush.msra.mxu0 0.0
      %1005 = vmatpush.msra.mxu0 0.0
      %1006 = vmatpush.msra.mxu0 0.0
      %1007 = vmatpush.msra.mxu0 0.0
      %1008 = vmatpush.msra.mxu0 0.0
      %1009 = vmatpush.msra.mxu0 0.0
      %1010 = vmatpush.msra.mxu0 0.0
      %1011 = vmatpush.msra.mxu0 0.0
      %1012 = vmatpush.msra.mxu0 0.0
      %1013 = vmatpush.msra.mxu0 0.0
      %1014 = vmatpush.msra.mxu0 0.0
      %1015 = vmatpush.msra.mxu0 0.0
      %1016 = vmatpush.msra.mxu0 %v939
      %1017 = vmatpush.msra.mxu0 %v931
      %1018 = vmatpush.msra.mxu0 %v923
      %1019 = vmatpush.msra.mxu0 %v915
      %1020 = vmatmul.f32.gmra.mxu0 %v646
      %v1021 = vpop.f32.mrf.mxu0
      %v1022 = vadd.f32 0.0, %v1021
      %1023 = vdwg.mxu0
      %1024 = vmatpush.msra.mxu0 0.0
      %1025 = vmatpush.msra.mxu0 0.0
      %1026 = vmatpush.msra.mxu0 0.0
      %1027 = vmatpush.msra.mxu0 0.0
      %1028 = vmatpush.msra.mxu0 0.0
      %1029 = vmatpush.msra.mxu0 0.0
      %1030 = vmatpush.msra.mxu0 0.0
      %1031 = vmatpush.msra.mxu0 0.0
      %1032 = vmatpush.msra.mxu0 0.0
      %1033 = vmatpush.msra.mxu0 0.0
      %1034 = vmatpush.msra.mxu0 0.0
      %1035 = vmatpush.msra.mxu0 0.0
      %1036 = vmatpush.msra.mxu0 %v940
      %1037 = vmatpush.msra.mxu0 %v932
      %1038 = vmatpush.msra.mxu0 %v924
      %1039 = vmatpush.msra.mxu0 %v916
      %1040 = vmatmul.f32.gmra.mxu0 %v646
      %v1041 = vpop.f32.mrf.mxu0
      %v1042 = vadd.f32 0.0, %v1041
      %1043 = vdwg.mxu0
      %1044 = vmatpush.msra.mxu0 0.0
      %1045 = vmatpush.msra.mxu0 0.0
      %1046 = vmatpush.msra.mxu0 0.0
      %1047 = vmatpush.msra.mxu0 0.0
      %1048 = vmatpush.msra.mxu0 0.0
      %1049 = vmatpush.msra.mxu0 0.0
      %1050 = vmatpush.msra.mxu0 0.0
      %1051 = vmatpush.msra.mxu0 0.0
      %1052 = vmatpush.msra.mxu0 0.0
      %1053 = vmatpush.msra.mxu0 0.0
      %1054 = vmatpush.msra.mxu0 0.0
      %1055 = vmatpush.msra.mxu0 0.0
      %1056 = vmatpush.msra.mxu0 %v941
      %1057 = vmatpush.msra.mxu0 %v933
      %1058 = vmatpush.msra.mxu0 %v925
      %1059 = vmatpush.msra.mxu0 %v917
      %1060 = vmatmul.f32.gmra.mxu0 %v646
      %v1061 = vpop.f32.mrf.mxu0
      %v1062 = vadd.f32 0.0, %v1061
      %1063 = vdwg.mxu0
      %1064 = vmatpush.msra.mxu0 0.0
      %1065 = vmatpush.msra.mxu0 0.0
      %1066 = vmatpush.msra.mxu0 0.0
      %1067 = vmatpush.msra.mxu0 0.0
      %1068 = vmatpush.msra.mxu0 0.0
      %1069 = vmatpush.msra.mxu0 0.0
      %1070 = vmatpush.msra.mxu0 0.0
      %1071 = vmatpush.msra.mxu0 0.0
      %1072 = vmatpush.msra.mxu0 0.0
      %1073 = vmatpush.msra.mxu0 0.0
      %1074 = vmatpush.msra.mxu0 0.0
      %1075 = vmatpush.msra.mxu0 0.0
      %1076 = vmatpush.msra.mxu0 %v942
      %1077 = vmatpush.msra.mxu0 %v934
      %1078 = vmatpush.msra.mxu0 %v926
      %1079 = vmatpush.msra.mxu0 %v918
      %1080 = vmatmul.f32.gmra.mxu0 %v646
      %v1081 = vpop.f32.mrf.mxu0
      %v1082 = vadd.f32 0.0, %v1081
      %1083 = vdwg.mxu0
      %1084 = vmatpush.msra.mxu0 0.0
      %1085 = vmatpush.msra.mxu0 0.0
      %1086 = vmatpush.msra.mxu0 0.0
      %1087 = vmatpush.msra.mxu0 0.0
      %1088 = vmatpush.msra.mxu0 0.0
      %1089 = vmatpush.msra.mxu0 0.0
      %1090 = vmatpush.msra.mxu0 0.0
      %1091 = vmatpush.msra.mxu0 0.0
      %1092 = vmatpush.msra.mxu0 0.0
      %1093 = vmatpush.msra.mxu0 0.0
      %1094 = vmatpush.msra.mxu0 0.0
      %1095 = vmatpush.msra.mxu0 0.0
      %1096 = vmatpush.msra.mxu0 %v943
      %1097 = vmatpush.msra.mxu0 %v935
      %1098 = vmatpush.msra.mxu0 %v927
      %1099 = vmatpush.msra.mxu0 %v919
      %1100 = vmatmul.f32.gmra.mxu0 %v646
      %v1101 = vpop.f32.mrf.mxu0
      %v1102 = vadd.f32 0.0, %v1101
      %1103 = vdwg.mxu0
      %v1104 = vadd.f32 %v962, %v982
      %v1105 = vadd.f32 %v1104, %v1002
      %v1106 = vadd.f32 %v1105, %v1022
      %v1107 = vadd.f32 %v1106, %v1042
      %v1108 = vadd.f32 %v1107, %v1062
      %v1109 = vadd.f32 %v1108, %v1082
      %v1110 = vadd.f32 %v1109, %v1102
      %1111 = vadd.xlane.f32.xlu0 %v1110
      %v1112 = vpop.xlane.xlu0 %1111
      %v1113 = vmul.f32 %v1112, 0.00024414063
      %v1114 = vadd.f32 %v1113, 1e-05
      %v1115 = vrsqrt.pop %v1114
      %v1116 = vmul.f32 %v1115, %v1114
      %v1117 = vmul.f32 %v1116, %v1115
      %v1118 = vmul.f32 0.5, %v1117
      %v1119 = vsub.f32 1.5, %v1118
      %v1120 = vmul.f32 %v1115, %v1119
      %vm1121 = vweird.f32 %v1114
      %vm1122 = vweird.f32 %v1115
      %vm1123 = vmor %vm1121, %vm1122
      %v1124 = vsel %vm1123, %v1115, %v1120
      %1125 = vmatpush.msra.mxu0 0.0
      %1126 = vmatpush.msra.mxu0 0.0
      %1127 = vmatpush.msra.mxu0 0.0
      %1128 = vmatpush.msra.mxu0 0.0
      %1129 = vmatpush.msra.mxu0 0.0
      %1130 = vmatpush.msra.mxu0 0.0
      %1131 = vmatpush.msra.mxu0 0.0
      %1132 = vmatpush.msra.mxu0 0.0
      %1133 = vmatpush.msra.mxu0 0.0
      %1134 = vmatpush.msra.mxu0 0.0
      %1135 = vmatpush.msra.mxu0 0.0
      %1136 = vmatpush.msra.mxu0 0.0
      %1137 = vmatpush.msra.mxu0 0.0
      %1138 = vmatpush.msra.mxu0 0.0
      %1139 = vmatpush.msra.mxu0 0.0
      %1140 = vmatpush.msra.mxu0 %v1124
      %1141 = vmatmul.f32.gmra.mxu0 %v820
      %v1142 = vpop.f32.mrf.mxu0
      %v1143 = vadd.f32 0.0, %v1142
      %1144 = vmatmul.f32.gmra.mxu0 %v823
      %v1145 = vpop.f32.mrf.mxu0
      %v1146 = vadd.f32 0.0, %v1145
      %1147 = vmatmul.f32.gmra.mxu0 %v826
      %v1148 = vpop.f32.mrf.mxu0
      %v1149 = vadd.f32 0.0, %v1148
      %1150 = vmatmul.f32.gmra.mxu0 %v829
      %v1151 = vpop.f32.mrf.mxu0
      %v1152 = vadd.f32 0.0, %v1151
      %1153 = vdwg.mxu0
      %v1154 = vld [vmem:[%s2] sm:$0xff]
      %v1155 = vld [vmem:[%s2 + $0x8] sm:$0xff]
      %v1156 = vld [vmem:[%s2 + $0x10] sm:$0xff]
      %v1157 = vld [vmem:[%s2 + $0x18] sm:$0xff]
      %v1158 = vmul.f32 %v1143, %v1154
      %v1159 = vmul.f32 %v1146, %v1155
      %v1160 = vmul.f32 %v1149, %v1156
      %v1161 = vmul.f32 %v1152, %v1157
      %1163 = vset.pattern.permute.xlu0 0
      %1164 = vperm.xlu0 %1163, %v1158
      %v1165 = vpop.permute.xlu0 %1164
      %1168 = vset.pattern.permute.xlu0 0
      %1169 = vperm.xlu0 %1168, %v1159
      %v1170 = vpop.permute.xlu0 %1169
      %1173 = vset.pattern.permute.xlu0 0
      %1174 = vperm.xlu0 %1173, %v1160
      %v1175 = vpop.permute.xlu0 %1174
      %1178 = vset.pattern.permute.xlu0 0
      %1179 = vperm.xlu0 %1178, %v1161
      %v1180 = vpop.permute.xlu0 %1179
      %v1182 = vmul.f32 %v880, %v1165
      %v1183 = vmul.f32 %v881, %v1165
      %v1184 = vmul.f32 %v882, %v1165
      %v1185 = vmul.f32 %v883, %v1165
      %v1186 = vmul.f32 %v884, %v1165
      %v1187 = vmul.f32 %v885, %v1165
      %v1188 = vmul.f32 %v886, %v1165
      %v1189 = vmul.f32 %v887, %v1165
      %v1190 = vmul.f32 %v888, %v1170
      %v1191 = vmul.f32 %v889, %v1170
      %v1192 = vmul.f32 %v890, %v1170
      %v1193 = vmul.f32 %v891, %v1170
      %v1194 = vmul.f32 %v892, %v1170
      %v1195 = vmul.f32 %v893, %v1170
      %v1196 = vmul.f32 %v894, %v1170
      %v1197 = vmul.f32 %v895, %v1170
      %v1198 = vmul.f32 %v896, %v1175
      %v1199 = vmul.f32 %v897, %v1175
      %v1200 = vmul.f32 %v898, %v1175
      %v1201 = vmul.f32 %v899, %v1175
      %v1202 = vmul.f32 %v900, %v1175
      %v1203 = vmul.f32 %v901, %v1175
      %v1204 = vmul.f32 %v902, %v1175
      %v1205 = vmul.f32 %v903, %v1175
      %v1206 = vmul.f32 %v904, %v1180
      %v1207 = vmul.f32 %v905, %v1180
      %v1208 = vmul.f32 %v906, %v1180
      %v1209 = vmul.f32 %v907, %v1180
      %v1210 = vmul.f32 %v908, %v1180
      %v1211 = vmul.f32 %v909, %v1180
      %v1212 = vmul.f32 %v910, %v1180
      %v1213 = vmul.f32 %v911, %v1180
      %v1214 = vld [vmem:[%s3] sm:$0xff]
      %v1215 = vld [vmem:[%s3 + $0x8] sm:$0xff]
      %v1216 = vld [vmem:[%s3 + $0x10] sm:$0xff]
      %v1217 = vld [vmem:[%s3 + $0x18] sm:$0xff]
      %1219 = vset.pattern.permute.xlu0 0
      %1220 = vperm.xlu0 %1219, %v1214
      %v1221 = vpop.permute.xlu0 %1220
      %1224 = vset.pattern.permute.xlu0 0
      %1225 = vperm.xlu0 %1224, %v1215
      %v1226 = vpop.permute.xlu0 %1225
      %1229 = vset.pattern.permute.xlu0 0
      %1230 = vperm.xlu0 %1229, %v1216
      %v1231 = vpop.permute.xlu0 %1230
      %1234 = vset.pattern.permute.xlu0 0
      %1235 = vperm.xlu0 %1234, %v1217
      %v1236 = vpop.permute.xlu0 %1235
      %v1238 = vadd.f32 %v1182, %v1221
      %v1239 = vadd.f32 %v1183, %v1221
      %v1240 = vadd.f32 %v1184, %v1221
      %v1241 = vadd.f32 %v1185, %v1221
      %v1242 = vadd.f32 %v1186, %v1221
      %v1243 = vadd.f32 %v1187, %v1221
      %v1244 = vadd.f32 %v1188, %v1221
      %v1245 = vadd.f32 %v1189, %v1221
      %v1246 = vadd.f32 %v1190, %v1226
      %v1247 = vadd.f32 %v1191, %v1226
      %v1248 = vadd.f32 %v1192, %v1226
      %v1249 = vadd.f32 %v1193, %v1226
      %v1250 = vadd.f32 %v1194, %v1226
      %v1251 = vadd.f32 %v1195, %v1226
      %v1252 = vadd.f32 %v1196, %v1226
      %v1253 = vadd.f32 %v1197, %v1226
      %v1254 = vadd.f32 %v1198, %v1231
      %v1255 = vadd.f32 %v1199, %v1231
      %v1256 = vadd.f32 %v1200, %v1231
      %v1257 = vadd.f32 %v1201, %v1231
      %v1258 = vadd.f32 %v1202, %v1231
      %v1259 = vadd.f32 %v1203, %v1231
      %v1260 = vadd.f32 %v1204, %v1231
      %v1261 = vadd.f32 %v1205, %v1231
      %v1262 = vadd.f32 %v1206, %v1236
      %v1263 = vadd.f32 %v1207, %v1236
      %v1264 = vadd.f32 %v1208, %v1236
      %v1265 = vadd.f32 %v1209, %v1236
      %v1266 = vadd.f32 %v1210, %v1236
      %v1267 = vadd.f32 %v1211, %v1236
      %v1268 = vadd.f32 %v1212, %v1236
      %v1269 = vadd.f32 %v1213, %v1236
      %v1270 = vsub.f32 0.0, %v1238
      %v1271 = vsub.f32 0.0, %v1239
      %v1272 = vsub.f32 0.0, %v1240
      %v1273 = vsub.f32 0.0, %v1241
      %v1274 = vsub.f32 0.0, %v1242
      %v1275 = vsub.f32 0.0, %v1243
      %v1276 = vsub.f32 0.0, %v1244
      %v1277 = vsub.f32 0.0, %v1245
      %v1278 = vsub.f32 0.0, %v1246
      %v1279 = vsub.f32 0.0, %v1247
      %v1280 = vsub.f32 0.0, %v1248
      %v1281 = vsub.f32 0.0, %v1249
      %v1282 = vsub.f32 0.0, %v1250
      %v1283 = vsub.f32 0.0, %v1251
      %v1284 = vsub.f32 0.0, %v1252
      %v1285 = vsub.f32 0.0, %v1253
      %v1286 = vsub.f32 0.0, %v1254
      %v1287 = vsub.f32 0.0, %v1255
      %v1288 = vsub.f32 0.0, %v1256
      %v1289 = vsub.f32 0.0, %v1257
      %v1290 = vsub.f32 0.0, %v1258
      %v1291 = vsub.f32 0.0, %v1259
      %v1292 = vsub.f32 0.0, %v1260
      %v1293 = vsub.f32 0.0, %v1261
      %v1294 = vsub.f32 0.0, %v1262
      %v1295 = vsub.f32 0.0, %v1263
      %v1296 = vsub.f32 0.0, %v1264
      %v1297 = vsub.f32 0.0, %v1265
      %v1298 = vsub.f32 0.0, %v1266
      %v1299 = vsub.f32 0.0, %v1267
      %v1300 = vsub.f32 0.0, %v1268
      %v1301 = vsub.f32 0.0, %v1269
      %v1302 = vmul.f32 %v1270, 1.442695
      %v1303 = vpow.pop %v1302
      %v1304 = vmul.f32 %v1271, 1.442695
      %v1305 = vpow.pop %v1304
      %v1306 = vmul.f32 %v1272, 1.442695
      %v1307 = vpow.pop %v1306
      %v1308 = vmul.f32 %v1273, 1.442695
      %v1309 = vpow.pop %v1308
      %v1310 = vmul.f32 %v1274, 1.442695
      %v1311 = vpow.pop %v1310
      %v1312 = vmul.f32 %v1275, 1.442695
      %v1313 = vpow.pop %v1312
      %v1314 = vmul.f32 %v1276, 1.442695
      %v1315 = vpow.pop %v1314
      %v1316 = vmul.f32 %v1277, 1.442695
      %v1317 = vpow.pop %v1316
      %v1318 = vmul.f32 %v1278, 1.442695
      %v1319 = vpow.pop %v1318
      %v1320 = vmul.f32 %v1279, 1.442695
      %v1321 = vpow.pop %v1320
      %v1322 = vmul.f32 %v1280, 1.442695
      %v1323 = vpow.pop %v1322
      %v1324 = vmul.f32 %v1281, 1.442695
      %v1325 = vpow.pop %v1324
      %v1326 = vmul.f32 %v1282, 1.442695
      %v1327 = vpow.pop %v1326
      %v1328 = vmul.f32 %v1283, 1.442695
      %v1329 = vpow.pop %v1328
      %v1330 = vmul.f32 %v1284, 1.442695
      %v1331 = vpow.pop %v1330
      %v1332 = vmul.f32 %v1285, 1.442695
      %v1333 = vpow.pop %v1332
      %v1334 = vmul.f32 %v1286, 1.442695
      %v1335 = vpow.pop %v1334
      %v1336 = vmul.f32 %v1287, 1.442695
      %v1337 = vpow.pop %v1336
      %v1338 = vmul.f32 %v1288, 1.442695
      %v1339 = vpow.pop %v1338
      %v1340 = vmul.f32 %v1289, 1.442695
      %v1341 = vpow.pop %v1340
      %v1342 = vmul.f32 %v1290, 1.442695
      %v1343 = vpow.pop %v1342
      %v1344 = vmul.f32 %v1291, 1.442695
      %v1345 = vpow.pop %v1344
      %v1346 = vmul.f32 %v1292, 1.442695
      %v1347 = vpow.pop %v1346
      %v1348 = vmul.f32 %v1293, 1.442695
      %v1349 = vpow.pop %v1348
      %v1350 = vmul.f32 %v1294, 1.442695
      %v1351 = vpow.pop %v1350
      %v1352 = vmul.f32 %v1295, 1.442695
      %v1353 = vpow.pop %v1352
      %v1354 = vmul.f32 %v1296, 1.442695
      %v1355 = vpow.pop %v1354
      %v1356 = vmul.f32 %v1297, 1.442695
      %v1357 = vpow.pop %v1356
      %v1358 = vmul.f32 %v1298, 1.442695
      %v1359 = vpow.pop %v1358
      %v1360 = vmul.f32 %v1299, 1.442695
      %v1361 = vpow.pop %v1360
      %v1362 = vmul.f32 %v1300, 1.442695
      %v1363 = vpow.pop %v1362
      %v1364 = vmul.f32 %v1301, 1.442695
      %v1365 = vpow.pop %v1364
      %v1366 = vadd.f32 %v1303, 1.0
      %v1367 = vadd.f32 %v1305, 1.0
      %v1368 = vadd.f32 %v1307, 1.0
      %v1369 = vadd.f32 %v1309, 1.0
      %v1370 = vadd.f32 %v1311, 1.0
      %v1371 = vadd.f32 %v1313, 1.0
      %v1372 = vadd.f32 %v1315, 1.0
      %v1373 = vadd.f32 %v1317, 1.0
      %v1374 = vadd.f32 %v1319, 1.0
      %v1375 = vadd.f32 %v1321, 1.0
      %v1376 = vadd.f32 %v1323, 1.0
      %v1377 = vadd.f32 %v1325, 1.0
      %v1378 = vadd.f32 %v1327, 1.0
      %v1379 = vadd.f32 %v1329, 1.0
      %v1380 = vadd.f32 %v1331, 1.0
      %v1381 = vadd.f32 %v1333, 1.0
      %v1382 = vadd.f32 %v1335, 1.0
      %v1383 = vadd.f32 %v1337, 1.0
      %v1384 = vadd.f32 %v1339, 1.0
      %v1385 = vadd.f32 %v1341, 1.0
      %v1386 = vadd.f32 %v1343, 1.0
      %v1387 = vadd.f32 %v1345, 1.0
      %v1388 = vadd.f32 %v1347, 1.0
      %v1389 = vadd.f32 %v1349, 1.0
      %v1390 = vadd.f32 %v1351, 1.0
      %v1391 = vadd.f32 %v1353, 1.0
      %v1392 = vadd.f32 %v1355, 1.0
      %v1393 = vadd.f32 %v1357, 1.0
      %v1394 = vadd.f32 %v1359, 1.0
      %v1395 = vadd.f32 %v1361, 1.0
      %v1396 = vadd.f32 %v1363, 1.0
      %v1397 = vadd.f32 %v1365, 1.0
      %v1398 = vrcp.pop %v1366
      %v1399 = vrcp.pop %v1367
      %v1400 = vrcp.pop %v1368
      %v1401 = vrcp.pop %v1369
      %v1402 = vrcp.pop %v1370
      %v1403 = vrcp.pop %v1371
      %v1404 = vrcp.pop %v1372
      %v1405 = vrcp.pop %v1373
      %v1406 = vrcp.pop %v1374
      %v1407 = vrcp.pop %v1375
      %v1408 = vrcp.pop %v1376
      %v1409 = vrcp.pop %v1377
      %v1410 = vrcp.pop %v1378
      %v1411 = vrcp.pop %v1379
      %v1412 = vrcp.pop %v1380
      %v1413 = vrcp.pop %v1381
      %v1414 = vrcp.pop %v1382
      %v1415 = vrcp.pop %v1383
      %v1416 = vrcp.pop %v1384
      %v1417 = vrcp.pop %v1385
      %v1418 = vrcp.pop %v1386
      %v1419 = vrcp.pop %v1387
      %v1420 = vrcp.pop %v1388
      %v1421 = vrcp.pop %v1389
      %v1422 = vrcp.pop %v1390
      %v1423 = vrcp.pop %v1391
      %v1424 = vrcp.pop %v1392
      %v1425 = vrcp.pop %v1393
      %v1426 = vrcp.pop %v1394
      %v1427 = vrcp.pop %v1395
      %v1428 = vrcp.pop %v1396
      %v1429 = vrcp.pop %v1397
      %v1430 = vmul.f32 %v1238, %v1398
      %v1431 = vmul.f32 %v1239, %v1399
      %v1432 = vmul.f32 %v1240, %v1400
      %v1433 = vmul.f32 %v1241, %v1401
      %v1434 = vmul.f32 %v1242, %v1402
      %v1435 = vmul.f32 %v1243, %v1403
      %v1436 = vmul.f32 %v1244, %v1404
      %v1437 = vmul.f32 %v1245, %v1405
      %v1438 = vmul.f32 %v1246, %v1406
      %v1439 = vmul.f32 %v1247, %v1407
      %v1440 = vmul.f32 %v1248, %v1408
      %v1441 = vmul.f32 %v1249, %v1409
      %v1442 = vmul.f32 %v1250, %v1410
      %v1443 = vmul.f32 %v1251, %v1411
      %v1444 = vmul.f32 %v1252, %v1412
      %v1445 = vmul.f32 %v1253, %v1413
      %v1446 = vmul.f32 %v1254, %v1414
      %v1447 = vmul.f32 %v1255, %v1415
      %v1448 = vmul.f32 %v1256, %v1416
      %v1449 = vmul.f32 %v1257, %v1417
      %v1450 = vmul.f32 %v1258, %v1418
      %v1451 = vmul.f32 %v1259, %v1419
      %v1452 = vmul.f32 %v1260, %v1420
      %v1453 = vmul.f32 %v1261, %v1421
      %v1454 = vmul.f32 %v1262, %v1422
      %v1455 = vmul.f32 %v1263, %v1423
      %v1456 = vmul.f32 %v1264, %v1424
      %v1457 = vmul.f32 %v1265, %v1425
      %v1458 = vmul.f32 %v1266, %v1426
      %v1459 = vmul.f32 %v1267, %v1427
      %v1460 = vmul.f32 %v1268, %v1428
      %v1461 = vmul.f32 %v1269, %v1429
      %v1462 = vpack.c.bf16 %v1438, %v1430
      %v1463 = vpack.c.bf16 %v1439, %v1431
      %v1464 = vpack.c.bf16 %v1440, %v1432
      %v1465 = vpack.c.bf16 %v1441, %v1433
      %v1466 = vpack.c.bf16 %v1442, %v1434
      %v1467 = vpack.c.bf16 %v1443, %v1435
      %v1468 = vpack.c.bf16 %v1444, %v1436
      %v1469 = vpack.c.bf16 %v1445, %v1437
      %v1470 = vpack.c.bf16 %v1454, %v1446
      %v1471 = vpack.c.bf16 %v1455, %v1447
      %v1472 = vpack.c.bf16 %v1456, %v1448
      %v1473 = vpack.c.bf16 %v1457, %v1449
      %v1474 = vpack.c.bf16 %v1458, %v1450
      %v1475 = vpack.c.bf16 %v1459, %v1451
      %v1476 = vpack.c.bf16 %v1460, %v1452
      %v1477 = vpack.c.bf16 %v1461, %v1453
      %v1478 = vld [vmem:[%s584] sm:$0x1]
      %v1479 = vsub.f32 0.0, %v1478
      %v1480 = vmul.f32 %v1479, 1.442695
      %v1481 = vpow.pop %v1480
      %v1482 = vadd.f32 %v1481, 1.0
      %v1483 = vrcp.pop %v1482
      %v1484 = vmul.f32 %v1478, %v1483
      %v1485 = vld [vmem:[%s8] sm:$0xff]
      %v1486 = vld [vmem:[%s8 + $0x8] sm:$0xff]
      %v1487 = vld [vmem:[%s8 + $0x10] sm:$0xff]
      %v1488 = vld [vmem:[%s8 + $0x18] sm:$0xff]
      %v1489 = vld [vmem:[%s8 + $0x20] sm:$0xff]
      %v1490 = vld [vmem:[%s8 + $0x28] sm:$0xff]
      %v1491 = vld [vmem:[%s8 + $0x30] sm:$0xff]
      %v1492 = vld [vmem:[%s8 + $0x38] sm:$0xff]
      %v1494 = vperm.slane %v1484, 0
      %v1496 = vmul.f32 %v1485, %v1494
      %v1497 = vmul.f32 %v1486, %v1494
      %v1498 = vmul.f32 %v1487, %v1494
      %v1499 = vmul.f32 %v1488, %v1494
      %v1500 = vmul.f32 %v1489, %v1494
      %v1501 = vmul.f32 %v1490, %v1494
      %v1502 = vmul.f32 %v1491, %v1494
      %v1503 = vmul.f32 %v1492, %v1494
      %vm1504 = vcmask 523264
      %v1505 = vsel %vm1504, %v1496, 0.0
      %1506 = vadd.xlane.f32.xlu0 %v1505
      %v1507 = vpop.xlane.xlu0 %1506
      %v1508 = vsel %vm1504, %v1497, 0.0
      %1509 = vadd.xlane.f32.xlu0 %v1508
      %v1510 = vpop.xlane.xlu0 %1509
      %v1511 = vsel %vm1504, %v1498, 0.0
      %1512 = vadd.xlane.f32.xlu0 %v1511
      %v1513 = vpop.xlane.xlu0 %1512
      %v1514 = vsel %vm1504, %v1499, 0.0
      %1515 = vadd.xlane.f32.xlu0 %v1514
      %v1516 = vpop.xlane.xlu0 %1515
      %v1517 = vsel %vm1504, %v1500, 0.0
      %1518 = vadd.xlane.f32.xlu0 %v1517
      %v1519 = vpop.xlane.xlu0 %1518
      %v1520 = vsel %vm1504, %v1501, 0.0
      %1521 = vadd.xlane.f32.xlu0 %v1520
      %v1522 = vpop.xlane.xlu0 %1521
      %v1523 = vsel %vm1504, %v1502, 0.0
      %1524 = vadd.xlane.f32.xlu0 %v1523
      %v1525 = vpop.xlane.xlu0 %1524
      %v1526 = vsel %vm1504, %v1503, 0.0
      %1527 = vadd.xlane.f32.xlu0 %v1526
      %v1528 = vpop.xlane.xlu0 %1527
      %v1529 = vld [vmem:[%s9] sm:$0xff]
      %v1530 = vld [vmem:[%s9 + $0x8] sm:$0xff]
      %v1531 = vld [vmem:[%s9 + $0x10] sm:$0xff]
      %v1532 = vld [vmem:[%s9 + $0x18] sm:$0xff]
      %v1533 = vld [vmem:[%s9 + $0x20] sm:$0xff]
      %v1534 = vld [vmem:[%s9 + $0x28] sm:$0xff]
      %v1535 = vld [vmem:[%s9 + $0x30] sm:$0xff]
      %v1536 = vld [vmem:[%s9 + $0x38] sm:$0xff]
      %v1537 = vadd.f32 %v1507, %v1529
      %v1538 = vadd.f32 %v1510, %v1530
      %v1539 = vadd.f32 %v1513, %v1531
      %v1540 = vadd.f32 %v1516, %v1532
      %v1541 = vadd.f32 %v1519, %v1533
      %v1542 = vadd.f32 %v1522, %v1534
      %v1543 = vadd.f32 %v1525, %v1535
      %v1544 = vadd.f32 %v1528, %v1536
      %v1545 = vld [vmem:[%s7] sm:$0xff]
      %v1546 = vld [vmem:[%s7 + $0x8] sm:$0xff]
      %v1547 = vld [vmem:[%s7 + $0x10] sm:$0xff]
      %v1548 = vld [vmem:[%s7 + $0x18] sm:$0xff]
      %v1549 = vld [vmem:[%s7 + $0x20] sm:$0xff]
      %v1550 = vld [vmem:[%s7 + $0x28] sm:$0xff]
      %v1551 = vld [vmem:[%s7 + $0x30] sm:$0xff]
      %v1552 = vld [vmem:[%s7 + $0x38] sm:$0xff]
      %v1553 = vadd.f32 %v1545, %v1537
      %v1554 = vadd.f32 %v1546, %v1538
      %v1555 = vadd.f32 %v1547, %v1539
      %v1556 = vadd.f32 %v1548, %v1540
      %v1557 = vadd.f32 %v1549, %v1541
      %v1558 = vadd.f32 %v1550, %v1542
      %v1559 = vadd.f32 %v1551, %v1543
      %v1560 = vadd.f32 %v1552, %v1544
      %v1561 = vld [vmem:[%s6] sm:$0xf]
      %v1562 = vld [vmem:[%s6 + $0x4] sm:$0xf]
      %v1563 = vld [vmem:[%s6 + $0x8] sm:$0xf]
      %v1564 = vld [vmem:[%s6 + $0xc] sm:$0xf]
      %v1565 = vld [vmem:[%s6 + $0x10] sm:$0xf]
      %v1566 = vld [vmem:[%s6 + $0x14] sm:$0xf]
      %v1567 = vld [vmem:[%s6 + $0x18] sm:$0xf]
      %v1568 = vld [vmem:[%s6 + $0x1c] sm:$0xf]
      %v1569 = vld [vmem:[%s6 + $0x20] sm:$0xf]
      %v1570 = vld [vmem:[%s6 + $0x24] sm:$0xf]
      %v1571 = vld [vmem:[%s6 + $0x28] sm:$0xf]
      %v1572 = vld [vmem:[%s6 + $0x2c] sm:$0xf]
      %v1573 = vld [vmem:[%s6 + $0x30] sm:$0xf]
      %v1574 = vld [vmem:[%s6 + $0x34] sm:$0xf]
      %v1575 = vld [vmem:[%s6 + $0x38] sm:$0xf]
      %v1576 = vld [vmem:[%s6 + $0x3c] sm:$0xf]
      %v1577 = vld [vmem:[%s6 + $0x40] sm:$0xf]
      %v1578 = vld [vmem:[%s6 + $0x44] sm:$0xf]
      %v1579 = vld [vmem:[%s6 + $0x48] sm:$0xf]
      %v1580 = vld [vmem:[%s6 + $0x4c] sm:$0xf]
      %v1581 = vld [vmem:[%s6 + $0x50] sm:$0xf]
      %v1582 = vld [vmem:[%s6 + $0x54] sm:$0xf]
      %v1583 = vld [vmem:[%s6 + $0x58] sm:$0xf]
      %v1584 = vld [vmem:[%s6 + $0x5c] sm:$0xf]
      %1586 = vset.pattern.permute.xlu0 0
      %1587 = vperm.xlu0 %1586, %v1553
      %v1588 = vpop.permute.xlu0 %1587
      %1591 = vset.pattern.permute.xlu0 0
      %1592 = vperm.xlu0 %1591, %v1554
      %v1593 = vpop.permute.xlu0 %1592
      %1596 = vset.pattern.permute.xlu0 0
      %1597 = vperm.xlu0 %1596, %v1555
      %v1598 = vpop.permute.xlu0 %1597
      %1601 = vset.pattern.permute.xlu0 0
      %1602 = vperm.xlu0 %1601, %v1556
      %v1603 = vpop.permute.xlu0 %1602
      %1606 = vset.pattern.permute.xlu0 0
      %1607 = vperm.xlu0 %1606, %v1557
      %v1608 = vpop.permute.xlu0 %1607
      %1611 = vset.pattern.permute.xlu0 0
      %1612 = vperm.xlu0 %1611, %v1558
      %v1613 = vpop.permute.xlu0 %1612
      %1616 = vset.pattern.permute.xlu0 0
      %1617 = vperm.xlu0 %1616, %v1559
      %v1618 = vpop.permute.xlu0 %1617
      %1621 = vset.pattern.permute.xlu0 0
      %1622 = vperm.xlu0 %1621, %v1560
      %v1623 = vpop.permute.xlu0 %1622
      %v1633 = vunpack.c.l.b16 %v1569
      %v1634 = vunpack.c.l.b16 %v1570
      %v1635 = vunpack.c.l.b16 %v1571
      %v1636 = vunpack.c.l.b16 %v1572
      %v1637 = vunpack.c.l.b16 %v1573
      %v1638 = vunpack.c.l.b16 %v1574
      %v1639 = vunpack.c.l.b16 %v1575
      %v1640 = vunpack.c.l.b16 %v1576
      %v1641 = vpack.c.b16 %v1634, %v1633
      %v1642 = vpack.c.b16 %v1636, %v1635
      %v1643 = vpack.c.b16 %v1638, %v1637
      %v1644 = vpack.c.b16 %v1640, %v1639
      %v1646 = vsel %vm644, %v1641, 0
      %v1649 = vsel %vm644, %v1642, 0
      %v1652 = vsel %vm644, %v1643, 0
      %v1655 = vsel %vm644, %v1644, 0
      %1657 = vmatpush.bf16.msra.mxu0 0
      %1658 = vmatpush.bf16.msra.mxu0 0
      %1659 = vmatpush.bf16.msra.mxu0 0
      %1660 = vmatpush.bf16.msra.mxu0 0
      %1661 = vmatpush.bf16.msra.mxu0 0
      %1662 = vmatpush.bf16.msra.mxu0 0
      %1663 = vmatpush.bf16.msra.mxu0 %v1470
      %1664 = vmatpush.bf16.msra.mxu0 %v1462
      %1665 = vmatmul.bf16.gmra.mxu0 %v1646
      %v1666 = vpop.f32.mrf.mxu0
      %v1667 = vadd.f32 %v1588, %v1666
      %v1668 = vpop.f32.mrf.mxu0
      %v1669 = vadd.f32 %v1593, %v1668
      %1670 = vmatmul.bf16.gmra.mxu0 %v1649
      %v1671 = vpop.f32.mrf.mxu0
      %v1672 = vadd.f32 %v1598, %v1671
      %v1673 = vpop.f32.mrf.mxu0
      %v1674 = vadd.f32 %v1603, %v1673
      %1675 = vmatmul.bf16.gmra.mxu0 %v1652
      %v1676 = vpop.f32.mrf.mxu0
      %v1677 = vadd.f32 %v1608, %v1676
      %v1678 = vpop.f32.mrf.mxu0
      %v1679 = vadd.f32 %v1613, %v1678
      %1680 = vmatmul.bf16.gmra.mxu0 %v1655
      %v1681 = vpop.f32.mrf.mxu0
      %v1682 = vadd.f32 %v1618, %v1681
      %v1683 = vpop.f32.mrf.mxu0
      %v1684 = vadd.f32 %v1623, %v1683
      %1685 = vdwg.mxu0
      %1686 = vmatpush.bf16.msra.mxu0 0
      %1687 = vmatpush.bf16.msra.mxu0 0
      %1688 = vmatpush.bf16.msra.mxu0 0
      %1689 = vmatpush.bf16.msra.mxu0 0
      %1690 = vmatpush.bf16.msra.mxu0 0
      %1691 = vmatpush.bf16.msra.mxu0 0
      %1692 = vmatpush.bf16.msra.mxu0 %v1471
      %1693 = vmatpush.bf16.msra.mxu0 %v1463
      %1694 = vmatmul.bf16.gmra.mxu0 %v1646
      %v1695 = vpop.f32.mrf.mxu0
      %v1696 = vadd.f32 %v1588, %v1695
      %v1697 = vpop.f32.mrf.mxu0
      %v1698 = vadd.f32 %v1593, %v1697
      %1699 = vmatmul.bf16.gmra.mxu0 %v1649
      %v1700 = vpop.f32.mrf.mxu0
      %v1701 = vadd.f32 %v1598, %v1700
      %v1702 = vpop.f32.mrf.mxu0
      %v1703 = vadd.f32 %v1603, %v1702
      %1704 = vmatmul.bf16.gmra.mxu0 %v1652
      %v1705 = vpop.f32.mrf.mxu0
      %v1706 = vadd.f32 %v1608, %v1705
      %v1707 = vpop.f32.mrf.mxu0
      %v1708 = vadd.f32 %v1613, %v1707
      %1709 = vmatmul.bf16.gmra.mxu0 %v1655
      %v1710 = vpop.f32.mrf.mxu0
      %v1711 = vadd.f32 %v1618, %v1710
      %v1712 = vpop.f32.mrf.mxu0
      %v1713 = vadd.f32 %v1623, %v1712
      %1714 = vdwg.mxu0
      %1715 = vmatpush.bf16.msra.mxu0 0
      %1716 = vmatpush.bf16.msra.mxu0 0
      %1717 = vmatpush.bf16.msra.mxu0 0
      %1718 = vmatpush.bf16.msra.mxu0 0
      %1719 = vmatpush.bf16.msra.mxu0 0
      %1720 = vmatpush.bf16.msra.mxu0 0
      %1721 = vmatpush.bf16.msra.mxu0 %v1472
      %1722 = vmatpush.bf16.msra.mxu0 %v1464
      %1723 = vmatmul.bf16.gmra.mxu0 %v1646
      %v1724 = vpop.f32.mrf.mxu0
      %v1725 = vadd.f32 %v1588, %v1724
      %v1726 = vpop.f32.mrf.mxu0
      %v1727 = vadd.f32 %v1593, %v1726
      %1728 = vmatmul.bf16.gmra.mxu0 %v1649
      %v1729 = vpop.f32.mrf.mxu0
      %v1730 = vadd.f32 %v1598, %v1729
      %v1731 = vpop.f32.mrf.mxu0
      %v1732 = vadd.f32 %v1603, %v1731
      %1733 = vmatmul.bf16.gmra.mxu0 %v1652
      %v1734 = vpop.f32.mrf.mxu0
      %v1735 = vadd.f32 %v1608, %v1734
      %v1736 = vpop.f32.mrf.mxu0
      %v1737 = vadd.f32 %v1613, %v1736
      %1738 = vmatmul.bf16.gmra.mxu0 %v1655
      %v1739 = vpop.f32.mrf.mxu0
      %v1740 = vadd.f32 %v1618, %v1739
      %v1741 = vpop.f32.mrf.mxu0
      %v1742 = vadd.f32 %v1623, %v1741
      %1743 = vdwg.mxu0
      %1744 = vmatpush.bf16.msra.mxu0 0
      %1745 = vmatpush.bf16.msra.mxu0 0
      %1746 = vmatpush.bf16.msra.mxu0 0
      %1747 = vmatpush.bf16.msra.mxu0 0
      %1748 = vmatpush.bf16.msra.mxu0 0
      %1749 = vmatpush.bf16.msra.mxu0 0
      %1750 = vmatpush.bf16.msra.mxu0 %v1473
      %1751 = vmatpush.bf16.msra.mxu0 %v1465
      %1752 = vmatmul.bf16.gmra.mxu0 %v1646
      %v1753 = vpop.f32.mrf.mxu0
      %v1754 = vadd.f32 %v1588, %v1753
      %v1755 = vpop.f32.mrf.mxu0
      %v1756 = vadd.f32 %v1593, %v1755
      %1757 = vmatmul.bf16.gmra.mxu0 %v1649
      %v1758 = vpop.f32.mrf.mxu0
      %v1759 = vadd.f32 %v1598, %v1758
      %v1760 = vpop.f32.mrf.mxu0
      %v1761 = vadd.f32 %v1603, %v1760
      %1762 = vmatmul.bf16.gmra.mxu0 %v1652
      %v1763 = vpop.f32.mrf.mxu0
      %v1764 = vadd.f32 %v1608, %v1763
      %v1765 = vpop.f32.mrf.mxu0
      %v1766 = vadd.f32 %v1613, %v1765
      %1767 = vmatmul.bf16.gmra.mxu0 %v1655
      %v1768 = vpop.f32.mrf.mxu0
      %v1769 = vadd.f32 %v1618, %v1768
      %v1770 = vpop.f32.mrf.mxu0
      %v1771 = vadd.f32 %v1623, %v1770
      %1772 = vdwg.mxu0
      %1773 = vmatpush.bf16.msra.mxu0 0
      %1774 = vmatpush.bf16.msra.mxu0 0
      %1775 = vmatpush.bf16.msra.mxu0 0
      %1776 = vmatpush.bf16.msra.mxu0 0
      %1777 = vmatpush.bf16.msra.mxu0 0
      %1778 = vmatpush.bf16.msra.mxu0 0
      %1779 = vmatpush.bf16.msra.mxu0 %v1474
      %1780 = vmatpush.bf16.msra.mxu0 %v1466
      %1781 = vmatmul.bf16.gmra.mxu0 %v1646
      %v1782 = vpop.f32.mrf.mxu0
      %v1783 = vadd.f32 %v1588, %v1782
      %v1784 = vpop.f32.mrf.mxu0
      %v1785 = vadd.f32 %v1593, %v1784
      %1786 = vmatmul.bf16.gmra.mxu0 %v1649
      %v1787 = vpop.f32.mrf.mxu0
      %v1788 = vadd.f32 %v1598, %v1787
      %v1789 = vpop.f32.mrf.mxu0
      %v1790 = vadd.f32 %v1603, %v1789
      %1791 = vmatmul.bf16.gmra.mxu0 %v1652
      %v1792 = vpop.f32.mrf.mxu0
      %v1793 = vadd.f32 %v1608, %v1792
      %v1794 = vpop.f32.mrf.mxu0
      %v1795 = vadd.f32 %v1613, %v1794
      %1796 = vmatmul.bf16.gmra.mxu0 %v1655
      %v1797 = vpop.f32.mrf.mxu0
      %v1798 = vadd.f32 %v1618, %v1797
      %v1799 = vpop.f32.mrf.mxu0
      %v1800 = vadd.f32 %v1623, %v1799
      %1801 = vdwg.mxu0
      %1802 = vmatpush.bf16.msra.mxu0 0
      %1803 = vmatpush.bf16.msra.mxu0 0
      %1804 = vmatpush.bf16.msra.mxu0 0
      %1805 = vmatpush.bf16.msra.mxu0 0
      %1806 = vmatpush.bf16.msra.mxu0 0
      %1807 = vmatpush.bf16.msra.mxu0 0
      %1808 = vmatpush.bf16.msra.mxu0 %v1475
      %1809 = vmatpush.bf16.msra.mxu0 %v1467
      %1810 = vmatmul.bf16.gmra.mxu0 %v1646
      %v1811 = vpop.f32.mrf.mxu0
      %v1812 = vadd.f32 %v1588, %v1811
      %v1813 = vpop.f32.mrf.mxu0
      %v1814 = vadd.f32 %v1593, %v1813
      %1815 = vmatmul.bf16.gmra.mxu0 %v1649
      %v1816 = vpop.f32.mrf.mxu0
      %v1817 = vadd.f32 %v1598, %v1816
      %v1818 = vpop.f32.mrf.mxu0
      %v1819 = vadd.f32 %v1603, %v1818
      %1820 = vmatmul.bf16.gmra.mxu0 %v1652
      %v1821 = vpop.f32.mrf.mxu0
      %v1822 = vadd.f32 %v1608, %v1821
      %v1823 = vpop.f32.mrf.mxu0
      %v1824 = vadd.f32 %v1613, %v1823
      %1825 = vmatmul.bf16.gmra.mxu0 %v1655
      %v1826 = vpop.f32.mrf.mxu0
      %v1827 = vadd.f32 %v1618, %v1826
      %v1828 = vpop.f32.mrf.mxu0
      %v1829 = vadd.f32 %v1623, %v1828
      %1830 = vdwg.mxu0
      %1831 = vmatpush.bf16.msra.mxu0 0
      %1832 = vmatpush.bf16.msra.mxu0 0
      %1833 = vmatpush.bf16.msra.mxu0 0
      %1834 = vmatpush.bf16.msra.mxu0 0
      %1835 = vmatpush.bf16.msra.mxu0 0
      %1836 = vmatpush.bf16.msra.mxu0 0
      %1837 = vmatpush.bf16.msra.mxu0 %v1476
      %1838 = vmatpush.bf16.msra.mxu0 %v1468
      %1839 = vmatmul.bf16.gmra.mxu0 %v1646
      %v1840 = vpop.f32.mrf.mxu0
      %v1841 = vadd.f32 %v1588, %v1840
      %v1842 = vpop.f32.mrf.mxu0
      %v1843 = vadd.f32 %v1593, %v1842
      %1844 = vmatmul.bf16.gmra.mxu0 %v1649
      %v1845 = vpop.f32.mrf.mxu0
      %v1846 = vadd.f32 %v1598, %v1845
      %v1847 = vpop.f32.mrf.mxu0
      %v1848 = vadd.f32 %v1603, %v1847
      %1849 = vmatmul.bf16.gmra.mxu0 %v1652
      %v1850 = vpop.f32.mrf.mxu0
      %v1851 = vadd.f32 %v1608, %v1850
      %v1852 = vpop.f32.mrf.mxu0
      %v1853 = vadd.f32 %v1613, %v1852
      %1854 = vmatmul.bf16.gmra.mxu0 %v1655
      %v1855 = vpop.f32.mrf.mxu0
      %v1856 = vadd.f32 %v1618, %v1855
      %v1857 = vpop.f32.mrf.mxu0
      %v1858 = vadd.f32 %v1623, %v1857
      %1859 = vdwg.mxu0
      %1860 = vmatpush.bf16.msra.mxu0 0
      %1861 = vmatpush.bf16.msra.mxu0 0
      %1862 = vmatpush.bf16.msra.mxu0 0
      %1863 = vmatpush.bf16.msra.mxu0 0
      %1864 = vmatpush.bf16.msra.mxu0 0
      %1865 = vmatpush.bf16.msra.mxu0 0
      %1866 = vmatpush.bf16.msra.mxu0 %v1477
      %1867 = vmatpush.bf16.msra.mxu0 %v1469
      %1868 = vmatmul.bf16.gmra.mxu0 %v1646
      %v1869 = vpop.f32.mrf.mxu0
      %v1870 = vadd.f32 %v1588, %v1869
      %v1871 = vpop.f32.mrf.mxu0
      %v1872 = vadd.f32 %v1593, %v1871
      %1873 = vmatmul.bf16.gmra.mxu0 %v1649
      %v1874 = vpop.f32.mrf.mxu0
      %v1875 = vadd.f32 %v1598, %v1874
      %v1876 = vpop.f32.mrf.mxu0
      %v1877 = vadd.f32 %v1603, %v1876
      %1878 = vmatmul.bf16.gmra.mxu0 %v1652
      %v1879 = vpop.f32.mrf.mxu0
      %v1880 = vadd.f32 %v1608, %v1879
      %v1881 = vpop.f32.mrf.mxu0
      %v1882 = vadd.f32 %v1613, %v1881
      %1883 = vmatmul.bf16.gmra.mxu0 %v1655
      %v1884 = vpop.f32.mrf.mxu0
      %v1885 = vadd.f32 %v1618, %v1884
      %v1886 = vpop.f32.mrf.mxu0
      %v1887 = vadd.f32 %v1623, %v1886
      %1888 = vdwg.mxu0
      %1889 = vst [vmem:[#allocation2] sm:$0xff] %v1667
      %1890 = vst [vmem:[#allocation2 + $0x8] sm:$0xff] %v1696
      %1891 = vst [vmem:[#allocation2 + $0x10] sm:$0xff] %v1725
      %1892 = vst [vmem:[#allocation2 + $0x18] sm:$0xff] %v1754
      %1893 = vst [vmem:[#allocation2 + $0x20] sm:$0xff] %v1783
      %1894 = vst [vmem:[#allocation2 + $0x28] sm:$0xff] %v1812
      %1895 = vst [vmem:[#allocation2 + $0x30] sm:$0xff] %v1841
      %1896 = vst [vmem:[#allocation2 + $0x38] sm:$0xff] %v1870
      %1897 = vst [vmem:[#allocation2 + $0x40] sm:$0xff] %v1669
      %1898 = vst [vmem:[#allocation2 + $0x48] sm:$0xff] %v1698
      %1899 = vst [vmem:[#allocation2 + $0x50] sm:$0xff] %v1727
      %1900 = vst [vmem:[#allocation2 + $0x58] sm:$0xff] %v1756
      %1901 = vst [vmem:[#allocation2 + $0x60] sm:$0xff] %v1785
      %1902 = vst [vmem:[#allocation2 + $0x68] sm:$0xff] %v1814
      %1903 = vst [vmem:[#allocation2 + $0x70] sm:$0xff] %v1843
      %1904 = vst [vmem:[#allocation2 + $0x78] sm:$0xff] %v1872
      %1905 = vst [vmem:[#allocation2 + $0x80] sm:$0xff] %v1672
      %1906 = vst [vmem:[#allocation2 + $0x88] sm:$0xff] %v1701
      %1907 = vst [vmem:[#allocation2 + $0x90] sm:$0xff] %v1730
      %1908 = vst [vmem:[#allocation2 + $0x98] sm:$0xff] %v1759
      %1909 = vst [vmem:[#allocation2 + $0xa0] sm:$0xff] %v1788
      %1910 = vst [vmem:[#allocation2 + $0xa8] sm:$0xff] %v1817
      %1911 = vst [vmem:[#allocation2 + $0xb0] sm:$0xff] %v1846
      %1912 = vst [vmem:[#allocation2 + $0xb8] sm:$0xff] %v1875
      %1913 = vst [vmem:[#allocation2 + $0xc0] sm:$0xff] %v1674
      %1914 = vst [vmem:[#allocation2 + $0xc8] sm:$0xff] %v1703
      %1915 = vst [vmem:[#allocation2 + $0xd0] sm:$0xff] %v1732
      %1916 = vst [vmem:[#allocation2 + $0xd8] sm:$0xff] %v1761
      %1917 = vst [vmem:[#allocation2 + $0xe0] sm:$0xff] %v1790
      %1918 = vst [vmem:[#allocation2 + $0xe8] sm:$0xff] %v1819
      %1919 = vst [vmem:[#allocation2 + $0xf0] sm:$0xff] %v1848
      %1920 = vst [vmem:[#allocation2 + $0xf8] sm:$0xff] %v1877
      %1921 = vst [vmem:[#allocation2 + $0x100] sm:$0xff] %v1677
      %1922 = vst [vmem:[#allocation2 + $0x108] sm:$0xff] %v1706
      %1923 = vst [vmem:[#allocation2 + $0x110] sm:$0xff] %v1735
      %1924 = vst [vmem:[#allocation2 + $0x118] sm:$0xff] %v1764
      %1925 = vst [vmem:[#allocation2 + $0x120] sm:$0xff] %v1793
      %1926 = vst [vmem:[#allocation2 + $0x128] sm:$0xff] %v1822
      %1927 = vst [vmem:[#allocation2 + $0x130] sm:$0xff] %v1851
      %1928 = vst [vmem:[#allocation2 + $0x138] sm:$0xff] %v1880
      %1929 = vst [vmem:[#allocation2 + $0x140] sm:$0xff] %v1679
      %1930 = vst [vmem:[#allocation2 + $0x148] sm:$0xff] %v1708
      %1931 = vst [vmem:[#allocation2 + $0x150] sm:$0xff] %v1737
      %1932 = vst [vmem:[#allocation2 + $0x158] sm:$0xff] %v1766
      %1933 = vst [vmem:[#allocation2 + $0x160] sm:$0xff] %v1795
      %1934 = vst [vmem:[#allocation2 + $0x168] sm:$0xff] %v1824
      %1935 = vst [vmem:[#allocation2 + $0x170] sm:$0xff] %v1853
      %1936 = vst [vmem:[#allocation2 + $0x178] sm:$0xff] %v1882
      %1937 = vst [vmem:[#allocation2 + $0x180] sm:$0xff] %v1682
      %1938 = vst [vmem:[#allocation2 + $0x188] sm:$0xff] %v1711
      %1939 = vst [vmem:[#allocation2 + $0x190] sm:$0xff] %v1740
      %1940 = vst [vmem:[#allocation2 + $0x198] sm:$0xff] %v1769
      %1941 = vst [vmem:[#allocation2 + $0x1a0] sm:$0xff] %v1798
      %1942 = vst [vmem:[#allocation2 + $0x1a8] sm:$0xff] %v1827
      %1943 = vst [vmem:[#allocation2 + $0x1b0] sm:$0xff] %v1856
      %1944 = vst [vmem:[#allocation2 + $0x1b8] sm:$0xff] %v1885
      %1945 = vst [vmem:[#allocation2 + $0x1c0] sm:$0xff] %v1684
      %1946 = vst [vmem:[#allocation2 + $0x1c8] sm:$0xff] %v1713
      %1947 = vst [vmem:[#allocation2 + $0x1d0] sm:$0xff] %v1742
      %1948 = vst [vmem:[#allocation2 + $0x1d8] sm:$0xff] %v1771
      %1949 = vst [vmem:[#allocation2 + $0x1e0] sm:$0xff] %v1800
      %1950 = vst [vmem:[#allocation2 + $0x1e8] sm:$0xff] %v1829
      %1951 = vst [vmem:[#allocation2 + $0x1f0] sm:$0xff] %v1858
      %1952 = vst [vmem:[#allocation2 + $0x1f8] sm:$0xff] %v1887
      %v1961 = vunpack.c.l.b16 %v1561
      %v1962 = vunpack.c.l.b16 %v1562
      %v1963 = vunpack.c.l.b16 %v1563
      %v1964 = vunpack.c.l.b16 %v1564
      %v1965 = vunpack.c.l.b16 %v1565
      %v1966 = vunpack.c.l.b16 %v1566
      %v1967 = vunpack.c.l.b16 %v1567
      %v1968 = vunpack.c.l.b16 %v1568
      %v1969 = vpack.c.b16 %v1962, %v1961
      %v1970 = vpack.c.b16 %v1964, %v1963
      %v1971 = vpack.c.b16 %v1966, %v1965
      %v1972 = vpack.c.b16 %v1968, %v1967
      %v1974 = vsel %vm644, %v1969, 0
      %v1977 = vsel %vm644, %v1970, 0
      %v1980 = vsel %vm644, %v1971, 0
      %v1983 = vsel %vm644, %v1972, 0
      %1985 = vmatpush.bf16.msra.mxu0 0
      %1986 = vmatpush.bf16.msra.mxu0 0
      %1987 = vmatpush.bf16.msra.mxu0 0
      %1988 = vmatpush.bf16.msra.mxu0 0
      %1989 = vmatpush.bf16.msra.mxu0 0
      %1990 = vmatpush.bf16.msra.mxu0 0
      %1991 = vmatpush.bf16.msra.mxu0 %v1470
      %1992 = vmatpush.bf16.msra.mxu0 %v1462
      %1993 = vmatmul.bf16.gmra.mxu0 %v1974
      %v1994 = vpop.f32.mrf.mxu0
      %v1995 = vadd.f32 0.0, %v1994
      %v1996 = vpop.f32.mrf.mxu0
      %v1997 = vadd.f32 0.0, %v1996
      %1998 = vmatmul.bf16.gmra.mxu0 %v1977
      %v1999 = vpop.f32.mrf.mxu0
      %v2000 = vadd.f32 0.0, %v1999
      %v2001 = vpop.f32.mrf.mxu0
      %v2002 = vadd.f32 0.0, %v2001
      %2003 = vmatmul.bf16.gmra.mxu0 %v1980
      %v2004 = vpop.f32.mrf.mxu0
      %v2005 = vadd.f32 0.0, %v2004
      %v2006 = vpop.f32.mrf.mxu0
      %v2007 = vadd.f32 0.0, %v2006
      %2008 = vmatmul.bf16.gmra.mxu0 %v1983
      %v2009 = vpop.f32.mrf.mxu0
      %v2010 = vadd.f32 0.0, %v2009
      %v2011 = vpop.f32.mrf.mxu0
      %v2012 = vadd.f32 0.0, %v2011
      %2013 = vdwg.mxu0
      %2014 = vmatpush.bf16.msra.mxu0 0
      %2015 = vmatpush.bf16.msra.mxu0 0
      %2016 = vmatpush.bf16.msra.mxu0 0
      %2017 = vmatpush.bf16.msra.mxu0 0
      %2018 = vmatpush.bf16.msra.mxu0 0
      %2019 = vmatpush.bf16.msra.mxu0 0
      %2020 = vmatpush.bf16.msra.mxu0 %v1471
      %2021 = vmatpush.bf16.msra.mxu0 %v1463
      %2022 = vmatmul.bf16.gmra.mxu0 %v1974
      %v2023 = vpop.f32.mrf.mxu0
      %v2024 = vadd.f32 0.0, %v2023
      %v2025 = vpop.f32.mrf.mxu0
      %v2026 = vadd.f32 0.0, %v2025
      %2027 = vmatmul.bf16.gmra.mxu0 %v1977
      %v2028 = vpop.f32.mrf.mxu0
      %v2029 = vadd.f32 0.0, %v2028
      %v2030 = vpop.f32.mrf.mxu0
      %v2031 = vadd.f32 0.0, %v2030
      %2032 = vmatmul.bf16.gmra.mxu0 %v1980
      %v2033 = vpop.f32.mrf.mxu0
      %v2034 = vadd.f32 0.0, %v2033
      %v2035 = vpop.f32.mrf.mxu0
      %v2036 = vadd.f32 0.0, %v2035
      %2037 = vmatmul.bf16.gmra.mxu0 %v1983
      %v2038 = vpop.f32.mrf.mxu0
      %v2039 = vadd.f32 0.0, %v2038
      %v2040 = vpop.f32.mrf.mxu0
      %v2041 = vadd.f32 0.0, %v2040
      %2042 = vdwg.mxu0
      %2043 = vmatpush.bf16.msra.mxu0 0
      %2044 = vmatpush.bf16.msra.mxu0 0
      %2045 = vmatpush.bf16.msra.mxu0 0
      %2046 = vmatpush.bf16.msra.mxu0 0
      %2047 = vmatpush.bf16.msra.mxu0 0
      %2048 = vmatpush.bf16.msra.mxu0 0
      %2049 = vmatpush.bf16.msra.mxu0 %v1472
      %2050 = vmatpush.bf16.msra.mxu0 %v1464
      %2051 = vmatmul.bf16.gmra.mxu0 %v1974
      %v2052 = vpop.f32.mrf.mxu0
      %v2053 = vadd.f32 0.0, %v2052
      %v2054 = vpop.f32.mrf.mxu0
      %v2055 = vadd.f32 0.0, %v2054
      %2056 = vmatmul.bf16.gmra.mxu0 %v1977
      %v2057 = vpop.f32.mrf.mxu0
      %v2058 = vadd.f32 0.0, %v2057
      %v2059 = vpop.f32.mrf.mxu0
      %v2060 = vadd.f32 0.0, %v2059
      %2061 = vmatmul.bf16.gmra.mxu0 %v1980
      %v2062 = vpop.f32.mrf.mxu0
      %v2063 = vadd.f32 0.0, %v2062
      %v2064 = vpop.f32.mrf.mxu0
      %v2065 = vadd.f32 0.0, %v2064
      %2066 = vmatmul.bf16.gmra.mxu0 %v1983
      %v2067 = vpop.f32.mrf.mxu0
      %v2068 = vadd.f32 0.0, %v2067
      %v2069 = vpop.f32.mrf.mxu0
      %v2070 = vadd.f32 0.0, %v2069
      %2071 = vdwg.mxu0
      %2072 = vmatpush.bf16.msra.mxu0 0
      %2073 = vmatpush.bf16.msra.mxu0 0
      %2074 = vmatpush.bf16.msra.mxu0 0
      %2075 = vmatpush.bf16.msra.mxu0 0
      %2076 = vmatpush.bf16.msra.mxu0 0
      %2077 = vmatpush.bf16.msra.mxu0 0
      %2078 = vmatpush.bf16.msra.mxu0 %v1473
      %2079 = vmatpush.bf16.msra.mxu0 %v1465
      %2080 = vmatmul.bf16.gmra.mxu0 %v1974
      %v2081 = vpop.f32.mrf.mxu0
      %v2082 = vadd.f32 0.0, %v2081
      %v2083 = vpop.f32.mrf.mxu0
      %v2084 = vadd.f32 0.0, %v2083
      %2085 = vmatmul.bf16.gmra.mxu0 %v1977
      %v2086 = vpop.f32.mrf.mxu0
      %v2087 = vadd.f32 0.0, %v2086
      %v2088 = vpop.f32.mrf.mxu0
      %v2089 = vadd.f32 0.0, %v2088
      %2090 = vmatmul.bf16.gmra.mxu0 %v1980
      %v2091 = vpop.f32.mrf.mxu0
      %v2092 = vadd.f32 0.0, %v2091
      %v2093 = vpop.f32.mrf.mxu0
      %v2094 = vadd.f32 0.0, %v2093
      %2095 = vmatmul.bf16.gmra.mxu0 %v1983
      %v2096 = vpop.f32.mrf.mxu0
      %v2097 = vadd.f32 0.0, %v2096
      %v2098 = vpop.f32.mrf.mxu0
      %v2099 = vadd.f32 0.0, %v2098
      %2100 = vdwg.mxu0
      %2101 = vmatpush.bf16.msra.mxu0 0
      %2102 = vmatpush.bf16.msra.mxu0 0
      %2103 = vmatpush.bf16.msra.mxu0 0
      %2104 = vmatpush.bf16.msra.mxu0 0
      %2105 = vmatpush.bf16.msra.mxu0 0
      %2106 = vmatpush.bf16.msra.mxu0 0
      %2107 = vmatpush.bf16.msra.mxu0 %v1474
      %2108 = vmatpush.bf16.msra.mxu0 %v1466
      %2109 = vmatmul.bf16.gmra.mxu0 %v1974
      %v2110 = vpop.f32.mrf.mxu0
      %v2111 = vadd.f32 0.0, %v2110
      %v2112 = vpop.f32.mrf.mxu0
      %v2113 = vadd.f32 0.0, %v2112
      %2114 = vmatmul.bf16.gmra.mxu0 %v1977
      %v2115 = vpop.f32.mrf.mxu0
      %v2116 = vadd.f32 0.0, %v2115
      %v2117 = vpop.f32.mrf.mxu0
      %v2118 = vadd.f32 0.0, %v2117
      %2119 = vmatmul.bf16.gmra.mxu0 %v1980
      %v2120 = vpop.f32.mrf.mxu0
      %v2121 = vadd.f32 0.0, %v2120
      %v2122 = vpop.f32.mrf.mxu0
      %v2123 = vadd.f32 0.0, %v2122
      %2124 = vmatmul.bf16.gmra.mxu0 %v1983
      %v2125 = vpop.f32.mrf.mxu0
      %v2126 = vadd.f32 0.0, %v2125
      %v2127 = vpop.f32.mrf.mxu0
      %v2128 = vadd.f32 0.0, %v2127
      %2129 = vdwg.mxu0
      %2130 = vmatpush.bf16.msra.mxu0 0
      %2131 = vmatpush.bf16.msra.mxu0 0
      %2132 = vmatpush.bf16.msra.mxu0 0
      %2133 = vmatpush.bf16.msra.mxu0 0
      %2134 = vmatpush.bf16.msra.mxu0 0
      %2135 = vmatpush.bf16.msra.mxu0 0
      %2136 = vmatpush.bf16.msra.mxu0 %v1475
      %2137 = vmatpush.bf16.msra.mxu0 %v1467
      %2138 = vmatmul.bf16.gmra.mxu0 %v1974
      %v2139 = vpop.f32.mrf.mxu0
      %v2140 = vadd.f32 0.0, %v2139
      %v2141 = vpop.f32.mrf.mxu0
      %v2142 = vadd.f32 0.0, %v2141
      %2143 = vmatmul.bf16.gmra.mxu0 %v1977
      %v2144 = vpop.f32.mrf.mxu0
      %v2145 = vadd.f32 0.0, %v2144
      %v2146 = vpop.f32.mrf.mxu0
      %v2147 = vadd.f32 0.0, %v2146
      %2148 = vmatmul.bf16.gmra.mxu0 %v1980
      %v2149 = vpop.f32.mrf.mxu0
      %v2150 = vadd.f32 0.0, %v2149
      %v2151 = vpop.f32.mrf.mxu0
      %v2152 = vadd.f32 0.0, %v2151
      %2153 = vmatmul.bf16.gmra.mxu0 %v1983
      %v2154 = vpop.f32.mrf.mxu0
      %v2155 = vadd.f32 0.0, %v2154
      %v2156 = vpop.f32.mrf.mxu0
      %v2157 = vadd.f32 0.0, %v2156
      %2158 = vdwg.mxu0
      %v2167 = vunpack.c.l.b16 %v1577
      %v2168 = vunpack.c.l.b16 %v1578
      %v2169 = vunpack.c.l.b16 %v1579
      %v2170 = vunpack.c.l.b16 %v1580
      %v2171 = vunpack.c.l.b16 %v1581
      %v2172 = vunpack.c.l.b16 %v1582
      %v2173 = vunpack.c.l.b16 %v1583
      %v2174 = vunpack.c.l.b16 %v1584
      %v2175 = vpack.c.b16 %v2168, %v2167
      %v2176 = vpack.c.b16 %v2170, %v2169
      %v2177 = vpack.c.b16 %v2172, %v2171
      %v2178 = vpack.c.b16 %v2174, %v2173
      %v2180 = vsel %vm644, %v2175, 0
      %v2183 = vsel %vm644, %v2176, 0
      %v2186 = vsel %vm644, %v2177, 0
      %v2189 = vsel %vm644, %v2178, 0
      %2191 = vmatpush.bf16.msra.mxu0 0
      %2192 = vmatpush.bf16.msra.mxu0 0
      %2193 = vmatpush.bf16.msra.mxu0 0
      %2194 = vmatpush.bf16.msra.mxu0 0
      %2195 = vmatpush.bf16.msra.mxu0 0
      %2196 = vmatpush.bf16.msra.mxu0 0
      %2197 = vmatpush.bf16.msra.mxu0 %v1472
      %2198 = vmatpush.bf16.msra.mxu0 %v1464
      %2199 = vmatmul.bf16.gmra.mxu0 %v2180
      %v2200 = vpop.f32.mrf.mxu0
      %v2201 = vadd.f32 0.0, %v2200
      %v2202 = vpop.f32.mrf.mxu0
      %v2203 = vadd.f32 0.0, %v2202
      %2204 = vmatmul.bf16.gmra.mxu0 %v2183
      %v2205 = vpop.f32.mrf.mxu0
      %v2206 = vadd.f32 0.0, %v2205
      %v2207 = vpop.f32.mrf.mxu0
      %v2208 = vadd.f32 0.0, %v2207
      %2209 = vmatmul.bf16.gmra.mxu0 %v2186
      %v2210 = vpop.f32.mrf.mxu0
      %v2211 = vadd.f32 0.0, %v2210
      %v2212 = vpop.f32.mrf.mxu0
      %v2213 = vadd.f32 0.0, %v2212
      %2214 = vmatmul.bf16.gmra.mxu0 %v2189
      %v2215 = vpop.f32.mrf.mxu0
      %v2216 = vadd.f32 0.0, %v2215
      %v2217 = vpop.f32.mrf.mxu0
      %v2218 = vadd.f32 0.0, %v2217
      %2219 = vdwg.mxu0
      %2220 = vmatpush.bf16.msra.mxu0 0
      %2221 = vmatpush.bf16.msra.mxu0 0
      %2222 = vmatpush.bf16.msra.mxu0 0
      %2223 = vmatpush.bf16.msra.mxu0 0
      %2224 = vmatpush.bf16.msra.mxu0 0
      %2225 = vmatpush.bf16.msra.mxu0 0
      %2226 = vmatpush.bf16.msra.mxu0 %v1473
      %2227 = vmatpush.bf16.msra.mxu0 %v1465
      %2228 = vmatmul.bf16.gmra.mxu0 %v2180
      %v2229 = vpop.f32.mrf.mxu0
      %v2230 = vadd.f32 0.0, %v2229
      %v2231 = vpop.f32.mrf.mxu0
      %v2232 = vadd.f32 0.0, %v2231
      %2233 = vmatmul.bf16.gmra.mxu0 %v2183
      %v2234 = vpop.f32.mrf.mxu0
      %v2235 = vadd.f32 0.0, %v2234
      %v2236 = vpop.f32.mrf.mxu0
      %v2237 = vadd.f32 0.0, %v2236
      %2238 = vmatmul.bf16.gmra.mxu0 %v2186
      %v2239 = vpop.f32.mrf.mxu0
      %v2240 = vadd.f32 0.0, %v2239
      %v2241 = vpop.f32.mrf.mxu0
      %v2242 = vadd.f32 0.0, %v2241
      %2243 = vmatmul.bf16.gmra.mxu0 %v2189
      %v2244 = vpop.f32.mrf.mxu0
      %v2245 = vadd.f32 0.0, %v2244
      %v2246 = vpop.f32.mrf.mxu0
      %v2247 = vadd.f32 0.0, %v2246
      %2248 = vdwg.mxu0
      %2249 = vmatpush.bf16.msra.mxu0 0
      %2250 = vmatpush.bf16.msra.mxu0 0
      %2251 = vmatpush.bf16.msra.mxu0 0
      %2252 = vmatpush.bf16.msra.mxu0 0
      %2253 = vmatpush.bf16.msra.mxu0 0
      %2254 = vmatpush.bf16.msra.mxu0 0
      %2255 = vmatpush.bf16.msra.mxu0 %v1474
      %2256 = vmatpush.bf16.msra.mxu0 %v1466
      %2257 = vmatmul.bf16.gmra.mxu0 %v2180
      %v2258 = vpop.f32.mrf.mxu0
      %v2259 = vadd.f32 0.0, %v2258
      %v2260 = vpop.f32.mrf.mxu0
      %v2261 = vadd.f32 0.0, %v2260
      %2262 = vmatmul.bf16.gmra.mxu0 %v2183
      %v2263 = vpop.f32.mrf.mxu0
      %v2264 = vadd.f32 0.0, %v2263
      %v2265 = vpop.f32.mrf.mxu0
      %v2266 = vadd.f32 0.0, %v2265
      %2267 = vmatmul.bf16.gmra.mxu0 %v2186
      %v2268 = vpop.f32.mrf.mxu0
      %v2269 = vadd.f32 0.0, %v2268
      %v2270 = vpop.f32.mrf.mxu0
      %v2271 = vadd.f32 0.0, %v2270
      %2272 = vmatmul.bf16.gmra.mxu0 %v2189
      %v2273 = vpop.f32.mrf.mxu0
      %v2274 = vadd.f32 0.0, %v2273
      %v2275 = vpop.f32.mrf.mxu0
      %v2276 = vadd.f32 0.0, %v2275
      %2277 = vdwg.mxu0
      %2278 = vmatpush.bf16.msra.mxu0 0
      %2279 = vmatpush.bf16.msra.mxu0 0
      %2280 = vmatpush.bf16.msra.mxu0 0
      %2281 = vmatpush.bf16.msra.mxu0 0
      %2282 = vmatpush.bf16.msra.mxu0 0
      %2283 = vmatpush.bf16.msra.mxu0 0
      %2284 = vmatpush.bf16.msra.mxu0 %v1475
      %2285 = vmatpush.bf16.msra.mxu0 %v1467
      %2286 = vmatmul.bf16.gmra.mxu0 %v2180
      %v2287 = vpop.f32.mrf.mxu0
      %v2288 = vadd.f32 0.0, %v2287
      %v2289 = vpop.f32.mrf.mxu0
      %v2290 = vadd.f32 0.0, %v2289
      %2291 = vmatmul.bf16.gmra.mxu0 %v2183
      %v2292 = vpop.f32.mrf.mxu0
      %v2293 = vadd.f32 0.0, %v2292
      %v2294 = vpop.f32.mrf.mxu0
      %v2295 = vadd.f32 0.0, %v2294
      %2296 = vmatmul.bf16.gmra.mxu0 %v2186
      %v2297 = vpop.f32.mrf.mxu0
      %v2298 = vadd.f32 0.0, %v2297
      %v2299 = vpop.f32.mrf.mxu0
      %v2300 = vadd.f32 0.0, %v2299
      %2301 = vmatmul.bf16.gmra.mxu0 %v2189
      %v2302 = vpop.f32.mrf.mxu0
      %v2303 = vadd.f32 0.0, %v2302
      %v2304 = vpop.f32.mrf.mxu0
      %v2305 = vadd.f32 0.0, %v2304
      %2306 = vdwg.mxu0
      %2307 = vmatpush.bf16.msra.mxu0 0
      %2308 = vmatpush.bf16.msra.mxu0 0
      %2309 = vmatpush.bf16.msra.mxu0 0
      %2310 = vmatpush.bf16.msra.mxu0 0
      %2311 = vmatpush.bf16.msra.mxu0 0
      %2312 = vmatpush.bf16.msra.mxu0 0
      %2313 = vmatpush.bf16.msra.mxu0 %v1476
      %2314 = vmatpush.bf16.msra.mxu0 %v1468
      %2315 = vmatmul.bf16.gmra.mxu0 %v2180
      %v2316 = vpop.f32.mrf.mxu0
      %v2317 = vadd.f32 0.0, %v2316
      %v2318 = vpop.f32.mrf.mxu0
      %v2319 = vadd.f32 0.0, %v2318
      %2320 = vmatmul.bf16.gmra.mxu0 %v2183
      %v2321 = vpop.f32.mrf.mxu0
      %v2322 = vadd.f32 0.0, %v2321
      %v2323 = vpop.f32.mrf.mxu0
      %v2324 = vadd.f32 0.0, %v2323
      %2325 = vmatmul.bf16.gmra.mxu0 %v2186
      %v2326 = vpop.f32.mrf.mxu0
      %v2327 = vadd.f32 0.0, %v2326
      %v2328 = vpop.f32.mrf.mxu0
      %v2329 = vadd.f32 0.0, %v2328
      %2330 = vmatmul.bf16.gmra.mxu0 %v2189
      %v2331 = vpop.f32.mrf.mxu0
      %v2332 = vadd.f32 0.0, %v2331
      %v2333 = vpop.f32.mrf.mxu0
      %v2334 = vadd.f32 0.0, %v2333
      %2335 = vdwg.mxu0
      %2336 = vmatpush.bf16.msra.mxu0 0
      %2337 = vmatpush.bf16.msra.mxu0 0
      %2338 = vmatpush.bf16.msra.mxu0 0
      %2339 = vmatpush.bf16.msra.mxu0 0
      %2340 = vmatpush.bf16.msra.mxu0 0
      %2341 = vmatpush.bf16.msra.mxu0 0
      %2342 = vmatpush.bf16.msra.mxu0 %v1477
      %2343 = vmatpush.bf16.msra.mxu0 %v1469
      %2344 = vmatmul.bf16.gmra.mxu0 %v2180
      %v2345 = vpop.f32.mrf.mxu0
      %v2346 = vadd.f32 0.0, %v2345
      %v2347 = vpop.f32.mrf.mxu0
      %v2348 = vadd.f32 0.0, %v2347
      %2349 = vmatmul.bf16.gmra.mxu0 %v2183
      %v2350 = vpop.f32.mrf.mxu0
      %v2351 = vadd.f32 0.0, %v2350
      %v2352 = vpop.f32.mrf.mxu0
      %v2353 = vadd.f32 0.0, %v2352
      %2354 = vmatmul.bf16.gmra.mxu0 %v2186
      %v2355 = vpop.f32.mrf.mxu0
      %v2356 = vadd.f32 0.0, %v2355
      %v2357 = vpop.f32.mrf.mxu0
      %v2358 = vadd.f32 0.0, %v2357
      %2359 = vmatmul.bf16.gmra.mxu0 %v2189
      %v2360 = vpop.f32.mrf.mxu0
      %v2361 = vadd.f32 0.0, %v2360
      %v2362 = vpop.f32.mrf.mxu0
      %v2363 = vadd.f32 0.0, %v2362
      %2364 = vdwg.mxu0
      %v2365 = vld [vmem:[#allocation2 + $0x10] sm:$0xff]
      %v2366 = vld [vmem:[#allocation2 + $0x18] sm:$0xff]
      %v2367 = vld [vmem:[#allocation2 + $0x20] sm:$0xff]
      %v2368 = vld [vmem:[#allocation2 + $0x28] sm:$0xff]
      %v2369 = vld [vmem:[#allocation2 + $0x30] sm:$0xff]
      %v2370 = vld [vmem:[#allocation2 + $0x38] sm:$0xff]
      %v2371 = vld [vmem:[#allocation2 + $0x50] sm:$0xff]
      %v2372 = vld [vmem:[#allocation2 + $0x58] sm:$0xff]
      %v2373 = vld [vmem:[#allocation2 + $0x60] sm:$0xff]
      %v2374 = vld [vmem:[#allocation2 + $0x68] sm:$0xff]
      %v2375 = vld [vmem:[#allocation2 + $0x70] sm:$0xff]
      %v2376 = vld [vmem:[#allocation2 + $0x78] sm:$0xff]
      %v2377 = vld [vmem:[#allocation2 + $0x90] sm:$0xff]
      %v2378 = vld [vmem:[#allocation2 + $0x98] sm:$0xff]
      %v2379 = vld [vmem:[#allocation2 + $0xa0] sm:$0xff]
      %v2380 = vld [vmem:[#allocation2 + $0xa8] sm:$0xff]
      %v2381 = vld [vmem:[#allocation2 + $0xb0] sm:$0xff]
      %v2382 = vld [vmem:[#allocation2 + $0xb8] sm:$0xff]
      %v2383 = vld [vmem:[#allocation2 + $0xd0] sm:$0xff]
      %v2384 = vld [vmem:[#allocation2 + $0xd8] sm:$0xff]
      %v2385 = vld [vmem:[#allocation2 + $0xe0] sm:$0xff]
      %v2386 = vld [vmem:[#allocation2 + $0xe8] sm:$0xff]
      %v2387 = vld [vmem:[#allocation2 + $0xf0] sm:$0xff]
      %v2388 = vld [vmem:[#allocation2 + $0xf8] sm:$0xff]
      %v2389 = vld [vmem:[#allocation2 + $0x110] sm:$0xff]
      %v2390 = vld [vmem:[#allocation2 + $0x118] sm:$0xff]
      %v2391 = vld [vmem:[#allocation2 + $0x120] sm:$0xff]
      %v2392 = vld [vmem:[#allocation2 + $0x128] sm:$0xff]
      %v2393 = vld [vmem:[#allocation2 + $0x130] sm:$0xff]
      %v2394 = vld [vmem:[#allocation2 + $0x138] sm:$0xff]
      %v2395 = vld [vmem:[#allocation2 + $0x150] sm:$0xff]
      %v2396 = vld [vmem:[#allocation2 + $0x158] sm:$0xff]
      %v2397 = vld [vmem:[#allocation2 + $0x160] sm:$0xff]
      %v2398 = vld [vmem:[#allocation2 + $0x168] sm:$0xff]
      %v2399 = vld [vmem:[#allocation2 + $0x170] sm:$0xff]
      %v2400 = vld [vmem:[#allocation2 + $0x178] sm:$0xff]
      %v2401 = vld [vmem:[#allocation2 + $0x190] sm:$0xff]
      %v2402 = vld [vmem:[#allocation2 + $0x198] sm:$0xff]
      %v2403 = vld [vmem:[#allocation2 + $0x1a0] sm:$0xff]
      %v2404 = vld [vmem:[#allocation2 + $0x1a8] sm:$0xff]
      %v2405 = vld [vmem:[#allocation2 + $0x1b0] sm:$0xff]
      %v2406 = vld [vmem:[#allocation2 + $0x1b8] sm:$0xff]
      %v2407 = vld [vmem:[#allocation2 + $0x1d0] sm:$0xff]
      %v2408 = vld [vmem:[#allocation2 + $0x1d8] sm:$0xff]
      %v2409 = vld [vmem:[#allocation2 + $0x1e0] sm:$0xff]
      %v2410 = vld [vmem:[#allocation2 + $0x1e8] sm:$0xff]
      %v2411 = vld [vmem:[#allocation2 + $0x1f0] sm:$0xff]
      %v2412 = vld [vmem:[#allocation2 + $0x1f8] sm:$0xff]
      %v2413 = vadd.f32 %v2365, %v1995
      %v2414 = vadd.f32 %v2366, %v2024
      %v2415 = vadd.f32 %v2367, %v2053
      %v2416 = vadd.f32 %v2368, %v2082
      %v2417 = vadd.f32 %v2369, %v2111
      %v2418 = vadd.f32 %v2370, %v2140
      %v2419 = vadd.f32 %v2371, %v1997
      %v2420 = vadd.f32 %v2372, %v2026
      %v2421 = vadd.f32 %v2373, %v2055
      %v2422 = vadd.f32 %v2374, %v2084
      %v2423 = vadd.f32 %v2375, %v2113
      %v2424 = vadd.f32 %v2376, %v2142
      %v2425 = vadd.f32 %v2377, %v2000
      %v2426 = vadd.f32 %v2378, %v2029
      %v2427 = vadd.f32 %v2379, %v2058
      %v2428 = vadd.f32 %v2380, %v2087
      %v2429 = vadd.f32 %v2381, %v2116
      %v2430 = vadd.f32 %v2382, %v2145
      %v2431 = vadd.f32 %v2383, %v2002
      %v2432 = vadd.f32 %v2384, %v2031
      %v2433 = vadd.f32 %v2385, %v2060
      %v2434 = vadd.f32 %v2386, %v2089
      %v2435 = vadd.f32 %v2387, %v2118
      %v2436 = vadd.f32 %v2388, %v2147
      %v2437 = vadd.f32 %v2389, %v2005
      %v2438 = vadd.f32 %v2390, %v2034
      %v2439 = vadd.f32 %v2391, %v2063
      %v2440 = vadd.f32 %v2392, %v2092
      %v2441 = vadd.f32 %v2393, %v2121
      %v2442 = vadd.f32 %v2394, %v2150
      %v2443 = vadd.f32 %v2395, %v2007
      %v2444 = vadd.f32 %v2396, %v2036
      %v2445 = vadd.f32 %v2397, %v2065
      %v2446 = vadd.f32 %v2398, %v2094
      %v2447 = vadd.f32 %v2399, %v2123
      %v2448 = vadd.f32 %v2400, %v2152
      %v2449 = vadd.f32 %v2401, %v2010
      %v2450 = vadd.f32 %v2402, %v2039
      %v2451 = vadd.f32 %v2403, %v2068
      %v2452 = vadd.f32 %v2404, %v2097
      %v2453 = vadd.f32 %v2405, %v2126
      %v2454 = vadd.f32 %v2406, %v2155
      %v2455 = vadd.f32 %v2407, %v2012
      %v2456 = vadd.f32 %v2408, %v2041
      %v2457 = vadd.f32 %v2409, %v2070
      %v2458 = vadd.f32 %v2410, %v2099
      %v2459 = vadd.f32 %v2411, %v2128
      %v2460 = vadd.f32 %v2412, %v2157
      %2461 = vst [vmem:[#allocation2 + $0x10] sm:$0xff] %v2413
      %2462 = vst [vmem:[#allocation2 + $0x18] sm:$0xff] %v2414
      %2463 = vst [vmem:[#allocation2 + $0x20] sm:$0xff] %v2415
      %2464 = vst [vmem:[#allocation2 + $0x28] sm:$0xff] %v2416
      %2465 = vst [vmem:[#allocation2 + $0x30] sm:$0xff] %v2417
      %2466 = vst [vmem:[#allocation2 + $0x38] sm:$0xff] %v2418
      %2467 = vst [vmem:[#allocation2 + $0x50] sm:$0xff] %v2419
      %2468 = vst [vmem:[#allocation2 + $0x58] sm:$0xff] %v2420
      %2469 = vst [vmem:[#allocation2 + $0x60] sm:$0xff] %v2421
      %2470 = vst [vmem:[#allocation2 + $0x68] sm:$0xff] %v2422
      %2471 = vst [vmem:[#allocation2 + $0x70] sm:$0xff] %v2423
      %2472 = vst [vmem:[#allocation2 + $0x78] sm:$0xff] %v2424
      %2473 = vst [vmem:[#allocation2 + $0x90] sm:$0xff] %v2425
      %2474 = vst [vmem:[#allocation2 + $0x98] sm:$0xff] %v2426
      %2475 = vst [vmem:[#allocation2 + $0xa0] sm:$0xff] %v2427
      %2476 = vst [vmem:[#allocation2 + $0xa8] sm:$0xff] %v2428
      %2477 = vst [vmem:[#allocation2 + $0xb0] sm:$0xff] %v2429
      %2478 = vst [vmem:[#allocation2 + $0xb8] sm:$0xff] %v2430
      %2479 = vst [vmem:[#allocation2 + $0xd0] sm:$0xff] %v2431
      %2480 = vst [vmem:[#allocation2 + $0xd8] sm:$0xff] %v2432
      %2481 = vst [vmem:[#allocation2 + $0xe0] sm:$0xff] %v2433
      %2482 = vst [vmem:[#allocation2 + $0xe8] sm:$0xff] %v2434
      %2483 = vst [vmem:[#allocation2 + $0xf0] sm:$0xff] %v2435
      %2484 = vst [vmem:[#allocation2 + $0xf8] sm:$0xff] %v2436
      %2485 = vst [vmem:[#allocation2 + $0x110] sm:$0xff] %v2437
      %2486 = vst [vmem:[#allocation2 + $0x118] sm:$0xff] %v2438
      %2487 = vst [vmem:[#allocation2 + $0x120] sm:$0xff] %v2439
      %2488 = vst [vmem:[#allocation2 + $0x128] sm:$0xff] %v2440
      %2489 = vst [vmem:[#allocation2 + $0x130] sm:$0xff] %v2441
      %2490 = vst [vmem:[#allocation2 + $0x138] sm:$0xff] %v2442
      %2491 = vst [vmem:[#allocation2 + $0x150] sm:$0xff] %v2443
      %2492 = vst [vmem:[#allocation2 + $0x158] sm:$0xff] %v2444
      %2493 = vst [vmem:[#allocation2 + $0x160] sm:$0xff] %v2445
      %2494 = vst [vmem:[#allocation2 + $0x168] sm:$0xff] %v2446
      %2495 = vst [vmem:[#allocation2 + $0x170] sm:$0xff] %v2447
      %2496 = vst [vmem:[#allocation2 + $0x178] sm:$0xff] %v2448
      %2497 = vst [vmem:[#allocation2 + $0x190] sm:$0xff] %v2449
      %2498 = vst [vmem:[#allocation2 + $0x198] sm:$0xff] %v2450
      %2499 = vst [vmem:[#allocation2 + $0x1a0] sm:$0xff] %v2451
      %2500 = vst [vmem:[#allocation2 + $0x1a8] sm:$0xff] %v2452
      %2501 = vst [vmem:[#allocation2 + $0x1b0] sm:$0xff] %v2453
      %2502 = vst [vmem:[#allocation2 + $0x1b8] sm:$0xff] %v2454
      %2503 = vst [vmem:[#allocation2 + $0x1d0] sm:$0xff] %v2455
      %2504 = vst [vmem:[#allocation2 + $0x1d8] sm:$0xff] %v2456
      %2505 = vst [vmem:[#allocation2 + $0x1e0] sm:$0xff] %v2457
      %2506 = vst [vmem:[#allocation2 + $0x1e8] sm:$0xff] %v2458
      %2507 = vst [vmem:[#allocation2 + $0x1f0] sm:$0xff] %v2459
      %2508 = vst [vmem:[#allocation2 + $0x1f8] sm:$0xff] %v2460
      %v2509 = vld [vmem:[#allocation2] sm:$0xff]
      %v2510 = vld [vmem:[#allocation2 + $0x8] sm:$0xff]
      %v2511 = vld [vmem:[#allocation2 + $0x10] sm:$0xff]
      %v2512 = vld [vmem:[#allocation2 + $0x18] sm:$0xff]
      %v2513 = vld [vmem:[#allocation2 + $0x20] sm:$0xff]
      %v2514 = vld [vmem:[#allocation2 + $0x28] sm:$0xff]
      %v2515 = vld [vmem:[#allocation2 + $0x40] sm:$0xff]
      %v2516 = vld [vmem:[#allocation2 + $0x48] sm:$0xff]
      %v2517 = vld [vmem:[#allocation2 + $0x50] sm:$0xff]
      %v2518 = vld [vmem:[#allocation2 + $0x58] sm:$0xff]
      %v2519 = vld [vmem:[#allocation2 + $0x60] sm:$0xff]
      %v2520 = vld [vmem:[#allocation2 + $0x68] sm:$0xff]
      %v2521 = vld [vmem:[#allocation2 + $0x80] sm:$0xff]
      %v2522 = vld [vmem:[#allocation2 + $0x88] sm:$0xff]
      %v2523 = vld [vmem:[#allocation2 + $0x90] sm:$0xff]
      %v2524 = vld [vmem:[#allocation2 + $0x98] sm:$0xff]
      %v2525 = vld [vmem:[#allocation2 + $0xa0] sm:$0xff]
      %v2526 = vld [vmem:[#allocation2 + $0xa8] sm:$0xff]
      %v2527 = vld [vmem:[#allocation2 + $0xc0] sm:$0xff]
      %v2528 = vld [vmem:[#allocation2 + $0xc8] sm:$0xff]
      %v2529 = vld [vmem:[#allocation2 + $0xd0] sm:$0xff]
      %v2530 = vld [vmem:[#allocation2 + $0xd8] sm:$0xff]
      %v2531 = vld [vmem:[#allocation2 + $0xe0] sm:$0xff]
      %v2532 = vld [vmem:[#allocation2 + $0xe8] sm:$0xff]
      %v2533 = vld [vmem:[#allocation2 + $0x100] sm:$0xff]
      %v2534 = vld [vmem:[#allocation2 + $0x108] sm:$0xff]
      %v2535 = vld [vmem:[#allocation2 + $0x110] sm:$0xff]
      %v2536 = vld [vmem:[#allocation2 + $0x118] sm:$0xff]
      %v2537 = vld [vmem:[#allocation2 + $0x120] sm:$0xff]
      %v2538 = vld [vmem:[#allocation2 + $0x128] sm:$0xff]
      %v2539 = vld [vmem:[#allocation2 + $0x140] sm:$0xff]
      %v2540 = vld [vmem:[#allocation2 + $0x148] sm:$0xff]
      %v2541 = vld [vmem:[#allocation2 + $0x150] sm:$0xff]
      %v2542 = vld [vmem:[#allocation2 + $0x158] sm:$0xff]
      %v2543 = vld [vmem:[#allocation2 + $0x160] sm:$0xff]
      %v2544 = vld [vmem:[#allocation2 + $0x168] sm:$0xff]
      %v2545 = vld [vmem:[#allocation2 + $0x180] sm:$0xff]
      %v2546 = vld [vmem:[#allocation2 + $0x188] sm:$0xff]
      %v2547 = vld [vmem:[#allocation2 + $0x190] sm:$0xff]
      %v2548 = vld [vmem:[#allocation2 + $0x198] sm:$0xff]
      %v2549 = vld [vmem:[#allocation2 + $0x1a0] sm:$0xff]
      %v2550 = vld [vmem:[#allocation2 + $0x1a8] sm:$0xff]
      %v2551 = vld [vmem:[#allocation2 + $0x1c0] sm:$0xff]
      %v2552 = vld [vmem:[#allocation2 + $0x1c8] sm:$0xff]
      %v2553 = vld [vmem:[#allocation2 + $0x1d0] sm:$0xff]
      %v2554 = vld [vmem:[#allocation2 + $0x1d8] sm:$0xff]
      %v2555 = vld [vmem:[#allocation2 + $0x1e0] sm:$0xff]
      %v2556 = vld [vmem:[#allocation2 + $0x1e8] sm:$0xff]
      %v2557 = vadd.f32 %v2509, %v2201
      %v2558 = vadd.f32 %v2510, %v2230
      %v2559 = vadd.f32 %v2511, %v2259
      %v2560 = vadd.f32 %v2512, %v2288
      %v2561 = vadd.f32 %v2513, %v2317
      %v2562 = vadd.f32 %v2514, %v2346
      %v2563 = vadd.f32 %v2515, %v2203
      %v2564 = vadd.f32 %v2516, %v2232
      %v2565 = vadd.f32 %v2517, %v2261
      %v2566 = vadd.f32 %v2518, %v2290
      %v2567 = vadd.f32 %v2519, %v2319
      %v2568 = vadd.f32 %v2520, %v2348
      %v2569 = vadd.f32 %v2521, %v2206
      %v2570 = vadd.f32 %v2522, %v2235
      %v2571 = vadd.f32 %v2523, %v2264
      %v2572 = vadd.f32 %v2524, %v2293
      %v2573 = vadd.f32 %v2525, %v2322
      %v2574 = vadd.f32 %v2526, %v2351
      %v2575 = vadd.f32 %v2527, %v2208
      %v2576 = vadd.f32 %v2528, %v2237
      %v2577 = vadd.f32 %v2529, %v2266
      %v2578 = vadd.f32 %v2530, %v2295
      %v2579 = vadd.f32 %v2531, %v2324
      %v2580 = vadd.f32 %v2532, %v2353
      %v2581 = vadd.f32 %v2533, %v2211
      %v2582 = vadd.f32 %v2534, %v2240
      %v2583 = vadd.f32 %v2535, %v2269
      %v2584 = vadd.f32 %v2536, %v2298
      %v2585 = vadd.f32 %v2537, %v2327
      %v2586 = vadd.f32 %v2538, %v2356
      %v2587 = vadd.f32 %v2539, %v2213
      %v2588 = vadd.f32 %v2540, %v2242
      %v2589 = vadd.f32 %v2541, %v2271
      %v2590 = vadd.f32 %v2542, %v2300
      %v2591 = vadd.f32 %v2543, %v2329
      %v2592 = vadd.f32 %v2544, %v2358
      %v2593 = vadd.f32 %v2545, %v2216
      %v2594 = vadd.f32 %v2546, %v2245
      %v2595 = vadd.f32 %v2547, %v2274
      %v2596 = vadd.f32 %v2548, %v2303
      %v2597 = vadd.f32 %v2549, %v2332
      %v2598 = vadd.f32 %v2550, %v2361
      %v2599 = vadd.f32 %v2551, %v2218
      %v2600 = vadd.f32 %v2552, %v2247
      %v2601 = vadd.f32 %v2553, %v2276
      %v2602 = vadd.f32 %v2554, %v2305
      %v2603 = vadd.f32 %v2555, %v2334
      %v2604 = vadd.f32 %v2556, %v2363
      %2605 = vst [vmem:[#allocation2] sm:$0xff] %v2557
      %2606 = vst [vmem:[#allocation2 + $0x8] sm:$0xff] %v2558
      %2607 = vst [vmem:[#allocation2 + $0x10] sm:$0xff] %v2559
      %2608 = vst [vmem:[#allocation2 + $0x18] sm:$0xff] %v2560
      %2609 = vst [vmem:[#allocation2 + $0x20] sm:$0xff] %v2561
      %2610 = vst [vmem:[#allocation2 + $0x28] sm:$0xff] %v2562
      %2611 = vst [vmem:[#allocation2 + $0x40] sm:$0xff] %v2563
      %2612 = vst [vmem:[#allocation2 + $0x48] sm:$0xff] %v2564
      %2613 = vst [vmem:[#allocation2 + $0x50] sm:$0xff] %v2565
      %2614 = vst [vmem:[#allocation2 + $0x58] sm:$0xff] %v2566
      %2615 = vst [vmem:[#allocation2 + $0x60] sm:$0xff] %v2567
      %2616 = vst [vmem:[#allocation2 + $0x68] sm:$0xff] %v2568
      %2617 = vst [vmem:[#allocation2 + $0x80] sm:$0xff] %v2569
      %2618 = vst [vmem:[#allocation2 + $0x88] sm:$0xff] %v2570
      %2619 = vst [vmem:[#allocation2 + $0x90] sm:$0xff] %v2571
      %2620 = vst [vmem:[#allocation2 + $0x98] sm:$0xff] %v2572
      %2621 = vst [vmem:[#allocation2 + $0xa0] sm:$0xff] %v2573
      %2622 = vst [vmem:[#allocation2 + $0xa8] sm:$0xff] %v2574
      %2623 = vst [vmem:[#allocation2 + $0xc0] sm:$0xff] %v2575
      %2624 = vst [vmem:[#allocation2 + $0xc8] sm:$0xff] %v2576
      %2625 = vst [vmem:[#allocation2 + $0xd0] sm:$0xff] %v2577
      %2626 = vst [vmem:[#allocation2 + $0xd8] sm:$0xff] %v2578
      %2627 = vst [vmem:[#allocation2 + $0xe0] sm:$0xff] %v2579
      %2628 = vst [vmem:[#allocation2 + $0xe8] sm:$0xff] %v2580
      %2629 = vst [vmem:[#allocation2 + $0x100] sm:$0xff] %v2581
      %2630 = vst [vmem:[#allocation2 + $0x108] sm:$0xff] %v2582
      %2631 = vst [vmem:[#allocation2 + $0x110] sm:$0xff] %v2583
      %2632 = vst [vmem:[#allocation2 + $0x118] sm:$0xff] %v2584
      %2633 = vst [vmem:[#allocation2 + $0x120] sm:$0xff] %v2585
      %2634 = vst [vmem:[#allocation2 + $0x128] sm:$0xff] %v2586
      %2635 = vst [vmem:[#allocation2 + $0x140] sm:$0xff] %v2587
      %2636 = vst [vmem:[#allocation2 + $0x148] sm:$0xff] %v2588
      %2637 = vst [vmem:[#allocation2 + $0x150] sm:$0xff] %v2589
      %2638 = vst [vmem:[#allocation2 + $0x158] sm:$0xff] %v2590
      %2639 = vst [vmem:[#allocation2 + $0x160] sm:$0xff] %v2591
      %2640 = vst [vmem:[#allocation2 + $0x168] sm:$0xff] %v2592
      %2641 = vst [vmem:[#allocation2 + $0x180] sm:$0xff] %v2593
      %2642 = vst [vmem:[#allocation2 + $0x188] sm:$0xff] %v2594
      %2643 = vst [vmem:[#allocation2 + $0x190] sm:$0xff] %v2595
      %2644 = vst [vmem:[#allocation2 + $0x198] sm:$0xff] %v2596
      %2645 = vst [vmem:[#allocation2 + $0x1a0] sm:$0xff] %v2597
      %2646 = vst [vmem:[#allocation2 + $0x1a8] sm:$0xff] %v2598
      %2647 = vst [vmem:[#allocation2 + $0x1c0] sm:$0xff] %v2599
      %2648 = vst [vmem:[#allocation2 + $0x1c8] sm:$0xff] %v2600
      %2649 = vst [vmem:[#allocation2 + $0x1d0] sm:$0xff] %v2601
      %2650 = vst [vmem:[#allocation2 + $0x1d8] sm:$0xff] %v2602
      %2651 = vst [vmem:[#allocation2 + $0x1e0] sm:$0xff] %v2603
      %2652 = vst [vmem:[#allocation2 + $0x1e8] sm:$0xff] %v2604
      %v2653 = vld [vmem:[#allocation2] sm:$0xff]
      %v2654 = vld [vmem:[#allocation2 + $0x8] sm:$0xff]
      %v2655 = vld [vmem:[#allocation2 + $0x10] sm:$0xff]
      %v2656 = vld [vmem:[#allocation2 + $0x18] sm:$0xff]
      %v2657 = vld [vmem:[#allocation2 + $0x20] sm:$0xff]
      %v2658 = vld [vmem:[#allocation2 + $0x28] sm:$0xff]
      %v2659 = vld [vmem:[#allocation2 + $0x30] sm:$0xff]
      %v2660 = vld [vmem:[#allocation2 + $0x38] sm:$0xff]
      %v2661 = vld [vmem:[#allocation2 + $0x40] sm:$0xff]
      %v2662 = vld [vmem:[#allocation2 + $0x48] sm:$0xff]
      %v2663 = vld [vmem:[#allocation2 + $0x50] sm:$0xff]
      %v2664 = vld [vmem:[#allocation2 + $0x58] sm:$0xff]
      %v2665 = vld [vmem:[#allocation2 + $0x60] sm:$0xff]
      %v2666 = vld [vmem:[#allocation2 + $0x68] sm:$0xff]
      %v2667 = vld [vmem:[#allocation2 + $0x70] sm:$0xff]
      %v2668 = vld [vmem:[#allocation2 + $0x78] sm:$0xff]
      %v2669 = vld [vmem:[#allocation2 + $0x80] sm:$0xff]
      %v2670 = vld [vmem:[#allocation2 + $0x88] sm:$0xff]
      %v2671 = vld [vmem:[#allocation2 + $0x90] sm:$0xff]
      %v2672 = vld [vmem:[#allocation2 + $0x98] sm:$0xff]
      %v2673 = vld [vmem:[#allocation2 + $0xa0] sm:$0xff]
      %v2674 = vld [vmem:[#allocation2 + $0xa8] sm:$0xff]
      %v2675 = vld [vmem:[#allocation2 + $0xb0] sm:$0xff]
      %v2676 = vld [vmem:[#allocation2 + $0xb8] sm:$0xff]
      %v2677 = vld [vmem:[#allocation2 + $0xc0] sm:$0xff]
      %v2678 = vld [vmem:[#allocation2 + $0xc8] sm:$0xff]
      %v2679 = vld [vmem:[#allocation2 + $0xd0] sm:$0xff]
      %v2680 = vld [vmem:[#allocation2 + $0xd8] sm:$0xff]
      %v2681 = vld [vmem:[#allocation2 + $0xe0] sm:$0xff]
      %v2682 = vld [vmem:[#allocation2 + $0xe8] sm:$0xff]
      %v2683 = vld [vmem:[#allocation2 + $0xf0] sm:$0xff]
      %v2684 = vld [vmem:[#allocation2 + $0xf8] sm:$0xff]
      %v2685 = vld [vmem:[#allocation2 + $0x100] sm:$0xff]
      %v2686 = vld [vmem:[#allocation2 + $0x108] sm:$0xff]
      %v2687 = vld [vmem:[#allocation2 + $0x110] sm:$0xff]
      %v2688 = vld [vmem:[#allocation2 + $0x118] sm:$0xff]
      %v2689 = vld [vmem:[#allocation2 + $0x120] sm:$0xff]
      %v2690 = vld [vmem:[#allocation2 + $0x128] sm:$0xff]
      %v2691 = vld [vmem:[#allocation2 + $0x130] sm:$0xff]
      %v2692 = vld [vmem:[#allocation2 + $0x138] sm:$0xff]
      %v2693 = vld [vmem:[#allocation2 + $0x140] sm:$0xff]
      %v2694 = vld [vmem:[#allocation2 + $0x148] sm:$0xff]
      %v2695 = vld [vmem:[#allocation2 + $0x150] sm:$0xff]
      %v2696 = vld [vmem:[#allocation2 + $0x158] sm:$0xff]
      %v2697 = vld [vmem:[#allocation2 + $0x160] sm:$0xff]
      %v2698 = vld [vmem:[#allocation2 + $0x168] sm:$0xff]
      %v2699 = vld [vmem:[#allocation2 + $0x170] sm:$0xff]
      %v2700 = vld [vmem:[#allocation2 + $0x178] sm:$0xff]
      %v2701 = vld [vmem:[#allocation2 + $0x180] sm:$0xff]
      %v2702 = vld [vmem:[#allocation2 + $0x188] sm:$0xff]
      %v2703 = vld [vmem:[#allocation2 + $0x190] sm:$0xff]
      %v2704 = vld [vmem:[#allocation2 + $0x198] sm:$0xff]
      %v2705 = vld [vmem:[#allocation2 + $0x1a0] sm:$0xff]
      %v2706 = vld [vmem:[#allocation2 + $0x1a8] sm:$0xff]
      %v2707 = vld [vmem:[#allocation2 + $0x1b0] sm:$0xff]
      %v2708 = vld [vmem:[#allocation2 + $0x1b8] sm:$0xff]
      %v2709 = vld [vmem:[#allocation2 + $0x1c0] sm:$0xff]
      %v2710 = vld [vmem:[#allocation2 + $0x1c8] sm:$0xff]
      %v2711 = vld [vmem:[#allocation2 + $0x1d0] sm:$0xff]
      %v2712 = vld [vmem:[#allocation2 + $0x1d8] sm:$0xff]
      %v2713 = vld [vmem:[#allocation2 + $0x1e0] sm:$0xff]
      %v2714 = vld [vmem:[#allocation2 + $0x1e8] sm:$0xff]
      %v2715 = vld [vmem:[#allocation2 + $0x1f0] sm:$0xff]
      %v2716 = vld [vmem:[#allocation2 + $0x1f8] sm:$0xff]
      %v2717 = vld [vmem:[%s12] sm:$0xff]
      %v2718 = vld [vmem:[%s12 + $0x8] sm:$0xff]
      %v2719 = vld [vmem:[%s12 + $0x10] sm:$0xff]
      %v2720 = vld [vmem:[%s12 + $0x18] sm:$0xff]
      %v2721 = vld [vmem:[%s12 + $0x20] sm:$0xff]
      %v2722 = vld [vmem:[%s12 + $0x28] sm:$0xff]
      %v2723 = vld [vmem:[%s12 + $0x30] sm:$0xff]
      %v2724 = vld [vmem:[%s12 + $0x38] sm:$0xff]
      %v2725 = vld [vmem:[%s13] sm:$0xff]
      %v2727 = vsel %vm1504, %v2725, 0
      %2729 = vmatpush.msra.mxu0 0.0
      %2730 = vmatpush.msra.mxu0 0.0
      %2731 = vmatpush.msra.mxu0 0.0
      %2732 = vmatpush.msra.mxu0 0.0
      %2733 = vmatpush.msra.mxu0 0.0
      %2734 = vmatpush.msra.mxu0 0.0
      %2735 = vmatpush.msra.mxu0 0.0
      %2736 = vmatpush.msra.mxu0 0.0
      %2737 = vmatpush.msra.mxu0 %v2709
      %2738 = vmatpush.msra.mxu0 %v2701
      %2739 = vmatpush.msra.mxu0 %v2693
      %2740 = vmatpush.msra.mxu0 %v2685
      %2741 = vmatpush.msra.mxu0 %v2677
      %2742 = vmatpush.msra.mxu0 %v2669
      %2743 = vmatpush.msra.mxu0 %v2661
      %2744 = vmatpush.msra.mxu0 %v2653
      %2745 = vmatmul.f32.gmra.mxu0 %v2727
      %v2746 = vpop.f32.mrf.mxu0
      %v2747 = vadd.f32 0.0, %v2746
      %2748 = vdwg.mxu0
      %2749 = vmatpush.msra.mxu0 0.0
      %2750 = vmatpush.msra.mxu0 0.0
      %2751 = vmatpush.msra.mxu0 0.0
      %2752 = vmatpush.msra.mxu0 0.0
      %2753 = vmatpush.msra.mxu0 0.0
      %2754 = vmatpush.msra.mxu0 0.0
      %2755 = vmatpush.msra.mxu0 0.0
      %2756 = vmatpush.msra.mxu0 0.0
      %2757 = vmatpush.msra.mxu0 %v2710
      %2758 = vmatpush.msra.mxu0 %v2702
      %2759 = vmatpush.msra.mxu0 %v2694
      %2760 = vmatpush.msra.mxu0 %v2686
      %2761 = vmatpush.msra.mxu0 %v2678
      %2762 = vmatpush.msra.mxu0 %v2670
      %2763 = vmatpush.msra.mxu0 %v2662
      %2764 = vmatpush.msra.mxu0 %v2654
      %2765 = vmatmul.f32.gmra.mxu0 %v2727
      %v2766 = vpop.f32.mrf.mxu0
      %v2767 = vadd.f32 0.0, %v2766
      %2768 = vdwg.mxu0
      %2769 = vmatpush.msra.mxu0 0.0
      %2770 = vmatpush.msra.mxu0 0.0
      %2771 = vmatpush.msra.mxu0 0.0
      %2772 = vmatpush.msra.mxu0 0.0
      %2773 = vmatpush.msra.mxu0 0.0
      %2774 = vmatpush.msra.mxu0 0.0
      %2775 = vmatpush.msra.mxu0 0.0
      %2776 = vmatpush.msra.mxu0 0.0
      %2777 = vmatpush.msra.mxu0 %v2711
      %2778 = vmatpush.msra.mxu0 %v2703
      %2779 = vmatpush.msra.mxu0 %v2695
      %2780 = vmatpush.msra.mxu0 %v2687
      %2781 = vmatpush.msra.mxu0 %v2679
      %2782 = vmatpush.msra.mxu0 %v2671
      %2783 = vmatpush.msra.mxu0 %v2663
      %2784 = vmatpush.msra.mxu0 %v2655
      %2785 = vmatmul.f32.gmra.mxu0 %v2727
      %v2786 = vpop.f32.mrf.mxu0
      %v2787 = vadd.f32 0.0, %v2786
      %2788 = vdwg.mxu0
      %2789 = vmatpush.msra.mxu0 0.0
      %2790 = vmatpush.msra.mxu0 0.0
      %2791 = vmatpush.msra.mxu0 0.0
      %2792 = vmatpush.msra.mxu0 0.0
      %2793 = vmatpush.msra.mxu0 0.0
      %2794 = vmatpush.msra.mxu0 0.0
      %2795 = vmatpush.msra.mxu0 0.0
      %2796 = vmatpush.msra.mxu0 0.0
      %2797 = vmatpush.msra.mxu0 %v2712
      %2798 = vmatpush.msra.mxu0 %v2704
      %2799 = vmatpush.msra.mxu0 %v2696
      %2800 = vmatpush.msra.mxu0 %v2688
      %2801 = vmatpush.msra.mxu0 %v2680
      %2802 = vmatpush.msra.mxu0 %v2672
      %2803 = vmatpush.msra.mxu0 %v2664
      %2804 = vmatpush.msra.mxu0 %v2656
      %2805 = vmatmul.f32.gmra.mxu0 %v2727
      %v2806 = vpop.f32.mrf.mxu0
      %v2807 = vadd.f32 0.0, %v2806
      %2808 = vdwg.mxu0
      %2809 = vmatpush.msra.mxu0 0.0
      %2810 = vmatpush.msra.mxu0 0.0
      %2811 = vmatpush.msra.mxu0 0.0
      %2812 = vmatpush.msra.mxu0 0.0
      %2813 = vmatpush.msra.mxu0 0.0
      %2814 = vmatpush.msra.mxu0 0.0
      %2815 = vmatpush.msra.mxu0 0.0
      %2816 = vmatpush.msra.mxu0 0.0
      %2817 = vmatpush.msra.mxu0 %v2713
      %2818 = vmatpush.msra.mxu0 %v2705
      %2819 = vmatpush.msra.mxu0 %v2697
      %2820 = vmatpush.msra.mxu0 %v2689
      %2821 = vmatpush.msra.mxu0 %v2681
      %2822 = vmatpush.msra.mxu0 %v2673
      %2823 = vmatpush.msra.mxu0 %v2665
      %2824 = vmatpush.msra.mxu0 %v2657
      %2825 = vmatmul.f32.gmra.mxu0 %v2727
      %v2826 = vpop.f32.mrf.mxu0
      %v2827 = vadd.f32 0.0, %v2826
      %2828 = vdwg.mxu0
      %2829 = vmatpush.msra.mxu0 0.0
      %2830 = vmatpush.msra.mxu0 0.0
      %2831 = vmatpush.msra.mxu0 0.0
      %2832 = vmatpush.msra.mxu0 0.0
      %2833 = vmatpush.msra.mxu0 0.0
      %2834 = vmatpush.msra.mxu0 0.0
      %2835 = vmatpush.msra.mxu0 0.0
      %2836 = vmatpush.msra.mxu0 0.0
      %2837 = vmatpush.msra.mxu0 %v2714
      %2838 = vmatpush.msra.mxu0 %v2706
      %2839 = vmatpush.msra.mxu0 %v2698
      %2840 = vmatpush.msra.mxu0 %v2690
      %2841 = vmatpush.msra.mxu0 %v2682
      %2842 = vmatpush.msra.mxu0 %v2674
      %2843 = vmatpush.msra.mxu0 %v2666
      %2844 = vmatpush.msra.mxu0 %v2658
      %2845 = vmatmul.f32.gmra.mxu0 %v2727
      %v2846 = vpop.f32.mrf.mxu0
      %v2847 = vadd.f32 0.0, %v2846
      %2848 = vdwg.mxu0
      %2849 = vmatpush.msra.mxu0 0.0
      %2850 = vmatpush.msra.mxu0 0.0
      %2851 = vmatpush.msra.mxu0 0.0
      %2852 = vmatpush.msra.mxu0 0.0
      %2853 = vmatpush.msra.mxu0 0.0
      %2854 = vmatpush.msra.mxu0 0.0
      %2855 = vmatpush.msra.mxu0 0.0
      %2856 = vmatpush.msra.mxu0 0.0
      %2857 = vmatpush.msra.mxu0 %v2715
      %2858 = vmatpush.msra.mxu0 %v2707
      %2859 = vmatpush.msra.mxu0 %v2699
      %2860 = vmatpush.msra.mxu0 %v2691
      %2861 = vmatpush.msra.mxu0 %v2683
      %2862 = vmatpush.msra.mxu0 %v2675
      %2863 = vmatpush.msra.mxu0 %v2667
      %2864 = vmatpush.msra.mxu0 %v2659
      %2865 = vmatmul.f32.gmra.mxu0 %v2727
      %v2866 = vpop.f32.mrf.mxu0
      %v2867 = vadd.f32 0.0, %v2866
      %2868 = vdwg.mxu0
      %2869 = vmatpush.msra.mxu0 0.0
      %2870 = vmatpush.msra.mxu0 0.0
      %2871 = vmatpush.msra.mxu0 0.0
      %2872 = vmatpush.msra.mxu0 0.0
      %2873 = vmatpush.msra.mxu0 0.0
      %2874 = vmatpush.msra.mxu0 0.0
      %2875 = vmatpush.msra.mxu0 0.0
      %2876 = vmatpush.msra.mxu0 0.0
      %2877 = vmatpush.msra.mxu0 %v2716
      %2878 = vmatpush.msra.mxu0 %v2708
      %2879 = vmatpush.msra.mxu0 %v2700
      %2880 = vmatpush.msra.mxu0 %v2692
      %2881 = vmatpush.msra.mxu0 %v2684
      %2882 = vmatpush.msra.mxu0 %v2676
      %2883 = vmatpush.msra.mxu0 %v2668
      %2884 = vmatpush.msra.mxu0 %v2660
      %2885 = vmatmul.f32.gmra.mxu0 %v2727
      %v2886 = vpop.f32.mrf.mxu0
      %v2887 = vadd.f32 0.0, %v2886
      %2888 = vdwg.mxu0
      %v2889 = vadd.f32 %v2747, %v2767
      %v2890 = vadd.f32 %v2889, %v2787
      %v2891 = vadd.f32 %v2890, %v2807
      %v2892 = vadd.f32 %v2891, %v2827
      %v2893 = vadd.f32 %v2892, %v2847
      %v2894 = vadd.f32 %v2893, %v2867
      %v2895 = vadd.f32 %v2894, %v2887
      %2896 = vadd.xlane.f32.xlu0 %v2895
      %v2897 = vpop.xlane.xlu0 %2896
      %v2898 = vmul.f32 %v2897, 0.00012207031
      %v2900 = vsel %vm818, %v2717, 0
      %v2903 = vsel %vm818, %v2718, 0
      %v2906 = vsel %vm818, %v2719, 0
      %v2909 = vsel %vm818, %v2720, 0
      %v2912 = vsel %vm818, %v2721, 0
      %v2915 = vsel %vm818, %v2722, 0
      %v2918 = vsel %vm818, %v2723, 0
      %v2921 = vsel %vm818, %v2724, 0
      %2923 = vmatpush.msra.mxu0 0.0
      %2924 = vmatpush.msra.mxu0 0.0
      %2925 = vmatpush.msra.mxu0 0.0
      %2926 = vmatpush.msra.mxu0 0.0
      %2927 = vmatpush.msra.mxu0 0.0
      %2928 = vmatpush.msra.mxu0 0.0
      %2929 = vmatpush.msra.mxu0 0.0
      %2930 = vmatpush.msra.mxu0 0.0
      %2931 = vmatpush.msra.mxu0 0.0
      %2932 = vmatpush.msra.mxu0 0.0
      %2933 = vmatpush.msra.mxu0 0.0
      %2934 = vmatpush.msra.mxu0 0.0
      %2935 = vmatpush.msra.mxu0 0.0
      %2936 = vmatpush.msra.mxu0 0.0
      %2937 = vmatpush.msra.mxu0 0.0
      %2938 = vmatpush.msra.mxu0 %v2898
      %2939 = vmatmul.f32.gmra.mxu0 %v2900
      %v2940 = vpop.f32.mrf.mxu0
      %v2941 = vadd.f32 0.0, %v2940
      %2942 = vmatmul.f32.gmra.mxu0 %v2903
      %v2943 = vpop.f32.mrf.mxu0
      %v2944 = vadd.f32 0.0, %v2943
      %2945 = vmatmul.f32.gmra.mxu0 %v2906
      %v2946 = vpop.f32.mrf.mxu0
      %v2947 = vadd.f32 0.0, %v2946
      %2948 = vmatmul.f32.gmra.mxu0 %v2909
      %v2949 = vpop.f32.mrf.mxu0
      %v2950 = vadd.f32 0.0, %v2949
      %2951 = vmatmul.f32.gmra.mxu0 %v2912
      %v2952 = vpop.f32.mrf.mxu0
      %v2953 = vadd.f32 0.0, %v2952
      %2954 = vmatmul.f32.gmra.mxu0 %v2915
      %v2955 = vpop.f32.mrf.mxu0
      %v2956 = vadd.f32 0.0, %v2955
      %2957 = vmatmul.f32.gmra.mxu0 %v2918
      %v2958 = vpop.f32.mrf.mxu0
      %v2959 = vadd.f32 0.0, %v2958
      %2960 = vmatmul.f32.gmra.mxu0 %v2921
      %v2961 = vpop.f32.mrf.mxu0
      %v2962 = vadd.f32 0.0, %v2961
      %2963 = vdwg.mxu0
      %2965 = vset.pattern.permute.xlu0 0
      %2966 = vperm.xlu0 %2965, %v2941
      %v2967 = vpop.permute.xlu0 %2966
      %2970 = vset.pattern.permute.xlu0 0
      %2971 = vperm.xlu0 %2970, %v2944
      %v2972 = vpop.permute.xlu0 %2971
      %2975 = vset.pattern.permute.xlu0 0
      %2976 = vperm.xlu0 %2975, %v2947
      %v2977 = vpop.permute.xlu0 %2976
      %2980 = vset.pattern.permute.xlu0 0
      %2981 = vperm.xlu0 %2980, %v2950
      %v2982 = vpop.permute.xlu0 %2981
      %2985 = vset.pattern.permute.xlu0 0
      %2986 = vperm.xlu0 %2985, %v2953
      %v2987 = vpop.permute.xlu0 %2986
      %2990 = vset.pattern.permute.xlu0 0
      %2991 = vperm.xlu0 %2990, %v2956
      %v2992 = vpop.permute.xlu0 %2991
      %2995 = vset.pattern.permute.xlu0 0
      %2996 = vperm.xlu0 %2995, %v2959
      %v2997 = vpop.permute.xlu0 %2996
      %3000 = vset.pattern.permute.xlu0 0
      %3001 = vperm.xlu0 %3000, %v2962
      %v3002 = vpop.permute.xlu0 %3001
      %v3004 = vsub.f32 %v2653, %v2967
      %v3005 = vsub.f32 %v2654, %v2967
      %v3006 = vsub.f32 %v2655, %v2967
      %v3007 = vsub.f32 %v2656, %v2967
      %v3008 = vsub.f32 %v2657, %v2967
      %v3009 = vsub.f32 %v2658, %v2967
      %v3010 = vsub.f32 %v2659, %v2967
      %v3011 = vsub.f32 %v2660, %v2967
      %v3012 = vsub.f32 %v2661, %v2972
      %v3013 = vsub.f32 %v2662, %v2972
      %v3014 = vsub.f32 %v2663, %v2972
      %v3015 = vsub.f32 %v2664, %v2972
      %v3016 = vsub.f32 %v2665, %v2972
      %v3017 = vsub.f32 %v2666, %v2972
      %v3018 = vsub.f32 %v2667, %v2972
      %v3019 = vsub.f32 %v2668, %v2972
      %v3020 = vsub.f32 %v2669, %v2977
      %v3021 = vsub.f32 %v2670, %v2977
      %v3022 = vsub.f32 %v2671, %v2977
      %v3023 = vsub.f32 %v2672, %v2977
      %v3024 = vsub.f32 %v2673, %v2977
      %v3025 = vsub.f32 %v2674, %v2977
      %v3026 = vsub.f32 %v2675, %v2977
      %v3027 = vsub.f32 %v2676, %v2977
      %v3028 = vsub.f32 %v2677, %v2982
      %v3029 = vsub.f32 %v2678, %v2982
      %v3030 = vsub.f32 %v2679, %v2982
      %v3031 = vsub.f32 %v2680, %v2982
      %v3032 = vsub.f32 %v2681, %v2982
      %v3033 = vsub.f32 %v2682, %v2982
      %v3034 = vsub.f32 %v2683, %v2982
      %v3035 = vsub.f32 %v2684, %v2982
      %v3036 = vsub.f32 %v2685, %v2987
      %v3037 = vsub.f32 %v2686, %v2987
      %v3038 = vsub.f32 %v2687, %v2987
      %v3039 = vsub.f32 %v2688, %v2987
      %v3040 = vsub.f32 %v2689, %v2987
      %v3041 = vsub.f32 %v2690, %v2987
      %v3042 = vsub.f32 %v2691, %v2987
      %v3043 = vsub.f32 %v2692, %v2987
      %v3044 = vsub.f32 %v2693, %v2992
      %v3045 = vsub.f32 %v2694, %v2992
      %v3046 = vsub.f32 %v2695, %v2992
      %v3047 = vsub.f32 %v2696, %v2992
      %v3048 = vsub.f32 %v2697, %v2992
      %v3049 = vsub.f32 %v2698, %v2992
      %v3050 = vsub.f32 %v2699, %v2992
      %v3051 = vsub.f32 %v2700, %v2992
      %v3052 = vsub.f32 %v2701, %v2997
      %v3053 = vsub.f32 %v2702, %v2997
      %v3054 = vsub.f32 %v2703, %v2997
      %v3055 = vsub.f32 %v2704, %v2997
      %v3056 = vsub.f32 %v2705, %v2997
      %v3057 = vsub.f32 %v2706, %v2997
      %v3058 = vsub.f32 %v2707, %v2997
      %v3059 = vsub.f32 %v2708, %v2997
      %v3060 = vsub.f32 %v2709, %v3002
      %v3061 = vsub.f32 %v2710, %v3002
      %v3062 = vsub.f32 %v2711, %v3002
      %v3063 = vsub.f32 %v2712, %v3002
      %v3064 = vsub.f32 %v2713, %v3002
      %v3065 = vsub.f32 %v2714, %v3002
      %v3066 = vsub.f32 %v2715, %v3002
      %v3067 = vsub.f32 %v2716, %v3002
      %v3068 = vmul.f32 %v3004, %v3004
      %v3069 = vmul.f32 %v3005, %v3005
      %v3070 = vmul.f32 %v3006, %v3006
      %v3071 = vmul.f32 %v3007, %v3007
      %v3072 = vmul.f32 %v3008, %v3008
      %v3073 = vmul.f32 %v3009, %v3009
      %v3074 = vmul.f32 %v3010, %v3010
      %v3075 = vmul.f32 %v3011, %v3011
      %v3076 = vmul.f32 %v3012, %v3012
      %v3077 = vmul.f32 %v3013, %v3013
      %v3078 = vmul.f32 %v3014, %v3014
      %v3079 = vmul.f32 %v3015, %v3015
      %v3080 = vmul.f32 %v3016, %v3016
      %v3081 = vmul.f32 %v3017, %v3017
      %v3082 = vmul.f32 %v3018, %v3018
      %v3083 = vmul.f32 %v3019, %v3019
      %v3084 = vmul.f32 %v3020, %v3020
      %v3085 = vmul.f32 %v3021, %v3021
      %v3086 = vmul.f32 %v3022, %v3022
      %v3087 = vmul.f32 %v3023, %v3023
      %v3088 = vmul.f32 %v3024, %v3024
      %v3089 = vmul.f32 %v3025, %v3025
      %v3090 = vmul.f32 %v3026, %v3026
      %v3091 = vmul.f32 %v3027, %v3027
      %v3092 = vmul.f32 %v3028, %v3028
      %v3093 = vmul.f32 %v3029, %v3029
      %v3094 = vmul.f32 %v3030, %v3030
      %v3095 = vmul.f32 %v3031, %v3031
      %v3096 = vmul.f32 %v3032, %v3032
      %v3097 = vmul.f32 %v3033, %v3033
      %v3098 = vmul.f32 %v3034, %v3034
      %v3099 = vmul.f32 %v3035, %v3035
      %v3100 = vmul.f32 %v3036, %v3036
      %v3101 = vmul.f32 %v3037, %v3037
      %v3102 = vmul.f32 %v3038, %v3038
      %v3103 = vmul.f32 %v3039, %v3039
      %v3104 = vmul.f32 %v3040, %v3040
      %v3105 = vmul.f32 %v3041, %v3041
      %v3106 = vmul.f32 %v3042, %v3042
      %v3107 = vmul.f32 %v3043, %v3043
      %v3108 = vmul.f32 %v3044, %v3044
      %v3109 = vmul.f32 %v3045, %v3045
      %v3110 = vmul.f32 %v3046, %v3046
      %v3111 = vmul.f32 %v3047, %v3047
      %v3112 = vmul.f32 %v3048, %v3048
      %v3113 = vmul.f32 %v3049, %v3049
      %v3114 = vmul.f32 %v3050, %v3050
      %v3115 = vmul.f32 %v3051, %v3051
      %v3116 = vmul.f32 %v3052, %v3052
      %v3117 = vmul.f32 %v3053, %v3053
      %v3118 = vmul.f32 %v3054, %v3054
      %v3119 = vmul.f32 %v3055, %v3055
      %v3120 = vmul.f32 %v3056, %v3056
      %v3121 = vmul.f32 %v3057, %v3057
      %v3122 = vmul.f32 %v3058, %v3058
      %v3123 = vmul.f32 %v3059, %v3059
      %v3124 = vmul.f32 %v3060, %v3060
      %v3125 = vmul.f32 %v3061, %v3061
      %v3126 = vmul.f32 %v3062, %v3062
      %v3127 = vmul.f32 %v3063, %v3063
      %v3128 = vmul.f32 %v3064, %v3064
      %v3129 = vmul.f32 %v3065, %v3065
      %v3130 = vmul.f32 %v3066, %v3066
      %v3131 = vmul.f32 %v3067, %v3067
      %3132 = vmatpush.msra.mxu0 0.0
      %3133 = vmatpush.msra.mxu0 0.0
      %3134 = vmatpush.msra.mxu0 0.0
      %3135 = vmatpush.msra.mxu0 0.0
      %3136 = vmatpush.msra.mxu0 0.0
      %3137 = vmatpush.msra.mxu0 0.0
      %3138 = vmatpush.msra.mxu0 0.0
      %3139 = vmatpush.msra.mxu0 0.0
      %3140 = vmatpush.msra.mxu0 %v3124
      %3141 = vmatpush.msra.mxu0 %v3116
      %3142 = vmatpush.msra.mxu0 %v3108
      %3143 = vmatpush.msra.mxu0 %v3100
      %3144 = vmatpush.msra.mxu0 %v3092
      %3145 = vmatpush.msra.mxu0 %v3084
      %3146 = vmatpush.msra.mxu0 %v3076
      %3147 = vmatpush.msra.mxu0 %v3068
      %3148 = vmatmul.f32.gmra.mxu0 %v2727
      %v3149 = vpop.f32.mrf.mxu0
      %v3150 = vadd.f32 0.0, %v3149
      %3151 = vdwg.mxu0
      %3152 = vmatpush.msra.mxu0 0.0
      %3153 = vmatpush.msra.mxu0 0.0
      %3154 = vmatpush.msra.mxu0 0.0
      %3155 = vmatpush.msra.mxu0 0.0
      %3156 = vmatpush.msra.mxu0 0.0
      %3157 = vmatpush.msra.mxu0 0.0
      %3158 = vmatpush.msra.mxu0 0.0
      %3159 = vmatpush.msra.mxu0 0.0
      %3160 = vmatpush.msra.mxu0 %v3125
      %3161 = vmatpush.msra.mxu0 %v3117
      %3162 = vmatpush.msra.mxu0 %v3109
      %3163 = vmatpush.msra.mxu0 %v3101
      %3164 = vmatpush.msra.mxu0 %v3093
      %3165 = vmatpush.msra.mxu0 %v3085
      %3166 = vmatpush.msra.mxu0 %v3077
      %3167 = vmatpush.msra.mxu0 %v3069
      %3168 = vmatmul.f32.gmra.mxu0 %v2727
      %v3169 = vpop.f32.mrf.mxu0
      %v3170 = vadd.f32 0.0, %v3169
      %3171 = vdwg.mxu0
      %3172 = vmatpush.msra.mxu0 0.0
      %3173 = vmatpush.msra.mxu0 0.0
      %3174 = vmatpush.msra.mxu0 0.0
      %3175 = vmatpush.msra.mxu0 0.0
      %3176 = vmatpush.msra.mxu0 0.0
      %3177 = vmatpush.msra.mxu0 0.0
      %3178 = vmatpush.msra.mxu0 0.0
      %3179 = vmatpush.msra.mxu0 0.0
      %3180 = vmatpush.msra.mxu0 %v3126
      %3181 = vmatpush.msra.mxu0 %v3118
      %3182 = vmatpush.msra.mxu0 %v3110
      %3183 = vmatpush.msra.mxu0 %v3102
      %3184 = vmatpush.msra.mxu0 %v3094
      %3185 = vmatpush.msra.mxu0 %v3086
      %3186 = vmatpush.msra.mxu0 %v3078
      %3187 = vmatpush.msra.mxu0 %v3070
      %3188 = vmatmul.f32.gmra.mxu0 %v2727
      %v3189 = vpop.f32.mrf.mxu0
      %v3190 = vadd.f32 0.0, %v3189
      %3191 = vdwg.mxu0
      %3192 = vmatpush.msra.mxu0 0.0
      %3193 = vmatpush.msra.mxu0 0.0
      %3194 = vmatpush.msra.mxu0 0.0
      %3195 = vmatpush.msra.mxu0 0.0
      %3196 = vmatpush.msra.mxu0 0.0
      %3197 = vmatpush.msra.mxu0 0.0
      %3198 = vmatpush.msra.mxu0 0.0
      %3199 = vmatpush.msra.mxu0 0.0
      %3200 = vmatpush.msra.mxu0 %v3127
      %3201 = vmatpush.msra.mxu0 %v3119
      %3202 = vmatpush.msra.mxu0 %v3111
      %3203 = vmatpush.msra.mxu0 %v3103
      %3204 = vmatpush.msra.mxu0 %v3095
      %3205 = vmatpush.msra.mxu0 %v3087
      %3206 = vmatpush.msra.mxu0 %v3079
      %3207 = vmatpush.msra.mxu0 %v3071
      %3208 = vmatmul.f32.gmra.mxu0 %v2727
      %v3209 = vpop.f32.mrf.mxu0
      %v3210 = vadd.f32 0.0, %v3209
      %3211 = vdwg.mxu0
      %3212 = vmatpush.msra.mxu0 0.0
      %3213 = vmatpush.msra.mxu0 0.0
      %3214 = vmatpush.msra.mxu0 0.0
      %3215 = vmatpush.msra.mxu0 0.0
      %3216 = vmatpush.msra.mxu0 0.0
      %3217 = vmatpush.msra.mxu0 0.0
      %3218 = vmatpush.msra.mxu0 0.0
      %3219 = vmatpush.msra.mxu0 0.0
      %3220 = vmatpush.msra.mxu0 %v3128
      %3221 = vmatpush.msra.mxu0 %v3120
      %3222 = vmatpush.msra.mxu0 %v3112
      %3223 = vmatpush.msra.mxu0 %v3104
      %3224 = vmatpush.msra.mxu0 %v3096
      %3225 = vmatpush.msra.mxu0 %v3088
      %3226 = vmatpush.msra.mxu0 %v3080
      %3227 = vmatpush.msra.mxu0 %v3072
      %3228 = vmatmul.f32.gmra.mxu0 %v2727
      %v3229 = vpop.f32.mrf.mxu0
      %v3230 = vadd.f32 0.0, %v3229
      %3231 = vdwg.mxu0
      %3232 = vmatpush.msra.mxu0 0.0
      %3233 = vmatpush.msra.mxu0 0.0
      %3234 = vmatpush.msra.mxu0 0.0
      %3235 = vmatpush.msra.mxu0 0.0
      %3236 = vmatpush.msra.mxu0 0.0
      %3237 = vmatpush.msra.mxu0 0.0
      %3238 = vmatpush.msra.mxu0 0.0
      %3239 = vmatpush.msra.mxu0 0.0
      %3240 = vmatpush.msra.mxu0 %v3129
      %3241 = vmatpush.msra.mxu0 %v3121
      %3242 = vmatpush.msra.mxu0 %v3113
      %3243 = vmatpush.msra.mxu0 %v3105
      %3244 = vmatpush.msra.mxu0 %v3097
      %3245 = vmatpush.msra.mxu0 %v3089
      %3246 = vmatpush.msra.mxu0 %v3081
      %3247 = vmatpush.msra.mxu0 %v3073
      %3248 = vmatmul.f32.gmra.mxu0 %v2727
      %v3249 = vpop.f32.mrf.mxu0
      %v3250 = vadd.f32 0.0, %v3249
      %3251 = vdwg.mxu0
      %3252 = vmatpush.msra.mxu0 0.0
      %3253 = vmatpush.msra.mxu0 0.0
      %3254 = vmatpush.msra.mxu0 0.0
      %3255 = vmatpush.msra.mxu0 0.0
      %3256 = vmatpush.msra.mxu0 0.0
      %3257 = vmatpush.msra.mxu0 0.0
      %3258 = vmatpush.msra.mxu0 0.0
      %3259 = vmatpush.msra.mxu0 0.0
      %3260 = vmatpush.msra.mxu0 %v3130
      %3261 = vmatpush.msra.mxu0 %v3122
      %3262 = vmatpush.msra.mxu0 %v3114
      %3263 = vmatpush.msra.mxu0 %v3106
      %3264 = vmatpush.msra.mxu0 %v3098
      %3265 = vmatpush.msra.mxu0 %v3090
      %3266 = vmatpush.msra.mxu0 %v3082
      %3267 = vmatpush.msra.mxu0 %v3074
      %3268 = vmatmul.f32.gmra.mxu0 %v2727
      %v3269 = vpop.f32.mrf.mxu0
      %v3270 = vadd.f32 0.0, %v3269
      %3271 = vdwg.mxu0
      %3272 = vmatpush.msra.mxu0 0.0
      %3273 = vmatpush.msra.mxu0 0.0
      %3274 = vmatpush.msra.mxu0 0.0
      %3275 = vmatpush.msra.mxu0 0.0
      %3276 = vmatpush.msra.mxu0 0.0
      %3277 = vmatpush.msra.mxu0 0.0
      %3278 = vmatpush.msra.mxu0 0.0
      %3279 = vmatpush.msra.mxu0 0.0
      %3280 = vmatpush.msra.mxu0 %v3131
      %3281 = vmatpush.msra.mxu0 %v3123
      %3282 = vmatpush.msra.mxu0 %v3115
      %3283 = vmatpush.msra.mxu0 %v3107
      %3284 = vmatpush.msra.mxu0 %v3099
      %3285 = vmatpush.msra.mxu0 %v3091
      %3286 = vmatpush.msra.mxu0 %v3083
      %3287 = vmatpush.msra.mxu0 %v3075
      %3288 = vmatmul.f32.gmra.mxu0 %v2727
      %v3289 = vpop.f32.mrf.mxu0
      %v3290 = vadd.f32 0.0, %v3289
      %3291 = vdwg.mxu0
      %v3292 = vadd.f32 %v3150, %v3170
      %v3293 = vadd.f32 %v3292, %v3190
      %v3294 = vadd.f32 %v3293, %v3210
      %v3295 = vadd.f32 %v3294, %v3230
      %v3296 = vadd.f32 %v3295, %v3250
      %v3297 = vadd.f32 %v3296, %v3270
      %v3298 = vadd.f32 %v3297, %v3290
      %3299 = vadd.xlane.f32.xlu0 %v3298
      %v3300 = vpop.xlane.xlu0 %3299
      %v3301 = vmul.f32 %v3300, 0.00012207031
      %v3302 = vadd.f32 %v3301, 1e-05
      %v3303 = vrsqrt.pop %v3302
      %v3304 = vmul.f32 %v3303, %v3302
      %v3305 = vmul.f32 %v3304, %v3303
      %v3306 = vmul.f32 0.5, %v3305
      %v3307 = vsub.f32 1.5, %v3306
      %v3308 = vmul.f32 %v3303, %v3307
      %vm3309 = vweird.f32 %v3302
      %vm3310 = vweird.f32 %v3303
      %vm3311 = vmor %vm3309, %vm3310
      %v3312 = vsel %vm3311, %v3303, %v3308
      %3313 = vmatpush.msra.mxu0 0.0
      %3314 = vmatpush.msra.mxu0 0.0
      %3315 = vmatpush.msra.mxu0 0.0
      %3316 = vmatpush.msra.mxu0 0.0
      %3317 = vmatpush.msra.mxu0 0.0
      %3318 = vmatpush.msra.mxu0 0.0
      %3319 = vmatpush.msra.mxu0 0.0
      %3320 = vmatpush.msra.mxu0 0.0
      %3321 = vmatpush.msra.mxu0 0.0
      %3322 = vmatpush.msra.mxu0 0.0
      %3323 = vmatpush.msra.mxu0 0.0
      %3324 = vmatpush.msra.mxu0 0.0
      %3325 = vmatpush.msra.mxu0 0.0
      %3326 = vmatpush.msra.mxu0 0.0
      %3327 = vmatpush.msra.mxu0 0.0
      %3328 = vmatpush.msra.mxu0 %v3312
      %3329 = vmatmul.f32.gmra.mxu0 %v2900
      %v3330 = vpop.f32.mrf.mxu0
      %v3331 = vadd.f32 0.0, %v3330
      %3332 = vmatmul.f32.gmra.mxu0 %v2903
      %v3333 = vpop.f32.mrf.mxu0
      %v3334 = vadd.f32 0.0, %v3333
      %3335 = vmatmul.f32.gmra.mxu0 %v2906
      %v3336 = vpop.f32.mrf.mxu0
      %v3337 = vadd.f32 0.0, %v3336
      %3338 = vmatmul.f32.gmra.mxu0 %v2909
      %v3339 = vpop.f32.mrf.mxu0
      %v3340 = vadd.f32 0.0, %v3339
      %3341 = vmatmul.f32.gmra.mxu0 %v2912
      %v3342 = vpop.f32.mrf.mxu0
      %v3343 = vadd.f32 0.0, %v3342
      %3344 = vmatmul.f32.gmra.mxu0 %v2915
      %v3345 = vpop.f32.mrf.mxu0
      %v3346 = vadd.f32 0.0, %v3345
      %3347 = vmatmul.f32.gmra.mxu0 %v2918
      %v3348 = vpop.f32.mrf.mxu0
      %v3349 = vadd.f32 0.0, %v3348
      %3350 = vmatmul.f32.gmra.mxu0 %v2921
      %v3351 = vpop.f32.mrf.mxu0
      %v3352 = vadd.f32 0.0, %v3351
      %3353 = vdwg.mxu0
      %v3354 = vld [vmem:[%s10] sm:$0xff]
      %v3355 = vld [vmem:[%s10 + $0x8] sm:$0xff]
      %v3356 = vld [vmem:[%s10 + $0x10] sm:$0xff]
      %v3357 = vld [vmem:[%s10 + $0x18] sm:$0xff]
      %v3358 = vld [vmem:[%s10 + $0x20] sm:$0xff]
      %v3359 = vld [vmem:[%s10 + $0x28] sm:$0xff]
      %v3360 = vld [vmem:[%s10 + $0x30] sm:$0xff]
      %v3361 = vld [vmem:[%s10 + $0x38] sm:$0xff]
      %v3362 = vmul.f32 %v3331, %v3354
      %v3363 = vmul.f32 %v3334, %v3355
      %v3364 = vmul.f32 %v3337, %v3356
      %v3365 = vmul.f32 %v3340, %v3357
      %v3366 = vmul.f32 %v3343, %v3358
      %v3367 = vmul.f32 %v3346, %v3359
      %v3368 = vmul.f32 %v3349, %v3360
      %v3369 = vmul.f32 %v3352, %v3361
      %3371 = vset.pattern.permute.xlu0 0
      %3372 = vperm.xlu0 %3371, %v3362
      %v3373 = vpop.permute.xlu0 %3372
      %3376 = vset.pattern.permute.xlu0 0
      %3377 = vperm.xlu0 %3376, %v3363
      %v3378 = vpop.permute.xlu0 %3377
      %3381 = vset.pattern.permute.xlu0 0
      %3382 = vperm.xlu0 %3381, %v3364
      %v3383 = vpop.permute.xlu0 %3382
      %3386 = vset.pattern.permute.xlu0 0
      %3387 = vperm.xlu0 %3386, %v3365
      %v3388 = vpop.permute.xlu0 %3387
      %3391 = vset.pattern.permute.xlu0 0
      %3392 = vperm.xlu0 %3391, %v3366
      %v3393 = vpop.permute.xlu0 %3392
      %3396 = vset.pattern.permute.xlu0 0
      %3397 = vperm.xlu0 %3396, %v3367
      %v3398 = vpop.permute.xlu0 %3397
      %3401 = vset.pattern.permute.xlu0 0
      %3402 = vperm.xlu0 %3401, %v3368
      %v3403 = vpop.permute.xlu0 %3402
      %3406 = vset.pattern.permute.xlu0 0
      %3407 = vperm.xlu0 %3406, %v3369
      %v3408 = vpop.permute.xlu0 %3407
      %v3410 = vmul.f32 %v3004, %v3373
      %v3411 = vmul.f32 %v3005, %v3373
      %v3412 = vmul.f32 %v3006, %v3373
      %v3413 = vmul.f32 %v3007, %v3373
      %v3414 = vmul.f32 %v3008, %v3373
      %v3415 = vmul.f32 %v3009, %v3373
      %v3416 = vmul.f32 %v3010, %v3373
      %v3417 = vmul.f32 %v3011, %v3373
      %v3418 = vmul.f32 %v3012, %v3378
      %v3419 = vmul.f32 %v3013, %v3378
      %v3420 = vmul.f32 %v3014, %v3378
      %v3421 = vmul.f32 %v3015, %v3378
      %v3422 = vmul.f32 %v3016, %v3378
      %v3423 = vmul.f32 %v3017, %v3378
      %v3424 = vmul.f32 %v3018, %v3378
      %v3425 = vmul.f32 %v3019, %v3378
      %v3426 = vmul.f32 %v3020, %v3383
      %v3427 = vmul.f32 %v3021, %v3383
      %v3428 = vmul.f32 %v3022, %v3383
      %v3429 = vmul.f32 %v3023, %v3383
      %v3430 = vmul.f32 %v3024, %v3383
      %v3431 = vmul.f32 %v3025, %v3383
      %v3432 = vmul.f32 %v3026, %v3383
      %v3433 = vmul.f32 %v3027, %v3383
      %v3434 = vmul.f32 %v3028, %v3388
      %v3435 = vmul.f32 %v3029, %v3388
      %v3436 = vmul.f32 %v3030, %v3388
      %v3437 = vmul.f32 %v3031, %v3388
      %v3438 = vmul.f32 %v3032, %v3388
      %v3439 = vmul.f32 %v3033, %v3388
      %v3440 = vmul.f32 %v3034, %v3388
      %v3441 = vmul.f32 %v3035, %v3388
      %v3442 = vmul.f32 %v3036, %v3393
      %v3443 = vmul.f32 %v3037, %v3393
      %v3444 = vmul.f32 %v3038, %v3393
      %v3445 = vmul.f32 %v3039, %v3393
      %v3446 = vmul.f32 %v3040, %v3393
      %v3447 = vmul.f32 %v3041, %v3393
      %v3448 = vmul.f32 %v3042, %v3393
      %v3449 = vmul.f32 %v3043, %v3393
      %v3450 = vmul.f32 %v3044, %v3398
      %v3451 = vmul.f32 %v3045, %v3398
      %v3452 = vmul.f32 %v3046, %v3398
      %v3453 = vmul.f32 %v3047, %v3398
      %v3454 = vmul.f32 %v3048, %v3398
      %v3455 = vmul.f32 %v3049, %v3398
      %v3456 = vmul.f32 %v3050, %v3398
      %v3457 = vmul.f32 %v3051, %v3398
      %v3458 = vmul.f32 %v3052, %v3403
      %v3459 = vmul.f32 %v3053, %v3403
      %v3460 = vmul.f32 %v3054, %v3403
      %v3461 = vmul.f32 %v3055, %v3403
      %v3462 = vmul.f32 %v3056, %v3403
      %v3463 = vmul.f32 %v3057, %v3403
      %v3464 = vmul.f32 %v3058, %v3403
      %v3465 = vmul.f32 %v3059, %v3403
      %v3466 = vmul.f32 %v3060, %v3408
      %v3467 = vmul.f32 %v3061, %v3408
      %v3468 = vmul.f32 %v3062, %v3408
      %v3469 = vmul.f32 %v3063, %v3408
      %v3470 = vmul.f32 %v3064, %v3408
      %v3471 = vmul.f32 %v3065, %v3408
      %v3472 = vmul.f32 %v3066, %v3408
      %v3473 = vmul.f32 %v3067, %v3408
      %v3474 = vld [vmem:[%s11] sm:$0xff]
      %v3475 = vld [vmem:[%s11 + $0x8] sm:$0xff]
      %v3476 = vld [vmem:[%s11 + $0x10] sm:$0xff]
      %v3477 = vld [vmem:[%s11 + $0x18] sm:$0xff]
      %v3478 = vld [vmem:[%s11 + $0x20] sm:$0xff]
      %v3479 = vld [vmem:[%s11 + $0x28] sm:$0xff]
      %v3480 = vld [vmem:[%s11 + $0x30] sm:$0xff]
      %v3481 = vld [vmem:[%s11 + $0x38] sm:$0xff]
      %3483 = vset.pattern.permute.xlu0 0
      %3484 = vperm.xlu0 %3483, %v3474
      %v3485 = vpop.permute.xlu0 %3484
      %3488 = vset.pattern.permute.xlu0 0
      %3489 = vperm.xlu0 %3488, %v3475
      %v3490 = vpop.permute.xlu0 %3489
      %3493 = vset.pattern.permute.xlu0 0
      %3494 = vperm.xlu0 %3493, %v3476
      %v3495 = vpop.permute.xlu0 %3494
      %3498 = vset.pattern.permute.xlu0 0
      %3499 = vperm.xlu0 %3498, %v3477
      %v3500 = vpop.permute.xlu0 %3499
      %3503 = vset.pattern.permute.xlu0 0
      %3504 = vperm.xlu0 %3503, %v3478
      %v3505 = vpop.permute.xlu0 %3504
      %3508 = vset.pattern.permute.xlu0 0
      %3509 = vperm.xlu0 %3508, %v3479
      %v3510 = vpop.permute.xlu0 %3509
      %3513 = vset.pattern.permute.xlu0 0
      %3514 = vperm.xlu0 %3513, %v3480
      %v3515 = vpop.permute.xlu0 %3514
      %3518 = vset.pattern.permute.xlu0 0
      %3519 = vperm.xlu0 %3518, %v3481
      %v3520 = vpop.permute.xlu0 %3519
      %v3522 = vadd.f32 %v3410, %v3485
      %v3523 = vadd.f32 %v3411, %v3485
      %v3524 = vadd.f32 %v3412, %v3485
      %v3525 = vadd.f32 %v3413, %v3485
      %v3526 = vadd.f32 %v3414, %v3485
      %v3527 = vadd.f32 %v3415, %v3485
      %v3528 = vadd.f32 %v3416, %v3485
      %v3529 = vadd.f32 %v3417, %v3485
      %v3530 = vadd.f32 %v3418, %v3490
      %v3531 = vadd.f32 %v3419, %v3490
      %v3532 = vadd.f32 %v3420, %v3490
      %v3533 = vadd.f32 %v3421, %v3490
      %v3534 = vadd.f32 %v3422, %v3490
      %v3535 = vadd.f32 %v3423, %v3490
      %v3536 = vadd.f32 %v3424, %v3490
      %v3537 = vadd.f32 %v3425, %v3490
      %v3538 = vadd.f32 %v3426, %v3495
      %v3539 = vadd.f32 %v3427, %v3495
      %v3540 = vadd.f32 %v3428, %v3495
      %v3541 = vadd.f32 %v3429, %v3495
      %v3542 = vadd.f32 %v3430, %v3495
      %v3543 = vadd.f32 %v3431, %v3495
      %v3544 = vadd.f32 %v3432, %v3495
      %v3545 = vadd.f32 %v3433, %v3495
      %v3546 = vadd.f32 %v3434, %v3500
      %v3547 = vadd.f32 %v3435, %v3500
      %v3548 = vadd.f32 %v3436, %v3500
      %v3549 = vadd.f32 %v3437, %v3500
      %v3550 = vadd.f32 %v3438, %v3500
      %v3551 = vadd.f32 %v3439, %v3500
      %v3552 = vadd.f32 %v3440, %v3500
      %v3553 = vadd.f32 %v3441, %v3500
      %v3554 = vadd.f32 %v3442, %v3505
      %v3555 = vadd.f32 %v3443, %v3505
      %v3556 = vadd.f32 %v3444, %v3505
      %v3557 = vadd.f32 %v3445, %v3505
      %v3558 = vadd.f32 %v3446, %v3505
      %v3559 = vadd.f32 %v3447, %v3505
      %v3560 = vadd.f32 %v3448, %v3505
      %v3561 = vadd.f32 %v3449, %v3505
      %v3562 = vadd.f32 %v3450, %v3510
      %v3563 = vadd.f32 %v3451, %v3510
      %v3564 = vadd.f32 %v3452, %v3510
      %v3565 = vadd.f32 %v3453, %v3510
      %v3566 = vadd.f32 %v3454, %v3510
      %v3567 = vadd.f32 %v3455, %v3510
      %v3568 = vadd.f32 %v3456, %v3510
      %v3569 = vadd.f32 %v3457, %v3510
      %v3570 = vadd.f32 %v3458, %v3515
      %v3571 = vadd.f32 %v3459, %v3515
      %v3572 = vadd.f32 %v3460, %v3515
      %v3573 = vadd.f32 %v3461, %v3515
      %v3574 = vadd.f32 %v3462, %v3515
      %v3575 = vadd.f32 %v3463, %v3515
      %v3576 = vadd.f32 %v3464, %v3515
      %v3577 = vadd.f32 %v3465, %v3515
      %v3578 = vadd.f32 %v3466, %v3520
      %v3579 = vadd.f32 %v3467, %v3520
      %v3580 = vadd.f32 %v3468, %v3520
      %v3581 = vadd.f32 %v3469, %v3520
      %v3582 = vadd.f32 %v3470, %v3520
      %v3583 = vadd.f32 %v3471, %v3520
      %v3584 = vadd.f32 %v3472, %v3520
      %v3585 = vadd.f32 %v3473, %v3520
      %v3586 = vsub.f32 0.0, %v3522
      %v3587 = vsub.f32 0.0, %v3523
      %v3588 = vsub.f32 0.0, %v3524
      %v3589 = vsub.f32 0.0, %v3525
      %v3590 = vsub.f32 0.0, %v3526
      %v3591 = vsub.f32 0.0, %v3527
      %v3592 = vsub.f32 0.0, %v3528
      %v3593 = vsub.f32 0.0, %v3529
      %v3594 = vsub.f32 0.0, %v3530
      %v3595 = vsub.f32 0.0, %v3531
      %v3596 = vsub.f32 0.0, %v3532
      %v3597 = vsub.f32 0.0, %v3533
      %v3598 = vsub.f32 0.0, %v3534
      %v3599 = vsub.f32 0.0, %v3535
      %v3600 = vsub.f32 0.0, %v3536
      %v3601 = vsub.f32 0.0, %v3537
      %v3602 = vsub.f32 0.0, %v3538
      %v3603 = vsub.f32 0.0, %v3539
      %v3604 = vsub.f32 0.0, %v3540
      %v3605 = vsub.f32 0.0, %v3541
      %v3606 = vsub.f32 0.0, %v3542
      %v3607 = vsub.f32 0.0, %v3543
      %v3608 = vsub.f32 0.0, %v3544
      %v3609 = vsub.f32 0.0, %v3545
      %v3610 = vsub.f32 0.0, %v3546
      %v3611 = vsub.f32 0.0, %v3547
      %v3612 = vsub.f32 0.0, %v3548
      %v3613 = vsub.f32 0.0, %v3549
      %v3614 = vsub.f32 0.0, %v3550
      %v3615 = vsub.f32 0.0, %v3551
      %v3616 = vsub.f32 0.0, %v3552
      %v3617 = vsub.f32 0.0, %v3553
      %v3618 = vsub.f32 0.0, %v3554
      %v3619 = vsub.f32 0.0, %v3555
      %v3620 = vsub.f32 0.0, %v3556
      %v3621 = vsub.f32 0.0, %v3557
      %v3622 = vsub.f32 0.0, %v3558
      %v3623 = vsub.f32 0.0, %v3559
      %v3624 = vsub.f32 0.0, %v3560
      %v3625 = vsub.f32 0.0, %v3561
      %v3626 = vsub.f32 0.0, %v3562
      %v3627 = vsub.f32 0.0, %v3563
      %v3628 = vsub.f32 0.0, %v3564
      %v3629 = vsub.f32 0.0, %v3565
      %v3630 = vsub.f32 0.0, %v3566
      %v3631 = vsub.f32 0.0, %v3567
      %v3632 = vsub.f32 0.0, %v3568
      %v3633 = vsub.f32 0.0, %v3569
      %v3634 = vsub.f32 0.0, %v3570
      %v3635 = vsub.f32 0.0, %v3571
      %v3636 = vsub.f32 0.0, %v3572
      %v3637 = vsub.f32 0.0, %v3573
      %v3638 = vsub.f32 0.0, %v3574
      %v3639 = vsub.f32 0.0, %v3575
      %v3640 = vsub.f32 0.0, %v3576
      %v3641 = vsub.f32 0.0, %v3577
      %v3642 = vsub.f32 0.0, %v3578
      %v3643 = vsub.f32 0.0, %v3579
      %v3644 = vsub.f32 0.0, %v3580
      %v3645 = vsub.f32 0.0, %v3581
      %v3646 = vsub.f32 0.0, %v3582
      %v3647 = vsub.f32 0.0, %v3583
      %v3648 = vsub.f32 0.0, %v3584
      %v3649 = vsub.f32 0.0, %v3585
      %v3650 = vmul.f32 %v3586, 1.442695
      %v3651 = vpow.pop %v3650
      %v3652 = vmul.f32 %v3587, 1.442695
      %v3653 = vpow.pop %v3652
      %v3654 = vmul.f32 %v3588, 1.442695
      %v3655 = vpow.pop %v3654
      %v3656 = vmul.f32 %v3589, 1.442695
      %v3657 = vpow.pop %v3656
      %v3658 = vmul.f32 %v3590, 1.442695
      %v3659 = vpow.pop %v3658
      %v3660 = vmul.f32 %v3591, 1.442695
      %v3661 = vpow.pop %v3660
      %v3662 = vmul.f32 %v3592, 1.442695
      %v3663 = vpow.pop %v3662
      %v3664 = vmul.f32 %v3593, 1.442695
      %v3665 = vpow.pop %v3664
      %v3666 = vmul.f32 %v3594, 1.442695
      %v3667 = vpow.pop %v3666
      %v3668 = vmul.f32 %v3595, 1.442695
      %v3669 = vpow.pop %v3668
      %v3670 = vmul.f32 %v3596, 1.442695
      %v3671 = vpow.pop %v3670
      %v3672 = vmul.f32 %v3597, 1.442695
      %v3673 = vpow.pop %v3672
      %v3674 = vmul.f32 %v3598, 1.442695
      %v3675 = vpow.pop %v3674
      %v3676 = vmul.f32 %v3599, 1.442695
      %v3677 = vpow.pop %v3676
      %v3678 = vmul.f32 %v3600, 1.442695
      %v3679 = vpow.pop %v3678
      %v3680 = vmul.f32 %v3601, 1.442695
      %v3681 = vpow.pop %v3680
      %v3682 = vmul.f32 %v3602, 1.442695
      %v3683 = vpow.pop %v3682
      %v3684 = vmul.f32 %v3603, 1.442695
      %v3685 = vpow.pop %v3684
      %v3686 = vmul.f32 %v3604, 1.442695
      %v3687 = vpow.pop %v3686
      %v3688 = vmul.f32 %v3605, 1.442695
      %v3689 = vpow.pop %v3688
      %v3690 = vmul.f32 %v3606, 1.442695
      %v3691 = vpow.pop %v3690
      %v3692 = vmul.f32 %v3607, 1.442695
      %v3693 = vpow.pop %v3692
      %v3694 = vmul.f32 %v3608, 1.442695
      %v3695 = vpow.pop %v3694
      %v3696 = vmul.f32 %v3609, 1.442695
      %v3697 = vpow.pop %v3696
      %v3698 = vmul.f32 %v3610, 1.442695
      %v3699 = vpow.pop %v3698
      %v3700 = vmul.f32 %v3611, 1.442695
      %v3701 = vpow.pop %v3700
      %v3702 = vmul.f32 %v3612, 1.442695
      %v3703 = vpow.pop %v3702
      %v3704 = vmul.f32 %v3613, 1.442695
      %v3705 = vpow.pop %v3704
      %v3706 = vmul.f32 %v3614, 1.442695
      %v3707 = vpow.pop %v3706
      %v3708 = vmul.f32 %v3615, 1.442695
      %v3709 = vpow.pop %v3708
      %v3710 = vmul.f32 %v3616, 1.442695
      %v3711 = vpow.pop %v3710
      %v3712 = vmul.f32 %v3617, 1.442695
      %v3713 = vpow.pop %v3712
      %v3714 = vmul.f32 %v3618, 1.442695
      %v3715 = vpow.pop %v3714
      %v3716 = vmul.f32 %v3619, 1.442695
      %v3717 = vpow.pop %v3716
      %v3718 = vmul.f32 %v3620, 1.442695
      %v3719 = vpow.pop %v3718
      %v3720 = vmul.f32 %v3621, 1.442695
      %v3721 = vpow.pop %v3720
      %v3722 = vmul.f32 %v3622, 1.442695
      %v3723 = vpow.pop %v3722
      %v3724 = vmul.f32 %v3623, 1.442695
      %v3725 = vpow.pop %v3724
      %v3726 = vmul.f32 %v3624, 1.442695
      %v3727 = vpow.pop %v3726
      %v3728 = vmul.f32 %v3625, 1.442695
      %v3729 = vpow.pop %v3728
      %v3730 = vmul.f32 %v3626, 1.442695
      %v3731 = vpow.pop %v3730
      %v3732 = vmul.f32 %v3627, 1.442695
      %v3733 = vpow.pop %v3732
      %v3734 = vmul.f32 %v3628, 1.442695
      %v3735 = vpow.pop %v3734
      %v3736 = vmul.f32 %v3629, 1.442695
      %v3737 = vpow.pop %v3736
      %v3738 = vmul.f32 %v3630, 1.442695
      %v3739 = vpow.pop %v3738
      %v3740 = vmul.f32 %v3631, 1.442695
      %v3741 = vpow.pop %v3740
      %v3742 = vmul.f32 %v3632, 1.442695
      %v3743 = vpow.pop %v3742
      %v3744 = vmul.f32 %v3633, 1.442695
      %v3745 = vpow.pop %v3744
      %v3746 = vmul.f32 %v3634, 1.442695
      %v3747 = vpow.pop %v3746
      %v3748 = vmul.f32 %v3635, 1.442695
      %v3749 = vpow.pop %v3748
      %v3750 = vmul.f32 %v3636, 1.442695
      %v3751 = vpow.pop %v3750
      %v3752 = vmul.f32 %v3637, 1.442695
      %v3753 = vpow.pop %v3752
      %v3754 = vmul.f32 %v3638, 1.442695
      %v3755 = vpow.pop %v3754
      %v3756 = vmul.f32 %v3639, 1.442695
      %v3757 = vpow.pop %v3756
      %v3758 = vmul.f32 %v3640, 1.442695
      %v3759 = vpow.pop %v3758
      %v3760 = vmul.f32 %v3641, 1.442695
      %v3761 = vpow.pop %v3760
      %v3762 = vmul.f32 %v3642, 1.442695
      %v3763 = vpow.pop %v3762
      %v3764 = vmul.f32 %v3643, 1.442695
      %v3765 = vpow.pop %v3764
      %v3766 = vmul.f32 %v3644, 1.442695
      %v3767 = vpow.pop %v3766
      %v3768 = vmul.f32 %v3645, 1.442695
      %v3769 = vpow.pop %v3768
      %v3770 = vmul.f32 %v3646, 1.442695
      %v3771 = vpow.pop %v3770
      %v3772 = vmul.f32 %v3647, 1.442695
      %v3773 = vpow.pop %v3772
      %v3774 = vmul.f32 %v3648, 1.442695
      %v3775 = vpow.pop %v3774
      %v3776 = vmul.f32 %v3649, 1.442695
      %v3777 = vpow.pop %v3776
      %v3778 = vadd.f32 %v3651, 1.0
      %v3779 = vadd.f32 %v3653, 1.0
      %v3780 = vadd.f32 %v3655, 1.0
      %v3781 = vadd.f32 %v3657, 1.0
      %v3782 = vadd.f32 %v3659, 1.0
      %v3783 = vadd.f32 %v3661, 1.0
      %v3784 = vadd.f32 %v3663, 1.0
      %v3785 = vadd.f32 %v3665, 1.0
      %v3786 = vadd.f32 %v3667, 1.0
      %v3787 = vadd.f32 %v3669, 1.0
      %v3788 = vadd.f32 %v3671, 1.0
      %v3789 = vadd.f32 %v3673, 1.0
      %v3790 = vadd.f32 %v3675, 1.0
      %v3791 = vadd.f32 %v3677, 1.0
      %v3792 = vadd.f32 %v3679, 1.0
      %v3793 = vadd.f32 %v3681, 1.0
      %v3794 = vadd.f32 %v3683, 1.0
      %v3795 = vadd.f32 %v3685, 1.0
      %v3796 = vadd.f32 %v3687, 1.0
      %v3797 = vadd.f32 %v3689, 1.0
      %v3798 = vadd.f32 %v3691, 1.0
      %v3799 = vadd.f32 %v3693, 1.0
      %v3800 = vadd.f32 %v3695, 1.0
      %v3801 = vadd.f32 %v3697, 1.0
      %v3802 = vadd.f32 %v3699, 1.0
      %v3803 = vadd.f32 %v3701, 1.0
      %v3804 = vadd.f32 %v3703, 1.0
      %v3805 = vadd.f32 %v3705, 1.0
      %v3806 = vadd.f32 %v3707, 1.0
      %v3807 = vadd.f32 %v3709, 1.0
      %v3808 = vadd.f32 %v3711, 1.0
      %v3809 = vadd.f32 %v3713, 1.0
      %v3810 = vadd.f32 %v3715, 1.0
      %v3811 = vadd.f32 %v3717, 1.0
      %v3812 = vadd.f32 %v3719, 1.0
      %v3813 = vadd.f32 %v3721, 1.0
      %v3814 = vadd.f32 %v3723, 1.0
      %v3815 = vadd.f32 %v3725, 1.0
      %v3816 = vadd.f32 %v3727, 1.0
      %v3817 = vadd.f32 %v3729, 1.0
      %v3818 = vadd.f32 %v3731, 1.0
      %v3819 = vadd.f32 %v3733, 1.0
      %v3820 = vadd.f32 %v3735, 1.0
      %v3821 = vadd.f32 %v3737, 1.0
      %v3822 = vadd.f32 %v3739, 1.0
      %v3823 = vadd.f32 %v3741, 1.0
      %v3824 = vadd.f32 %v3743, 1.0
      %v3825 = vadd.f32 %v3745, 1.0
      %v3826 = vadd.f32 %v3747, 1.0
      %v3827 = vadd.f32 %v3749, 1.0
      %v3828 = vadd.f32 %v3751, 1.0
      %v3829 = vadd.f32 %v3753, 1.0
      %v3830 = vadd.f32 %v3755, 1.0
      %v3831 = vadd.f32 %v3757, 1.0
      %v3832 = vadd.f32 %v3759, 1.0
      %v3833 = vadd.f32 %v3761, 1.0
      %v3834 = vadd.f32 %v3763, 1.0
      %v3835 = vadd.f32 %v3765, 1.0
      %v3836 = vadd.f32 %v3767, 1.0
      %v3837 = vadd.f32 %v3769, 1.0
      %v3838 = vadd.f32 %v3771, 1.0
      %v3839 = vadd.f32 %v3773, 1.0
      %v3840 = vadd.f32 %v3775, 1.0
      %v3841 = vadd.f32 %v3777, 1.0
      %v3842 = vrcp.pop %v3778
      %v3843 = vrcp.pop %v3779
      %v3844 = vrcp.pop %v3780
      %v3845 = vrcp.pop %v3781
      %v3846 = vrcp.pop %v3782
      %v3847 = vrcp.pop %v3783
      %v3848 = vrcp.pop %v3784
      %v3849 = vrcp.pop %v3785
      %v3850 = vrcp.pop %v3786
      %v3851 = vrcp.pop %v3787
      %v3852 = vrcp.pop %v3788
      %v3853 = vrcp.pop %v3789
      %v3854 = vrcp.pop %v3790
      %v3855 = vrcp.pop %v3791
      %v3856 = vrcp.pop %v3792
      %v3857 = vrcp.pop %v3793
      %v3858 = vrcp.pop %v3794
      %v3859 = vrcp.pop %v3795
      %v3860 = vrcp.pop %v3796
      %v3861 = vrcp.pop %v3797
      %v3862 = vrcp.pop %v3798
      %v3863 = vrcp.pop %v3799
      %v3864 = vrcp.pop %v3800
      %v3865 = vrcp.pop %v3801
      %v3866 = vrcp.pop %v3802
      %v3867 = vrcp.pop %v3803
      %v3868 = vrcp.pop %v3804
      %v3869 = vrcp.pop %v3805
      %v3870 = vrcp.pop %v3806
      %v3871 = vrcp.pop %v3807
      %v3872 = vrcp.pop %v3808
      %v3873 = vrcp.pop %v3809
      %v3874 = vrcp.pop %v3810
      %v3875 = vrcp.pop %v3811
      %v3876 = vrcp.pop %v3812
      %v3877 = vrcp.pop %v3813
      %v3878 = vrcp.pop %v3814
      %v3879 = vrcp.pop %v3815
      %v3880 = vrcp.pop %v3816
      %v3881 = vrcp.pop %v3817
      %v3882 = vrcp.pop %v3818
      %v3883 = vrcp.pop %v3819
      %v3884 = vrcp.pop %v3820
      %v3885 = vrcp.pop %v3821
      %v3886 = vrcp.pop %v3822
      %v3887 = vrcp.pop %v3823
      %v3888 = vrcp.pop %v3824
      %v3889 = vrcp.pop %v3825
      %v3890 = vrcp.pop %v3826
      %v3891 = vrcp.pop %v3827
      %v3892 = vrcp.pop %v3828
      %v3893 = vrcp.pop %v3829
      %v3894 = vrcp.pop %v3830
      %v3895 = vrcp.pop %v3831
      %v3896 = vrcp.pop %v3832
      %v3897 = vrcp.pop %v3833
      %v3898 = vrcp.pop %v3834
      %v3899 = vrcp.pop %v3835
      %v3900 = vrcp.pop %v3836
      %v3901 = vrcp.pop %v3837
      %v3902 = vrcp.pop %v3838
      %v3903 = vrcp.pop %v3839
      %v3904 = vrcp.pop %v3840
      %v3905 = vrcp.pop %v3841
      %v3906 = vmul.f32 %v3522, %v3842
      %v3907 = vmul.f32 %v3523, %v3843
      %v3908 = vmul.f32 %v3524, %v3844
      %v3909 = vmul.f32 %v3525, %v3845
      %v3910 = vmul.f32 %v3526, %v3846
      %v3911 = vmul.f32 %v3527, %v3847
      %v3912 = vmul.f32 %v3528, %v3848
      %v3913 = vmul.f32 %v3529, %v3849
      %v3914 = vmul.f32 %v3530, %v3850
      %v3915 = vmul.f32 %v3531, %v3851
      %v3916 = vmul.f32 %v3532, %v3852
      %v3917 = vmul.f32 %v3533, %v3853
      %v3918 = vmul.f32 %v3534, %v3854
      %v3919 = vmul.f32 %v3535, %v3855
      %v3920 = vmul.f32 %v3536, %v3856
      %v3921 = vmul.f32 %v3537, %v3857
      %v3922 = vmul.f32 %v3538, %v3858
      %v3923 = vmul.f32 %v3539, %v3859
      %v3924 = vmul.f32 %v3540, %v3860
      %v3925 = vmul.f32 %v3541, %v3861
      %v3926 = vmul.f32 %v3542, %v3862
      %v3927 = vmul.f32 %v3543, %v3863
      %v3928 = vmul.f32 %v3544, %v3864
      %v3929 = vmul.f32 %v3545, %v3865
      %v3930 = vmul.f32 %v3546, %v3866
      %v3931 = vmul.f32 %v3547, %v3867
      %v3932 = vmul.f32 %v3548, %v3868
      %v3933 = vmul.f32 %v3549, %v3869
      %v3934 = vmul.f32 %v3550, %v3870
      %v3935 = vmul.f32 %v3551, %v3871
      %v3936 = vmul.f32 %v3552, %v3872
      %v3937 = vmul.f32 %v3553, %v3873
      %v3938 = vmul.f32 %v3554, %v3874
      %v3939 = vmul.f32 %v3555, %v3875
      %v3940 = vmul.f32 %v3556, %v3876
      %v3941 = vmul.f32 %v3557, %v3877
      %v3942 = vmul.f32 %v3558, %v3878
      %v3943 = vmul.f32 %v3559, %v3879
      %v3944 = vmul.f32 %v3560, %v3880
      %v3945 = vmul.f32 %v3561, %v3881
      %v3946 = vmul.f32 %v3562, %v3882
      %v3947 = vmul.f32 %v3563, %v3883
      %v3948 = vmul.f32 %v3564, %v3884
      %v3949 = vmul.f32 %v3565, %v3885
      %v3950 = vmul.f32 %v3566, %v3886
      %v3951 = vmul.f32 %v3567, %v3887
      %v3952 = vmul.f32 %v3568, %v3888
      %v3953 = vmul.f32 %v3569, %v3889
      %v3954 = vmul.f32 %v3570, %v3890
      %v3955 = vmul.f32 %v3571, %v3891
      %v3956 = vmul.f32 %v3572, %v3892
      %v3957 = vmul.f32 %v3573, %v3893
      %v3958 = vmul.f32 %v3574, %v3894
      %v3959 = vmul.f32 %v3575, %v3895
      %v3960 = vmul.f32 %v3576, %v3896
      %v3961 = vmul.f32 %v3577, %v3897
      %v3962 = vmul.f32 %v3578, %v3898
      %v3963 = vmul.f32 %v3579, %v3899
      %v3964 = vmul.f32 %v3580, %v3900
      %v3965 = vmul.f32 %v3581, %v3901
      %v3966 = vmul.f32 %v3582, %v3902
      %v3967 = vmul.f32 %v3583, %v3903
      %v3968 = vmul.f32 %v3584, %v3904
      %v3969 = vmul.f32 %v3585, %v3905
      %v3970 = vpack.c.bf16 %v3914, %v3906
      %v3971 = vpack.c.bf16 %v3915, %v3907
      %v3972 = vpack.c.bf16 %v3916, %v3908
      %v3973 = vpack.c.bf16 %v3917, %v3909
      %v3974 = vpack.c.bf16 %v3918, %v3910
      %v3975 = vpack.c.bf16 %v3919, %v3911
      %v3976 = vpack.c.bf16 %v3920, %v3912
      %v3977 = vpack.c.bf16 %v3921, %v3913
      %v3978 = vpack.c.bf16 %v3930, %v3922
      %v3979 = vpack.c.bf16 %v3931, %v3923
      %v3980 = vpack.c.bf16 %v3932, %v3924
      %v3981 = vpack.c.bf16 %v3933, %v3925
      %v3982 = vpack.c.bf16 %v3934, %v3926
      %v3983 = vpack.c.bf16 %v3935, %v3927
      %v3984 = vpack.c.bf16 %v3936, %v3928
      %v3985 = vpack.c.bf16 %v3937, %v3929
      %v3986 = vpack.c.bf16 %v3946, %v3938
      %v3987 = vpack.c.bf16 %v3947, %v3939
      %v3988 = vpack.c.bf16 %v3948, %v3940
      %v3989 = vpack.c.bf16 %v3949, %v3941
      %v3990 = vpack.c.bf16 %v3950, %v3942
      %v3991 = vpack.c.bf16 %v3951, %v3943
      %v3992 = vpack.c.bf16 %v3952, %v3944
      %v3993 = vpack.c.bf16 %v3953, %v3945
      %v3994 = vpack.c.bf16 %v3962, %v3954
      %v3995 = vpack.c.bf16 %v3963, %v3955
      %v3996 = vpack.c.bf16 %v3964, %v3956
      %v3997 = vpack.c.bf16 %v3965, %v3957
      %v3998 = vpack.c.bf16 %v3966, %v3958
      %v3999 = vpack.c.bf16 %v3967, %v3959
      %v4000 = vpack.c.bf16 %v3968, %v3960
      %v4001 = vpack.c.bf16 %v3969, %v3961
      %v4002 = vld [vmem:[%s15] sm:$0xff]
      %v4003 = vld [vmem:[%s15 + $0x8] sm:$0xff]
      %v4004 = vld [vmem:[%s15 + $0x10] sm:$0xff]
      %v4005 = vld [vmem:[%s15 + $0x18] sm:$0xff]
      %v4006 = vld [vmem:[%s15 + $0x20] sm:$0xff]
      %v4007 = vld [vmem:[%s15 + $0x28] sm:$0xff]
      %v4008 = vld [vmem:[%s15 + $0x30] sm:$0xff]
      %v4009 = vld [vmem:[%s15 + $0x38] sm:$0xff]
      %v4010 = vld [vmem:[%s14] sm:$0xf]
      %v4011 = vld [vmem:[%s14 + $0x4] sm:$0xf]
      %v4012 = vld [vmem:[%s14 + $0x8] sm:$0xf]
      %v4013 = vld [vmem:[%s14 + $0xc] sm:$0xf]
      %v4014 = vld [vmem:[%s14 + $0x10] sm:$0xf]
      %v4015 = vld [vmem:[%s14 + $0x14] sm:$0xf]
      %v4016 = vld [vmem:[%s14 + $0x18] sm:$0xf]
      %v4017 = vld [vmem:[%s14 + $0x1c] sm:$0xf]
      %v4018 = vld [vmem:[%s14 + $0x20] sm:$0xf]
      %v4019 = vld [vmem:[%s14 + $0x24] sm:$0xf]
      %v4020 = vld [vmem:[%s14 + $0x28] sm:$0xf]
      %v4021 = vld [vmem:[%s14 + $0x2c] sm:$0xf]
      %v4022 = vld [vmem:[%s14 + $0x30] sm:$0xf]
      %v4023 = vld [vmem:[%s14 + $0x34] sm:$0xf]
      %v4024 = vld [vmem:[%s14 + $0x38] sm:$0xf]
      %v4025 = vld [vmem:[%s14 + $0x3c] sm:$0xf]
      %v4026 = vld [vmem:[%s14 + $0x40] sm:$0xf]
      %v4027 = vld [vmem:[%s14 + $0x44] sm:$0xf]
      %v4028 = vld [vmem:[%s14 + $0x48] sm:$0xf]
      %v4029 = vld [vmem:[%s14 + $0x4c] sm:$0xf]
      %v4030 = vld [vmem:[%s14 + $0x50] sm:$0xf]
      %v4031 = vld [vmem:[%s14 + $0x54] sm:$0xf]
      %v4032 = vld [vmem:[%s14 + $0x58] sm:$0xf]
      %v4033 = vld [vmem:[%s14 + $0x5c] sm:$0xf]
      %4035 = vset.pattern.permute.xlu0 0
      %4036 = vperm.xlu0 %4035, %v4002
      %v4037 = vpop.permute.xlu0 %4036
      %4040 = vset.pattern.permute.xlu0 0
      %4041 = vperm.xlu0 %4040, %v4003
      %v4042 = vpop.permute.xlu0 %4041
      %4045 = vset.pattern.permute.xlu0 0
      %4046 = vperm.xlu0 %4045, %v4004
      %v4047 = vpop.permute.xlu0 %4046
      %4050 = vset.pattern.permute.xlu0 0
      %4051 = vperm.xlu0 %4050, %v4005
      %v4052 = vpop.permute.xlu0 %4051
      %4055 = vset.pattern.permute.xlu0 0
      %4056 = vperm.xlu0 %4055, %v4006
      %v4057 = vpop.permute.xlu0 %4056
      %4060 = vset.pattern.permute.xlu0 0
      %4061 = vperm.xlu0 %4060, %v4007
      %v4062 = vpop.permute.xlu0 %4061
      %4065 = vset.pattern.permute.xlu0 0
      %4066 = vperm.xlu0 %4065, %v4008
      %v4067 = vpop.permute.xlu0 %4066
      %4070 = vset.pattern.permute.xlu0 0
      %4071 = vperm.xlu0 %4070, %v4009
      %v4072 = vpop.permute.xlu0 %4071
      %v4082 = vunpack.c.l.b16 %v4018
      %v4083 = vunpack.c.l.b16 %v4019
      %v4084 = vunpack.c.l.b16 %v4020
      %v4085 = vunpack.c.l.b16 %v4021
      %v4086 = vunpack.c.l.b16 %v4022
      %v4087 = vunpack.c.l.b16 %v4023
      %v4088 = vunpack.c.l.b16 %v4024
      %v4089 = vunpack.c.l.b16 %v4025
      %v4090 = vpack.c.b16 %v4083, %v4082
      %v4091 = vpack.c.b16 %v4085, %v4084
      %v4092 = vpack.c.b16 %v4087, %v4086
      %v4093 = vpack.c.b16 %v4089, %v4088
      %v4095 = vsel %vm1504, %v4090, 0
      %v4098 = vsel %vm1504, %v4091, 0
      %v4101 = vsel %vm1504, %v4092, 0
      %v4104 = vsel %vm1504, %v4093, 0
      %4106 = vmatpush.bf16.msra.mxu0 0
      %4107 = vmatpush.bf16.msra.mxu0 0
      %4108 = vmatpush.bf16.msra.mxu0 0
      %4109 = vmatpush.bf16.msra.mxu0 0
      %4110 = vmatpush.bf16.msra.mxu0 %v3994
      %4111 = vmatpush.bf16.msra.mxu0 %v3986
      %4112 = vmatpush.bf16.msra.mxu0 %v3978
      %4113 = vmatpush.bf16.msra.mxu0 %v3970
      %4114 = vmatmul.bf16.gmra.mxu0 %v4095
      %v4115 = vpop.f32.mrf.mxu0
      %v4116 = vadd.f32 %v4037, %v4115
      %v4117 = vpop.f32.mrf.mxu0
      %v4118 = vadd.f32 %v4042, %v4117
      %4119 = vmatmul.bf16.gmra.mxu0 %v4098
      %v4120 = vpop.f32.mrf.mxu0
      %v4121 = vadd.f32 %v4047, %v4120
      %v4122 = vpop.f32.mrf.mxu0
      %v4123 = vadd.f32 %v4052, %v4122
      %4124 = vmatmul.bf16.gmra.mxu0 %v4101
      %v4125 = vpop.f32.mrf.mxu0
      %v4126 = vadd.f32 %v4057, %v4125
      %v4127 = vpop.f32.mrf.mxu0
      %v4128 = vadd.f32 %v4062, %v4127
      %4129 = vmatmul.bf16.gmra.mxu0 %v4104
      %v4130 = vpop.f32.mrf.mxu0
      %v4131 = vadd.f32 %v4067, %v4130
      %v4132 = vpop.f32.mrf.mxu0
      %v4133 = vadd.f32 %v4072, %v4132
      %4134 = vdwg.mxu0
      %4135 = vmatpush.bf16.msra.mxu0 0
      %4136 = vmatpush.bf16.msra.mxu0 0
      %4137 = vmatpush.bf16.msra.mxu0 0
      %4138 = vmatpush.bf16.msra.mxu0 0
      %4139 = vmatpush.bf16.msra.mxu0 %v3995
      %4140 = vmatpush.bf16.msra.mxu0 %v3987
      %4141 = vmatpush.bf16.msra.mxu0 %v3979
      %4142 = vmatpush.bf16.msra.mxu0 %v3971
      %4143 = vmatmul.bf16.gmra.mxu0 %v4095
      %v4144 = vpop.f32.mrf.mxu0
      %v4145 = vadd.f32 %v4037, %v4144
      %v4146 = vpop.f32.mrf.mxu0
      %v4147 = vadd.f32 %v4042, %v4146
      %4148 = vmatmul.bf16.gmra.mxu0 %v4098
      %v4149 = vpop.f32.mrf.mxu0
      %v4150 = vadd.f32 %v4047, %v4149
      %v4151 = vpop.f32.mrf.mxu0
      %v4152 = vadd.f32 %v4052, %v4151
      %4153 = vmatmul.bf16.gmra.mxu0 %v4101
      %v4154 = vpop.f32.mrf.mxu0
      %v4155 = vadd.f32 %v4057, %v4154
      %v4156 = vpop.f32.mrf.mxu0
      %v4157 = vadd.f32 %v4062, %v4156
      %4158 = vmatmul.bf16.gmra.mxu0 %v4104
      %v4159 = vpop.f32.mrf.mxu0
      %v4160 = vadd.f32 %v4067, %v4159
      %v4161 = vpop.f32.mrf.mxu0
      %v4162 = vadd.f32 %v4072, %v4161
      %4163 = vdwg.mxu0
      %4164 = vmatpush.bf16.msra.mxu0 0
      %4165 = vmatpush.bf16.msra.mxu0 0
      %4166 = vmatpush.bf16.msra.mxu0 0
      %4167 = vmatpush.bf16.msra.mxu0 0
      %4168 = vmatpush.bf16.msra.mxu0 %v3996
      %4169 = vmatpush.bf16.msra.mxu0 %v3988
      %4170 = vmatpush.bf16.msra.mxu0 %v3980
      %4171 = vmatpush.bf16.msra.mxu0 %v3972
      %4172 = vmatmul.bf16.gmra.mxu0 %v4095
      %v4173 = vpop.f32.mrf.mxu0
      %v4174 = vadd.f32 %v4037, %v4173
      %v4175 = vpop.f32.mrf.mxu0
      %v4176 = vadd.f32 %v4042, %v4175
      %4177 = vmatmul.bf16.gmra.mxu0 %v4098
      %v4178 = vpop.f32.mrf.mxu0
      %v4179 = vadd.f32 %v4047, %v4178
      %v4180 = vpop.f32.mrf.mxu0
      %v4181 = vadd.f32 %v4052, %v4180
      %4182 = vmatmul.bf16.gmra.mxu0 %v4101
      %v4183 = vpop.f32.mrf.mxu0
      %v4184 = vadd.f32 %v4057, %v4183
      %v4185 = vpop.f32.mrf.mxu0
      %v4186 = vadd.f32 %v4062, %v4185
      %4187 = vmatmul.bf16.gmra.mxu0 %v4104
      %v4188 = vpop.f32.mrf.mxu0
      %v4189 = vadd.f32 %v4067, %v4188
      %v4190 = vpop.f32.mrf.mxu0
      %v4191 = vadd.f32 %v4072, %v4190
      %4192 = vdwg.mxu0
      %4193 = vmatpush.bf16.msra.mxu0 0
      %4194 = vmatpush.bf16.msra.mxu0 0
      %4195 = vmatpush.bf16.msra.mxu0 0
      %4196 = vmatpush.bf16.msra.mxu0 0
      %4197 = vmatpush.bf16.msra.mxu0 %v3997
      %4198 = vmatpush.bf16.msra.mxu0 %v3989
      %4199 = vmatpush.bf16.msra.mxu0 %v3981
      %4200 = vmatpush.bf16.msra.mxu0 %v3973
      %4201 = vmatmul.bf16.gmra.mxu0 %v4095
      %v4202 = vpop.f32.mrf.mxu0
      %v4203 = vadd.f32 %v4037, %v4202
      %v4204 = vpop.f32.mrf.mxu0
      %v4205 = vadd.f32 %v4042, %v4204
      %4206 = vmatmul.bf16.gmra.mxu0 %v4098
      %v4207 = vpop.f32.mrf.mxu0
      %v4208 = vadd.f32 %v4047, %v4207
      %v4209 = vpop.f32.mrf.mxu0
      %v4210 = vadd.f32 %v4052, %v4209
      %4211 = vmatmul.bf16.gmra.mxu0 %v4101
      %v4212 = vpop.f32.mrf.mxu0
      %v4213 = vadd.f32 %v4057, %v4212
      %v4214 = vpop.f32.mrf.mxu0
      %v4215 = vadd.f32 %v4062, %v4214
      %4216 = vmatmul.bf16.gmra.mxu0 %v4104
      %v4217 = vpop.f32.mrf.mxu0
      %v4218 = vadd.f32 %v4067, %v4217
      %v4219 = vpop.f32.mrf.mxu0
      %v4220 = vadd.f32 %v4072, %v4219
      %4221 = vdwg.mxu0
      %4222 = vmatpush.bf16.msra.mxu0 0
      %4223 = vmatpush.bf16.msra.mxu0 0
      %4224 = vmatpush.bf16.msra.mxu0 0
      %4225 = vmatpush.bf16.msra.mxu0 0
      %4226 = vmatpush.bf16.msra.mxu0 %v3998
      %4227 = vmatpush.bf16.msra.mxu0 %v3990
      %4228 = vmatpush.bf16.msra.mxu0 %v3982
      %4229 = vmatpush.bf16.msra.mxu0 %v3974
      %4230 = vmatmul.bf16.gmra.mxu0 %v4095
      %v4231 = vpop.f32.mrf.mxu0
      %v4232 = vadd.f32 %v4037, %v4231
      %v4233 = vpop.f32.mrf.mxu0
      %v4234 = vadd.f32 %v4042, %v4233
      %4235 = vmatmul.bf16.gmra.mxu0 %v4098
      %v4236 = vpop.f32.mrf.mxu0
      %v4237 = vadd.f32 %v4047, %v4236
      %v4238 = vpop.f32.mrf.mxu0
      %v4239 = vadd.f32 %v4052, %v4238
      %4240 = vmatmul.bf16.gmra.mxu0 %v4101
      %v4241 = vpop.f32.mrf.mxu0
      %v4242 = vadd.f32 %v4057, %v4241
      %v4243 = vpop.f32.mrf.mxu0
      %v4244 = vadd.f32 %v4062, %v4243
      %4245 = vmatmul.bf16.gmra.mxu0 %v4104
      %v4246 = vpop.f32.mrf.mxu0
      %v4247 = vadd.f32 %v4067, %v4246
      %v4248 = vpop.f32.mrf.mxu0
      %v4249 = vadd.f32 %v4072, %v4248
      %4250 = vdwg.mxu0
      %4251 = vmatpush.bf16.msra.mxu0 0
      %4252 = vmatpush.bf16.msra.mxu0 0
      %4253 = vmatpush.bf16.msra.mxu0 0
      %4254 = vmatpush.bf16.msra.mxu0 0
      %4255 = vmatpush.bf16.msra.mxu0 %v3999
      %4256 = vmatpush.bf16.msra.mxu0 %v3991
      %4257 = vmatpush.bf16.msra.mxu0 %v3983
      %4258 = vmatpush.bf16.msra.mxu0 %v3975
      %4259 = vmatmul.bf16.gmra.mxu0 %v4095
      %v4260 = vpop.f32.mrf.mxu0
      %v4261 = vadd.f32 %v4037, %v4260
      %v4262 = vpop.f32.mrf.mxu0
      %v4263 = vadd.f32 %v4042, %v4262
      %4264 = vmatmul.bf16.gmra.mxu0 %v4098
      %v4265 = vpop.f32.mrf.mxu0
      %v4266 = vadd.f32 %v4047, %v4265
      %v4267 = vpop.f32.mrf.mxu0
      %v4268 = vadd.f32 %v4052, %v4267
      %4269 = vmatmul.bf16.gmra.mxu0 %v4101
      %v4270 = vpop.f32.mrf.mxu0
      %v4271 = vadd.f32 %v4057, %v4270
      %v4272 = vpop.f32.mrf.mxu0
      %v4273 = vadd.f32 %v4062, %v4272
      %4274 = vmatmul.bf16.gmra.mxu0 %v4104
      %v4275 = vpop.f32.mrf.mxu0
      %v4276 = vadd.f32 %v4067, %v4275
      %v4277 = vpop.f32.mrf.mxu0
      %v4278 = vadd.f32 %v4072, %v4277
      %4279 = vdwg.mxu0
      %4280 = vmatpush.bf16.msra.mxu0 0
      %4281 = vmatpush.bf16.msra.mxu0 0
      %4282 = vmatpush.bf16.msra.mxu0 0
      %4283 = vmatpush.bf16.msra.mxu0 0
      %4284 = vmatpush.bf16.msra.mxu0 %v4000
      %4285 = vmatpush.bf16.msra.mxu0 %v3992
      %4286 = vmatpush.bf16.msra.mxu0 %v3984
      %4287 = vmatpush.bf16.msra.mxu0 %v3976
      %4288 = vmatmul.bf16.gmra.mxu0 %v4095
      %v4289 = vpop.f32.mrf.mxu0
      %v4290 = vadd.f32 %v4037, %v4289
      %v4291 = vpop.f32.mrf.mxu0
      %v4292 = vadd.f32 %v4042, %v4291
      %4293 = vmatmul.bf16.gmra.mxu0 %v4098
      %v4294 = vpop.f32.mrf.mxu0
      %v4295 = vadd.f32 %v4047, %v4294
      %v4296 = vpop.f32.mrf.mxu0
      %v4297 = vadd.f32 %v4052, %v4296
      %4298 = vmatmul.bf16.gmra.mxu0 %v4101
      %v4299 = vpop.f32.mrf.mxu0
      %v4300 = vadd.f32 %v4057, %v4299
      %v4301 = vpop.f32.mrf.mxu0
      %v4302 = vadd.f32 %v4062, %v4301
      %4303 = vmatmul.bf16.gmra.mxu0 %v4104
      %v4304 = vpop.f32.mrf.mxu0
      %v4305 = vadd.f32 %v4067, %v4304
      %v4306 = vpop.f32.mrf.mxu0
      %v4307 = vadd.f32 %v4072, %v4306
      %4308 = vdwg.mxu0
      %4309 = vmatpush.bf16.msra.mxu0 0
      %4310 = vmatpush.bf16.msra.mxu0 0
      %4311 = vmatpush.bf16.msra.mxu0 0
      %4312 = vmatpush.bf16.msra.mxu0 0
      %4313 = vmatpush.bf16.msra.mxu0 %v4001
      %4314 = vmatpush.bf16.msra.mxu0 %v3993
      %4315 = vmatpush.bf16.msra.mxu0 %v3985
      %4316 = vmatpush.bf16.msra.mxu0 %v3977
      %4317 = vmatmul.bf16.gmra.mxu0 %v4095
      %v4318 = vpop.f32.mrf.mxu0
      %v4319 = vadd.f32 %v4037, %v4318
      %v4320 = vpop.f32.mrf.mxu0
      %v4321 = vadd.f32 %v4042, %v4320
      %4322 = vmatmul.bf16.gmra.mxu0 %v4098
      %v4323 = vpop.f32.mrf.mxu0
      %v4324 = vadd.f32 %v4047, %v4323
      %v4325 = vpop.f32.mrf.mxu0
      %v4326 = vadd.f32 %v4052, %v4325
      %4327 = vmatmul.bf16.gmra.mxu0 %v4101
      %v4328 = vpop.f32.mrf.mxu0
      %v4329 = vadd.f32 %v4057, %v4328
      %v4330 = vpop.f32.mrf.mxu0
      %v4331 = vadd.f32 %v4062, %v4330
      %4332 = vmatmul.bf16.gmra.mxu0 %v4104
      %v4333 = vpop.f32.mrf.mxu0
      %v4334 = vadd.f32 %v4067, %v4333
      %v4335 = vpop.f32.mrf.mxu0
      %v4336 = vadd.f32 %v4072, %v4335
      %4337 = vdwg.mxu0
      %4338 = vst [vmem:[#allocation2] sm:$0xff] %v4116
      %4339 = vst [vmem:[#allocation2 + $0x8] sm:$0xff] %v4145
      %4340 = vst [vmem:[#allocation2 + $0x10] sm:$0xff] %v4174
      %4341 = vst [vmem:[#allocation2 + $0x18] sm:$0xff] %v4203
      %4342 = vst [vmem:[#allocation2 + $0x20] sm:$0xff] %v4232
      %4343 = vst [vmem:[#allocation2 + $0x28] sm:$0xff] %v4261
      %4344 = vst [vmem:[#allocation2 + $0x30] sm:$0xff] %v4290
      %4345 = vst [vmem:[#allocation2 + $0x38] sm:$0xff] %v4319
      %4346 = vst [vmem:[#allocation2 + $0x40] sm:$0xff] %v4118
      %4347 = vst [vmem:[#allocation2 + $0x48] sm:$0xff] %v4147
      %4348 = vst [vmem:[#allocation2 + $0x50] sm:$0xff] %v4176
      %4349 = vst [vmem:[#allocation2 + $0x58] sm:$0xff] %v4205
      %4350 = vst [vmem:[#allocation2 + $0x60] sm:$0xff] %v4234
      %4351 = vst [vmem:[#allocation2 + $0x68] sm:$0xff] %v4263
      %4352 = vst [vmem:[#allocation2 + $0x70] sm:$0xff] %v4292
      %4353 = vst [vmem:[#allocation2 + $0x78] sm:$0xff] %v4321
      %4354 = vst [vmem:[#allocation2 + $0x80] sm:$0xff] %v4121
      %4355 = vst [vmem:[#allocation2 + $0x88] sm:$0xff] %v4150
      %4356 = vst [vmem:[#allocation2 + $0x90] sm:$0xff] %v4179
      %4357 = vst [vmem:[#allocation2 + $0x98] sm:$0xff] %v4208
      %4358 = vst [vmem:[#allocation2 + $0xa0] sm:$0xff] %v4237
      %4359 = vst [vmem:[#allocation2 + $0xa8] sm:$0xff] %v4266
      %4360 = vst [vmem:[#allocation2 + $0xb0] sm:$0xff] %v4295
      %4361 = vst [vmem:[#allocation2 + $0xb8] sm:$0xff] %v4324
      %4362 = vst [vmem:[#allocation2 + $0xc0] sm:$0xff] %v4123
      %4363 = vst [vmem:[#allocation2 + $0xc8] sm:$0xff] %v4152
      %4364 = vst [vmem:[#allocation2 + $0xd0] sm:$0xff] %v4181
      %4365 = vst [vmem:[#allocation2 + $0xd8] sm:$0xff] %v4210
      %4366 = vst [vmem:[#allocation2 + $0xe0] sm:$0xff] %v4239
      %4367 = vst [vmem:[#allocation2 + $0xe8] sm:$0xff] %v4268
      %4368 = vst [vmem:[#allocation2 + $0xf0] sm:$0xff] %v4297
      %4369 = vst [vmem:[#allocation2 + $0xf8] sm:$0xff] %v4326
      %4370 = vst [vmem:[#allocation2 + $0x100] sm:$0xff] %v4126
      %4371 = vst [vmem:[#allocation2 + $0x108] sm:$0xff] %v4155
      %4372 = vst [vmem:[#allocation2 + $0x110] sm:$0xff] %v4184
      %4373 = vst [vmem:[#allocation2 + $0x118] sm:$0xff] %v4213
      %4374 = vst [vmem:[#allocation2 + $0x120] sm:$0xff] %v4242
      %4375 = vst [vmem:[#allocation2 + $0x128] sm:$0xff] %v4271
      %4376 = vst [vmem:[#allocation2 + $0x130] sm:$0xff] %v4300
      %4377 = vst [vmem:[#allocation2 + $0x138] sm:$0xff] %v4329
      %4378 = vst [vmem:[#allocation2 + $0x140] sm:$0xff] %v4128
      %4379 = vst [vmem:[#allocation2 + $0x148] sm:$0xff] %v4157
      %4380 = vst [vmem:[#allocation2 + $0x150] sm:$0xff] %v4186
      %4381 = vst [vmem:[#allocation2 + $0x158] sm:$0xff] %v4215
      %4382 = vst [vmem:[#allocation2 + $0x160] sm:$0xff] %v4244
      %4383 = vst [vmem:[#allocation2 + $0x168] sm:$0xff] %v4273
      %4384 = vst [vmem:[#allocation2 + $0x170] sm:$0xff] %v4302
      %4385 = vst [vmem:[#allocation2 + $0x178] sm:$0xff] %v4331
      %4386 = vst [vmem:[#allocation2 + $0x180] sm:$0xff] %v4131
      %4387 = vst [vmem:[#allocation2 + $0x188] sm:$0xff] %v4160
      %4388 = vst [vmem:[#allocation2 + $0x190] sm:$0xff] %v4189
      %4389 = vst [vmem:[#allocation2 + $0x198] sm:$0xff] %v4218
      %4390 = vst [vmem:[#allocation2 + $0x1a0] sm:$0xff] %v4247
      %4391 = vst [vmem:[#allocation2 + $0x1a8] sm:$0xff] %v4276
      %4392 = vst [vmem:[#allocation2 + $0x1b0] sm:$0xff] %v4305
      %4393 = vst [vmem:[#allocation2 + $0x1b8] sm:$0xff] %v4334
      %4394 = vst [vmem:[#allocation2 + $0x1c0] sm:$0xff] %v4133
      %4395 = vst [vmem:[#allocation2 + $0x1c8] sm:$0xff] %v4162
      %4396 = vst [vmem:[#allocation2 + $0x1d0] sm:$0xff] %v4191
      %4397 = vst [vmem:[#allocation2 + $0x1d8] sm:$0xff] %v4220
      %4398 = vst [vmem:[#allocation2 + $0x1e0] sm:$0xff] %v4249
      %4399 = vst [vmem:[#allocation2 + $0x1e8] sm:$0xff] %v4278
      %4400 = vst [vmem:[#allocation2 + $0x1f0] sm:$0xff] %v4307
      %4401 = vst [vmem:[#allocation2 + $0x1f8] sm:$0xff] %v4336
      %v4410 = vunpack.c.l.b16 %v4010
      %v4411 = vunpack.c.l.b16 %v4011
      %v4412 = vunpack.c.l.b16 %v4012
      %v4413 = vunpack.c.l.b16 %v4013
      %v4414 = vunpack.c.l.b16 %v4014
      %v4415 = vunpack.c.l.b16 %v4015
      %v4416 = vunpack.c.l.b16 %v4016
      %v4417 = vunpack.c.l.b16 %v4017
      %v4418 = vpack.c.b16 %v4411, %v4410
      %v4419 = vpack.c.b16 %v4413, %v4412
      %v4420 = vpack.c.b16 %v4415, %v4414
      %v4421 = vpack.c.b16 %v4417, %v4416
      %v4423 = vsel %vm1504, %v4418, 0
      %v4426 = vsel %vm1504, %v4419, 0
      %v4429 = vsel %vm1504, %v4420, 0
      %v4432 = vsel %vm1504, %v4421, 0
      %4434 = vmatpush.bf16.msra.mxu0 0
      %4435 = vmatpush.bf16.msra.mxu0 0
      %4436 = vmatpush.bf16.msra.mxu0 0
      %4437 = vmatpush.bf16.msra.mxu0 0
      %4438 = vmatpush.bf16.msra.mxu0 %v3994
      %4439 = vmatpush.bf16.msra.mxu0 %v3986
      %4440 = vmatpush.bf16.msra.mxu0 %v3978
      %4441 = vmatpush.bf16.msra.mxu0 %v3970
      %4442 = vmatmul.bf16.gmra.mxu0 %v4423
      %v4443 = vpop.f32.mrf.mxu0
      %v4444 = vadd.f32 0.0, %v4443
      %v4445 = vpop.f32.mrf.mxu0
      %v4446 = vadd.f32 0.0, %v4445
      %4447 = vmatmul.bf16.gmra.mxu0 %v4426
      %v4448 = vpop.f32.mrf.mxu0
      %v4449 = vadd.f32 0.0, %v4448
      %v4450 = vpop.f32.mrf.mxu0
      %v4451 = vadd.f32 0.0, %v4450
      %4452 = vmatmul.bf16.gmra.mxu0 %v4429
      %v4453 = vpop.f32.mrf.mxu0
      %v4454 = vadd.f32 0.0, %v4453
      %v4455 = vpop.f32.mrf.mxu0
      %v4456 = vadd.f32 0.0, %v4455
      %4457 = vmatmul.bf16.gmra.mxu0 %v4432
      %v4458 = vpop.f32.mrf.mxu0
      %v4459 = vadd.f32 0.0, %v4458
      %v4460 = vpop.f32.mrf.mxu0
      %v4461 = vadd.f32 0.0, %v4460
      %4462 = vdwg.mxu0
      %4463 = vmatpush.bf16.msra.mxu0 0
      %4464 = vmatpush.bf16.msra.mxu0 0
      %4465 = vmatpush.bf16.msra.mxu0 0
      %4466 = vmatpush.bf16.msra.mxu0 0
      %4467 = vmatpush.bf16.msra.mxu0 %v3995
      %4468 = vmatpush.bf16.msra.mxu0 %v3987
      %4469 = vmatpush.bf16.msra.mxu0 %v3979
      %4470 = vmatpush.bf16.msra.mxu0 %v3971
      %4471 = vmatmul.bf16.gmra.mxu0 %v4423
      %v4472 = vpop.f32.mrf.mxu0
      %v4473 = vadd.f32 0.0, %v4472
      %v4474 = vpop.f32.mrf.mxu0
      %v4475 = vadd.f32 0.0, %v4474
      %4476 = vmatmul.bf16.gmra.mxu0 %v4426
      %v4477 = vpop.f32.mrf.mxu0
      %v4478 = vadd.f32 0.0, %v4477
      %v4479 = vpop.f32.mrf.mxu0
      %v4480 = vadd.f32 0.0, %v4479
      %4481 = vmatmul.bf16.gmra.mxu0 %v4429
      %v4482 = vpop.f32.mrf.mxu0
      %v4483 = vadd.f32 0.0, %v4482
      %v4484 = vpop.f32.mrf.mxu0
      %v4485 = vadd.f32 0.0, %v4484
      %4486 = vmatmul.bf16.gmra.mxu0 %v4432
      %v4487 = vpop.f32.mrf.mxu0
      %v4488 = vadd.f32 0.0, %v4487
      %v4489 = vpop.f32.mrf.mxu0
      %v4490 = vadd.f32 0.0, %v4489
      %4491 = vdwg.mxu0
      %4492 = vmatpush.bf16.msra.mxu0 0
      %4493 = vmatpush.bf16.msra.mxu0 0
      %4494 = vmatpush.bf16.msra.mxu0 0
      %4495 = vmatpush.bf16.msra.mxu0 0
      %4496 = vmatpush.bf16.msra.mxu0 %v3996
      %4497 = vmatpush.bf16.msra.mxu0 %v3988
      %4498 = vmatpush.bf16.msra.mxu0 %v3980
      %4499 = vmatpush.bf16.msra.mxu0 %v3972
      %4500 = vmatmul.bf16.gmra.mxu0 %v4423
      %v4501 = vpop.f32.mrf.mxu0
      %v4502 = vadd.f32 0.0, %v4501
      %v4503 = vpop.f32.mrf.mxu0
      %v4504 = vadd.f32 0.0, %v4503
      %4505 = vmatmul.bf16.gmra.mxu0 %v4426
      %v4506 = vpop.f32.mrf.mxu0
      %v4507 = vadd.f32 0.0, %v4506
      %v4508 = vpop.f32.mrf.mxu0
      %v4509 = vadd.f32 0.0, %v4508
      %4510 = vmatmul.bf16.gmra.mxu0 %v4429
      %v4511 = vpop.f32.mrf.mxu0
      %v4512 = vadd.f32 0.0, %v4511
      %v4513 = vpop.f32.mrf.mxu0
      %v4514 = vadd.f32 0.0, %v4513
      %4515 = vmatmul.bf16.gmra.mxu0 %v4432
      %v4516 = vpop.f32.mrf.mxu0
      %v4517 = vadd.f32 0.0, %v4516
      %v4518 = vpop.f32.mrf.mxu0
      %v4519 = vadd.f32 0.0, %v4518
      %4520 = vdwg.mxu0
      %4521 = vmatpush.bf16.msra.mxu0 0
      %4522 = vmatpush.bf16.msra.mxu0 0
      %4523 = vmatpush.bf16.msra.mxu0 0
      %4524 = vmatpush.bf16.msra.mxu0 0
      %4525 = vmatpush.bf16.msra.mxu0 %v3997
      %4526 = vmatpush.bf16.msra.mxu0 %v3989
      %4527 = vmatpush.bf16.msra.mxu0 %v3981
      %4528 = vmatpush.bf16.msra.mxu0 %v3973
      %4529 = vmatmul.bf16.gmra.mxu0 %v4423
      %v4530 = vpop.f32.mrf.mxu0
      %v4531 = vadd.f32 0.0, %v4530
      %v4532 = vpop.f32.mrf.mxu0
      %v4533 = vadd.f32 0.0, %v4532
      %4534 = vmatmul.bf16.gmra.mxu0 %v4426
      %v4535 = vpop.f32.mrf.mxu0
      %v4536 = vadd.f32 0.0, %v4535
      %v4537 = vpop.f32.mrf.mxu0
      %v4538 = vadd.f32 0.0, %v4537
      %4539 = vmatmul.bf16.gmra.mxu0 %v4429
      %v4540 = vpop.f32.mrf.mxu0
      %v4541 = vadd.f32 0.0, %v4540
      %v4542 = vpop.f32.mrf.mxu0
      %v4543 = vadd.f32 0.0, %v4542
      %4544 = vmatmul.bf16.gmra.mxu0 %v4432
      %v4545 = vpop.f32.mrf.mxu0
      %v4546 = vadd.f32 0.0, %v4545
      %v4547 = vpop.f32.mrf.mxu0
      %v4548 = vadd.f32 0.0, %v4547
      %4549 = vdwg.mxu0
      %4550 = vmatpush.bf16.msra.mxu0 0
      %4551 = vmatpush.bf16.msra.mxu0 0
      %4552 = vmatpush.bf16.msra.mxu0 0
      %4553 = vmatpush.bf16.msra.mxu0 0
      %4554 = vmatpush.bf16.msra.mxu0 %v3998
      %4555 = vmatpush.bf16.msra.mxu0 %v3990
      %4556 = vmatpush.bf16.msra.mxu0 %v3982
      %4557 = vmatpush.bf16.msra.mxu0 %v3974
      %4558 = vmatmul.bf16.gmra.mxu0 %v4423
      %v4559 = vpop.f32.mrf.mxu0
      %v4560 = vadd.f32 0.0, %v4559
      %v4561 = vpop.f32.mrf.mxu0
      %v4562 = vadd.f32 0.0, %v4561
      %4563 = vmatmul.bf16.gmra.mxu0 %v4426
      %v4564 = vpop.f32.mrf.mxu0
      %v4565 = vadd.f32 0.0, %v4564
      %v4566 = vpop.f32.mrf.mxu0
      %v4567 = vadd.f32 0.0, %v4566
      %4568 = vmatmul.bf16.gmra.mxu0 %v4429
      %v4569 = vpop.f32.mrf.mxu0
      %v4570 = vadd.f32 0.0, %v4569
      %v4571 = vpop.f32.mrf.mxu0
      %v4572 = vadd.f32 0.0, %v4571
      %4573 = vmatmul.bf16.gmra.mxu0 %v4432
      %v4574 = vpop.f32.mrf.mxu0
      %v4575 = vadd.f32 0.0, %v4574
      %v4576 = vpop.f32.mrf.mxu0
      %v4577 = vadd.f32 0.0, %v4576
      %4578 = vdwg.mxu0
      %4579 = vmatpush.bf16.msra.mxu0 0
      %4580 = vmatpush.bf16.msra.mxu0 0
      %4581 = vmatpush.bf16.msra.mxu0 0
      %4582 = vmatpush.bf16.msra.mxu0 0
      %4583 = vmatpush.bf16.msra.mxu0 %v3999
      %4584 = vmatpush.bf16.msra.mxu0 %v3991
      %4585 = vmatpush.bf16.msra.mxu0 %v3983
      %4586 = vmatpush.bf16.msra.mxu0 %v3975
      %4587 = vmatmul.bf16.gmra.mxu0 %v4423
      %v4588 = vpop.f32.mrf.mxu0
      %v4589 = vadd.f32 0.0, %v4588
      %v4590 = vpop.f32.mrf.mxu0
      %v4591 = vadd.f32 0.0, %v4590
      %4592 = vmatmul.bf16.gmra.mxu0 %v4426
      %v4593 = vpop.f32.mrf.mxu0
      %v4594 = vadd.f32 0.0, %v4593
      %v4595 = vpop.f32.mrf.mxu0
      %v4596 = vadd.f32 0.0, %v4595
      %4597 = vmatmul.bf16.gmra.mxu0 %v4429
      %v4598 = vpop.f32.mrf.mxu0
      %v4599 = vadd.f32 0.0, %v4598
      %v4600 = vpop.f32.mrf.mxu0
      %v4601 = vadd.f32 0.0, %v4600
      %4602 = vmatmul.bf16.gmra.mxu0 %v4432
      %v4603 = vpop.f32.mrf.mxu0
      %v4604 = vadd.f32 0.0, %v4603
      %v4605 = vpop.f32.mrf.mxu0
      %v4606 = vadd.f32 0.0, %v4605
      %4607 = vdwg.mxu0
      %v4616 = vunpack.c.l.b16 %v4026
      %v4617 = vunpack.c.l.b16 %v4027
      %v4618 = vunpack.c.l.b16 %v4028
      %v4619 = vunpack.c.l.b16 %v4029
      %v4620 = vunpack.c.l.b16 %v4030
      %v4621 = vunpack.c.l.b16 %v4031
      %v4622 = vunpack.c.l.b16 %v4032
      %v4623 = vunpack.c.l.b16 %v4033
      %v4624 = vpack.c.b16 %v4617, %v4616
      %v4625 = vpack.c.b16 %v4619, %v4618
      %v4626 = vpack.c.b16 %v4621, %v4620
      %v4627 = vpack.c.b16 %v4623, %v4622
      %v4629 = vsel %vm1504, %v4624, 0
      %v4632 = vsel %vm1504, %v4625, 0
      %v4635 = vsel %vm1504, %v4626, 0
      %v4638 = vsel %vm1504, %v4627, 0
      %4640 = vmatpush.bf16.msra.mxu0 0
      %4641 = vmatpush.bf16.msra.mxu0 0
      %4642 = vmatpush.bf16.msra.mxu0 0
      %4643 = vmatpush.bf16.msra.mxu0 0
      %4644 = vmatpush.bf16.msra.mxu0 %v3996
      %4645 = vmatpush.bf16.msra.mxu0 %v3988
      %4646 = vmatpush.bf16.msra.mxu0 %v3980
      %4647 = vmatpush.bf16.msra.mxu0 %v3972
      %4648 = vmatmul.bf16.gmra.mxu0 %v4629
      %v4649 = vpop.f32.mrf.mxu0
      %v4650 = vadd.f32 0.0, %v4649
      %v4651 = vpop.f32.mrf.mxu0
      %v4652 = vadd.f32 0.0, %v4651
      %4653 = vmatmul.bf16.gmra.mxu0 %v4632
      %v4654 = vpop.f32.mrf.mxu0
      %v4655 = vadd.f32 0.0, %v4654
      %v4656 = vpop.f32.mrf.mxu0
      %v4657 = vadd.f32 0.0, %v4656
      %4658 = vmatmul.bf16.gmra.mxu0 %v4635
      %v4659 = vpop.f32.mrf.mxu0
      %v4660 = vadd.f32 0.0, %v4659
      %v4661 = vpop.f32.mrf.mxu0
      %v4662 = vadd.f32 0.0, %v4661
      %4663 = vmatmul.bf16.gmra.mxu0 %v4638
      %v4664 = vpop.f32.mrf.mxu0
      %v4665 = vadd.f32 0.0, %v4664
      %v4666 = vpop.f32.mrf.mxu0
      %v4667 = vadd.f32 0.0, %v4666
      %4668 = vdwg.mxu0
      %4669 = vmatpush.bf16.msra.mxu0 0
      %4670 = vmatpush.bf16.msra.mxu0 0
      %4671 = vmatpush.bf16.msra.mxu0 0
      %4672 = vmatpush.bf16.msra.mxu0 0
      %4673 = vmatpush.bf16.msra.mxu0 %v3997
      %4674 = vmatpush.bf16.msra.mxu0 %v3989
      %4675 = vmatpush.bf16.msra.mxu0 %v3981
      %4676 = vmatpush.bf16.msra.mxu0 %v3973
      %4677 = vmatmul.bf16.gmra.mxu0 %v4629
      %v4678 = vpop.f32.mrf.mxu0
      %v4679 = vadd.f32 0.0, %v4678
      %v4680 = vpop.f32.mrf.mxu0
      %v4681 = vadd.f32 0.0, %v4680
      %4682 = vmatmul.bf16.gmra.mxu0 %v4632
      %v4683 = vpop.f32.mrf.mxu0
      %v4684 = vadd.f32 0.0, %v4683
      %v4685 = vpop.f32.mrf.mxu0
      %v4686 = vadd.f32 0.0, %v4685
      %4687 = vmatmul.bf16.gmra.mxu0 %v4635
      %v4688 = vpop.f32.mrf.mxu0
      %v4689 = vadd.f32 0.0, %v4688
      %v4690 = vpop.f32.mrf.mxu0
      %v4691 = vadd.f32 0.0, %v4690
      %4692 = vmatmul.bf16.gmra.mxu0 %v4638
      %v4693 = vpop.f32.mrf.mxu0
      %v4694 = vadd.f32 0.0, %v4693
      %v4695 = vpop.f32.mrf.mxu0
      %v4696 = vadd.f32 0.0, %v4695
      %4697 = vdwg.mxu0
      %4698 = vmatpush.bf16.msra.mxu0 0
      %4699 = vmatpush.bf16.msra.mxu0 0
      %4700 = vmatpush.bf16.msra.mxu0 0
      %4701 = vmatpush.bf16.msra.mxu0 0
      %4702 = vmatpush.bf16.msra.mxu0 %v3998
      %4703 = vmatpush.bf16.msra.mxu0 %v3990
      %4704 = vmatpush.bf16.msra.mxu0 %v3982
      %4705 = vmatpush.bf16.msra.mxu0 %v3974
      %4706 = vmatmul.bf16.gmra.mxu0 %v4629
      %v4707 = vpop.f32.mrf.mxu0
      %v4708 = vadd.f32 0.0, %v4707
      %v4709 = vpop.f32.mrf.mxu0
      %v4710 = vadd.f32 0.0, %v4709
      %4711 = vmatmul.bf16.gmra.mxu0 %v4632
      %v4712 = vpop.f32.mrf.mxu0
      %v4713 = vadd.f32 0.0, %v4712
      %v4714 = vpop.f32.mrf.mxu0
      %v4715 = vadd.f32 0.0, %v4714
      %4716 = vmatmul.bf16.gmra.mxu0 %v4635
      %v4717 = vpop.f32.mrf.mxu0
      %v4718 = vadd.f32 0.0, %v4717
      %v4719 = vpop.f32.mrf.mxu0
      %v4720 = vadd.f32 0.0, %v4719
      %4721 = vmatmul.bf16.gmra.mxu0 %v4638
      %v4722 = vpop.f32.mrf.mxu0
      %v4723 = vadd.f32 0.0, %v4722
      %v4724 = vpop.f32.mrf.mxu0
      %v4725 = vadd.f32 0.0, %v4724
      %4726 = vdwg.mxu0
      %4727 = vmatpush.bf16.msra.mxu0 0
      %4728 = vmatpush.bf16.msra.mxu0 0
      %4729 = vmatpush.bf16.msra.mxu0 0
      %4730 = vmatpush.bf16.msra.mxu0 0
      %4731 = vmatpush.bf16.msra.mxu0 %v3999
      %4732 = vmatpush.bf16.msra.mxu0 %v3991
      %4733 = vmatpush.bf16.msra.mxu0 %v3983
      %4734 = vmatpush.bf16.msra.mxu0 %v3975
      %4735 = vmatmul.bf16.gmra.mxu0 %v4629
      %v4736 = vpop.f32.mrf.mxu0
      %v4737 = vadd.f32 0.0, %v4736
      %v4738 = vpop.f32.mrf.mxu0
      %v4739 = vadd.f32 0.0, %v4738
      %4740 = vmatmul.bf16.gmra.mxu0 %v4632
      %v4741 = vpop.f32.mrf.mxu0
      %v4742 = vadd.f32 0.0, %v4741
      %v4743 = vpop.f32.mrf.mxu0
      %v4744 = vadd.f32 0.0, %v4743
      %4745 = vmatmul.bf16.gmra.mxu0 %v4635
      %v4746 = vpop.f32.mrf.mxu0
      %v4747 = vadd.f32 0.0, %v4746
      %v4748 = vpop.f32.mrf.mxu0
      %v4749 = vadd.f32 0.0, %v4748
      %4750 = vmatmul.bf16.gmra.mxu0 %v4638
      %v4751 = vpop.f32.mrf.mxu0
      %v4752 = vadd.f32 0.0, %v4751
      %v4753 = vpop.f32.mrf.mxu0
      %v4754 = vadd.f32 0.0, %v4753
      %4755 = vdwg.mxu0
      %4756 = vmatpush.bf16.msra.mxu0 0
      %4757 = vmatpush.bf16.msra.mxu0 0
      %4758 = vmatpush.bf16.msra.mxu0 0
      %4759 = vmatpush.bf16.msra.mxu0 0
      %4760 = vmatpush.bf16.msra.mxu0 %v4000
      %4761 = vmatpush.bf16.msra.mxu0 %v3992
      %4762 = vmatpush.bf16.msra.mxu0 %v3984
      %4763 = vmatpush.bf16.msra.mxu0 %v3976
      %4764 = vmatmul.bf16.gmra.mxu0 %v4629
      %v4765 = vpop.f32.mrf.mxu0
      %v4766 = vadd.f32 0.0, %v4765
      %v4767 = vpop.f32.mrf.mxu0
      %v4768 = vadd.f32 0.0, %v4767
      %4769 = vmatmul.bf16.gmra.mxu0 %v4632
      %v4770 = vpop.f32.mrf.mxu0
      %v4771 = vadd.f32 0.0, %v4770
      %v4772 = vpop.f32.mrf.mxu0
      %v4773 = vadd.f32 0.0, %v4772
      %4774 = vmatmul.bf16.gmra.mxu0 %v4635
      %v4775 = vpop.f32.mrf.mxu0
      %v4776 = vadd.f32 0.0, %v4775
      %v4777 = vpop.f32.mrf.mxu0
      %v4778 = vadd.f32 0.0, %v4777
      %4779 = vmatmul.bf16.gmra.mxu0 %v4638
      %v4780 = vpop.f32.mrf.mxu0
      %v4781 = vadd.f32 0.0, %v4780
      %v4782 = vpop.f32.mrf.mxu0
      %v4783 = vadd.f32 0.0, %v4782
      %4784 = vdwg.mxu0
      %4785 = vmatpush.bf16.msra.mxu0 0
      %4786 = vmatpush.bf16.msra.mxu0 0
      %4787 = vmatpush.bf16.msra.mxu0 0
      %4788 = vmatpush.bf16.msra.mxu0 0
      %4789 = vmatpush.bf16.msra.mxu0 %v4001
      %4790 = vmatpush.bf16.msra.mxu0 %v3993
      %4791 = vmatpush.bf16.msra.mxu0 %v3985
      %4792 = vmatpush.bf16.msra.mxu0 %v3977
      %4793 = vmatmul.bf16.gmra.mxu0 %v4629
      %v4794 = vpop.f32.mrf.mxu0
      %v4795 = vadd.f32 0.0, %v4794
      %v4796 = vpop.f32.mrf.mxu0
      %v4797 = vadd.f32 0.0, %v4796
      %4798 = vmatmul.bf16.gmra.mxu0 %v4632
      %v4799 = vpop.f32.mrf.mxu0
      %v4800 = vadd.f32 0.0, %v4799
      %v4801 = vpop.f32.mrf.mxu0
      %v4802 = vadd.f32 0.0, %v4801
      %4803 = vmatmul.bf16.gmra.mxu0 %v4635
      %v4804 = vpop.f32.mrf.mxu0
      %v4805 = vadd.f32 0.0, %v4804
      %v4806 = vpop.f32.mrf.mxu0
      %v4807 = vadd.f32 0.0, %v4806
      %4808 = vmatmul.bf16.gmra.mxu0 %v4638
      %v4809 = vpop.f32.mrf.mxu0
      %v4810 = vadd.f32 0.0, %v4809
      %v4811 = vpop.f32.mrf.mxu0
      %v4812 = vadd.f32 0.0, %v4811
      %4813 = vdwg.mxu0
      %v4814 = vld [vmem:[#allocation2 + $0x10] sm:$0xff]
      %v4815 = vld [vmem:[#allocation2 + $0x18] sm:$0xff]
      %v4816 = vld [vmem:[#allocation2 + $0x20] sm:$0xff]
      %v4817 = vld [vmem:[#allocation2 + $0x28] sm:$0xff]
      %v4818 = vld [vmem:[#allocation2 + $0x30] sm:$0xff]
      %v4819 = vld [vmem:[#allocation2 + $0x38] sm:$0xff]
      %v4820 = vld [vmem:[#allocation2 + $0x50] sm:$0xff]
      %v4821 = vld [vmem:[#allocation2 + $0x58] sm:$0xff]
      %v4822 = vld [vmem:[#allocation2 + $0x60] sm:$0xff]
      %v4823 = vld [vmem:[#allocation2 + $0x68] sm:$0xff]
      %v4824 = vld [vmem:[#allocation2 + $0x70] sm:$0xff]
      %v4825 = vld [vmem:[#allocation2 + $0x78] sm:$0xff]
      %v4826 = vld [vmem:[#allocation2 + $0x90] sm:$0xff]
      %v4827 = vld [vmem:[#allocation2 + $0x98] sm:$0xff]
      %v4828 = vld [vmem:[#allocation2 + $0xa0] sm:$0xff]
      %v4829 = vld [vmem:[#allocation2 + $0xa8] sm:$0xff]
      %v4830 = vld [vmem:[#allocation2 + $0xb0] sm:$0xff]
      %v4831 = vld [vmem:[#allocation2 + $0xb8] sm:$0xff]
      %v4832 = vld [vmem:[#allocation2 + $0xd0] sm:$0xff]
      %v4833 = vld [vmem:[#allocation2 + $0xd8] sm:$0xff]
      %v4834 = vld [vmem:[#allocation2 + $0xe0] sm:$0xff]
      %v4835 = vld [vmem:[#allocation2 + $0xe8] sm:$0xff]
      %v4836 = vld [vmem:[#allocation2 + $0xf0] sm:$0xff]
      %v4837 = vld [vmem:[#allocation2 + $0xf8] sm:$0xff]
      %v4838 = vld [vmem:[#allocation2 + $0x110] sm:$0xff]
      %v4839 = vld [vmem:[#allocation2 + $0x118] sm:$0xff]
      %v4840 = vld [vmem:[#allocation2 + $0x120] sm:$0xff]
      %v4841 = vld [vmem:[#allocation2 + $0x128] sm:$0xff]
      %v4842 = vld [vmem:[#allocation2 + $0x130] sm:$0xff]
      %v4843 = vld [vmem:[#allocation2 + $0x138] sm:$0xff]
      %v4844 = vld [vmem:[#allocation2 + $0x150] sm:$0xff]
      %v4845 = vld [vmem:[#allocation2 + $0x158] sm:$0xff]
      %v4846 = vld [vmem:[#allocation2 + $0x160] sm:$0xff]
      %v4847 = vld [vmem:[#allocation2 + $0x168] sm:$0xff]
      %v4848 = vld [vmem:[#allocation2 + $0x170] sm:$0xff]
      %v4849 = vld [vmem:[#allocation2 + $0x178] sm:$0xff]
      %v4850 = vld [vmem:[#allocation2 + $0x190] sm:$0xff]
      %v4851 = vld [vmem:[#allocation2 + $0x198] sm:$0xff]
      %v4852 = vld [vmem:[#allocation2 + $0x1a0] sm:$0xff]
      %v4853 = vld [vmem:[#allocation2 + $0x1a8] sm:$0xff]
      %v4854 = vld [vmem:[#allocation2 + $0x1b0] sm:$0xff]
      %v4855 = vld [vmem:[#allocation2 + $0x1b8] sm:$0xff]
      %v4856 = vld [vmem:[#allocation2 + $0x1d0] sm:$0xff]
      %v4857 = vld [vmem:[#allocation2 + $0x1d8] sm:$0xff]
      %v4858 = vld [vmem:[#allocation2 + $0x1e0] sm:$0xff]
      %v4859 = vld [vmem:[#allocation2 + $0x1e8] sm:$0xff]
      %v4860 = vld [vmem:[#allocation2 + $0x1f0] sm:$0xff]
      %v4861 = vld [vmem:[#allocation2 + $0x1f8] sm:$0xff]
      %v4862 = vadd.f32 %v4814, %v4444
      %v4863 = vadd.f32 %v4815, %v4473
      %v4864 = vadd.f32 %v4816, %v4502
      %v4865 = vadd.f32 %v4817, %v4531
      %v4866 = vadd.f32 %v4818, %v4560
      %v4867 = vadd.f32 %v4819, %v4589
      %v4868 = vadd.f32 %v4820, %v4446
      %v4869 = vadd.f32 %v4821, %v4475
      %v4870 = vadd.f32 %v4822, %v4504
      %v4871 = vadd.f32 %v4823, %v4533
      %v4872 = vadd.f32 %v4824, %v4562
      %v4873 = vadd.f32 %v4825, %v4591
      %v4874 = vadd.f32 %v4826, %v4449
      %v4875 = vadd.f32 %v4827, %v4478
      %v4876 = vadd.f32 %v4828, %v4507
      %v4877 = vadd.f32 %v4829, %v4536
      %v4878 = vadd.f32 %v4830, %v4565
      %v4879 = vadd.f32 %v4831, %v4594
      %v4880 = vadd.f32 %v4832, %v4451
      %v4881 = vadd.f32 %v4833, %v4480
      %v4882 = vadd.f32 %v4834, %v4509
      %v4883 = vadd.f32 %v4835, %v4538
      %v4884 = vadd.f32 %v4836, %v4567
      %v4885 = vadd.f32 %v4837, %v4596
      %v4886 = vadd.f32 %v4838, %v4454
      %v4887 = vadd.f32 %v4839, %v4483
      %v4888 = vadd.f32 %v4840, %v4512
      %v4889 = vadd.f32 %v4841, %v4541
      %v4890 = vadd.f32 %v4842, %v4570
      %v4891 = vadd.f32 %v4843, %v4599
      %v4892 = vadd.f32 %v4844, %v4456
      %v4893 = vadd.f32 %v4845, %v4485
      %v4894 = vadd.f32 %v4846, %v4514
      %v4895 = vadd.f32 %v4847, %v4543
      %v4896 = vadd.f32 %v4848, %v4572
      %v4897 = vadd.f32 %v4849, %v4601
      %v4898 = vadd.f32 %v4850, %v4459
      %v4899 = vadd.f32 %v4851, %v4488
      %v4900 = vadd.f32 %v4852, %v4517
      %v4901 = vadd.f32 %v4853, %v4546
      %v4902 = vadd.f32 %v4854, %v4575
      %v4903 = vadd.f32 %v4855, %v4604
      %v4904 = vadd.f32 %v4856, %v4461
      %v4905 = vadd.f32 %v4857, %v4490
      %v4906 = vadd.f32 %v4858, %v4519
      %v4907 = vadd.f32 %v4859, %v4548
      %v4908 = vadd.f32 %v4860, %v4577
      %v4909 = vadd.f32 %v4861, %v4606
      %4910 = vst [vmem:[#allocation2 + $0x10] sm:$0xff] %v4862
      %4911 = vst [vmem:[#allocation2 + $0x18] sm:$0xff] %v4863
      %4912 = vst [vmem:[#allocation2 + $0x20] sm:$0xff] %v4864
      %4913 = vst [vmem:[#allocation2 + $0x28] sm:$0xff] %v4865
      %4914 = vst [vmem:[#allocation2 + $0x30] sm:$0xff] %v4866
      %4915 = vst [vmem:[#allocation2 + $0x38] sm:$0xff] %v4867
      %4916 = vst [vmem:[#allocation2 + $0x50] sm:$0xff] %v4868
      %4917 = vst [vmem:[#allocation2 + $0x58] sm:$0xff] %v4869
      %4918 = vst [vmem:[#allocation2 + $0x60] sm:$0xff] %v4870
      %4919 = vst [vmem:[#allocation2 + $0x68] sm:$0xff] %v4871
      %4920 = vst [vmem:[#allocation2 + $0x70] sm:$0xff] %v4872
      %4921 = vst [vmem:[#allocation2 + $0x78] sm:$0xff] %v4873
      %4922 = vst [vmem:[#allocation2 + $0x90] sm:$0xff] %v4874
      %4923 = vst [vmem:[#allocation2 + $0x98] sm:$0xff] %v4875
      %4924 = vst [vmem:[#allocation2 + $0xa0] sm:$0xff] %v4876
      %4925 = vst [vmem:[#allocation2 + $0xa8] sm:$0xff] %v4877
      %4926 = vst [vmem:[#allocation2 + $0xb0] sm:$0xff] %v4878
      %4927 = vst [vmem:[#allocation2 + $0xb8] sm:$0xff] %v4879
      %4928 = vst [vmem:[#allocation2 + $0xd0] sm:$0xff] %v4880
      %4929 = vst [vmem:[#allocation2 + $0xd8] sm:$0xff] %v4881
      %4930 = vst [vmem:[#allocation2 + $0xe0] sm:$0xff] %v4882
      %4931 = vst [vmem:[#allocation2 + $0xe8] sm:$0xff] %v4883
      %4932 = vst [vmem:[#allocation2 + $0xf0] sm:$0xff] %v4884
      %4933 = vst [vmem:[#allocation2 + $0xf8] sm:$0xff] %v4885
      %4934 = vst [vmem:[#allocation2 + $0x110] sm:$0xff] %v4886
      %4935 = vst [vmem:[#allocation2 + $0x118] sm:$0xff] %v4887
      %4936 = vst [vmem:[#allocation2 + $0x120] sm:$0xff] %v4888
      %4937 = vst [vmem:[#allocation2 + $0x128] sm:$0xff] %v4889
      %4938 = vst [vmem:[#allocation2 + $0x130] sm:$0xff] %v4890
      %4939 = vst [vmem:[#allocation2 + $0x138] sm:$0xff] %v4891
      %4940 = vst [vmem:[#allocation2 + $0x150] sm:$0xff] %v4892
      %4941 = vst [vmem:[#allocation2 + $0x158] sm:$0xff] %v4893
      %4942 = vst [vmem:[#allocation2 + $0x160] sm:$0xff] %v4894
      %4943 = vst [vmem:[#allocation2 + $0x168] sm:$0xff] %v4895
      %4944 = vst [vmem:[#allocation2 + $0x170] sm:$0xff] %v4896
      %4945 = vst [vmem:[#allocation2 + $0x178] sm:$0xff] %v4897
      %4946 = vst [vmem:[#allocation2 + $0x190] sm:$0xff] %v4898
      %4947 = vst [vmem:[#allocation2 + $0x198] sm:$0xff] %v4899
      %4948 = vst [vmem:[#allocation2 + $0x1a0] sm:$0xff] %v4900
      %4949 = vst [vmem:[#allocation2 + $0x1a8] sm:$0xff] %v4901
      %4950 = vst [vmem:[#allocation2 + $0x1b0] sm:$0xff] %v4902
      %4951 = vst [vmem:[#allocation2 + $0x1b8] sm:$0xff] %v4903
      %4952 = vst [vmem:[#allocation2 + $0x1d0] sm:$0xff] %v4904
      %4953 = vst [vmem:[#allocation2 + $0x1d8] sm:$0xff] %v4905
      %4954 = vst [vmem:[#allocation2 + $0x1e0] sm:$0xff] %v4906
      %4955 = vst [vmem:[#allocation2 + $0x1e8] sm:$0xff] %v4907
      %4956 = vst [vmem:[#allocation2 + $0x1f0] sm:$0xff] %v4908
      %4957 = vst [vmem:[#allocation2 + $0x1f8] sm:$0xff] %v4909
      %v4958 = vld [vmem:[#allocation2] sm:$0xff]
      %v4959 = vld [vmem:[#allocation2 + $0x8] sm:$0xff]
      %v4960 = vld [vmem:[#allocation2 + $0x10] sm:$0xff]
      %v4961 = vld [vmem:[#allocation2 + $0x18] sm:$0xff]
      %v4962 = vld [vmem:[#allocation2 + $0x20] sm:$0xff]
      %v4963 = vld [vmem:[#allocation2 + $0x28] sm:$0xff]
      %v4964 = vld [vmem:[#allocation2 + $0x40] sm:$0xff]
      %v4965 = vld [vmem:[#allocation2 + $0x48] sm:$0xff]
      %v4966 = vld [vmem:[#allocation2 + $0x50] sm:$0xff]
      %v4967 = vld [vmem:[#allocation2 + $0x58] sm:$0xff]
      %v4968 = vld [vmem:[#allocation2 + $0x60] sm:$0xff]
      %v4969 = vld [vmem:[#allocation2 + $0x68] sm:$0xff]
      %v4970 = vld [vmem:[#allocation2 + $0x80] sm:$0xff]
      %v4971 = vld [vmem:[#allocation2 + $0x88] sm:$0xff]
      %v4972 = vld [vmem:[#allocation2 + $0x90] sm:$0xff]
      %v4973 = vld [vmem:[#allocation2 + $0x98] sm:$0xff]
      %v4974 = vld [vmem:[#allocation2 + $0xa0] sm:$0xff]
      %v4975 = vld [vmem:[#allocation2 + $0xa8] sm:$0xff]
      %v4976 = vld [vmem:[#allocation2 + $0xc0] sm:$0xff]
      %v4977 = vld [vmem:[#allocation2 + $0xc8] sm:$0xff]
      %v4978 = vld [vmem:[#allocation2 + $0xd0] sm:$0xff]
      %v4979 = vld [vmem:[#allocation2 + $0xd8] sm:$0xff]
      %v4980 = vld [vmem:[#allocation2 + $0xe0] sm:$0xff]
      %v4981 = vld [vmem:[#allocation2 + $0xe8] sm:$0xff]
      %v4982 = vld [vmem:[#allocation2 + $0x100] sm:$0xff]
      %v4983 = vld [vmem:[#allocation2 + $0x108] sm:$0xff]
      %v4984 = vld [vmem:[#allocation2 + $0x110] sm:$0xff]
      %v4985 = vld [vmem:[#allocation2 + $0x118] sm:$0xff]
      %v4986 = vld [vmem:[#allocation2 + $0x120] sm:$0xff]
      %v4987 = vld [vmem:[#allocation2 + $0x128] sm:$0xff]
      %v4988 = vld [vmem:[#allocation2 + $0x140] sm:$0xff]
      %v4989 = vld [vmem:[#allocation2 + $0x148] sm:$0xff]
      %v4990 = vld [vmem:[#allocation2 + $0x150] sm:$0xff]
      %v4991 = vld [vmem:[#allocation2 + $0x158] sm:$0xff]
      %v4992 = vld [vmem:[#allocation2 + $0x160] sm:$0xff]
      %v4993 = vld [vmem:[#allocation2 + $0x168] sm:$0xff]
      %v4994 = vld [vmem:[#allocation2 + $0x180] sm:$0xff]
      %v4995 = vld [vmem:[#allocation2 + $0x188] sm:$0xff]
      %v4996 = vld [vmem:[#allocation2 + $0x190] sm:$0xff]
      %v4997 = vld [vmem:[#allocation2 + $0x198] sm:$0xff]
      %v4998 = vld [vmem:[#allocation2 + $0x1a0] sm:$0xff]
      %v4999 = vld [vmem:[#allocation2 + $0x1a8] sm:$0xff]
      %v5000 = vld [vmem:[#allocation2 + $0x1c0] sm:$0xff]
      %v5001 = vld [vmem:[#allocation2 + $0x1c8] sm:$0xff]
      %v5002 = vld [vmem:[#allocation2 + $0x1d0] sm:$0xff]
      %v5003 = vld [vmem:[#allocation2 + $0x1d8] sm:$0xff]
      %v5004 = vld [vmem:[#allocation2 + $0x1e0] sm:$0xff]
      %v5005 = vld [vmem:[#allocation2 + $0x1e8] sm:$0xff]
      %v5006 = vadd.f32 %v4958, %v4650
      %v5007 = vadd.f32 %v4959, %v4679
      %v5008 = vadd.f32 %v4960, %v4708
      %v5009 = vadd.f32 %v4961, %v4737
      %v5010 = vadd.f32 %v4962, %v4766
      %v5011 = vadd.f32 %v4963, %v4795
      %v5012 = vadd.f32 %v4964, %v4652
      %v5013 = vadd.f32 %v4965, %v4681
      %v5014 = vadd.f32 %v4966, %v4710
      %v5015 = vadd.f32 %v4967, %v4739
      %v5016 = vadd.f32 %v4968, %v4768
      %v5017 = vadd.f32 %v4969, %v4797
      %v5018 = vadd.f32 %v4970, %v4655
      %v5019 = vadd.f32 %v4971, %v4684
      %v5020 = vadd.f32 %v4972, %v4713
      %v5021 = vadd.f32 %v4973, %v4742
      %v5022 = vadd.f32 %v4974, %v4771
      %v5023 = vadd.f32 %v4975, %v4800
      %v5024 = vadd.f32 %v4976, %v4657
      %v5025 = vadd.f32 %v4977, %v4686
      %v5026 = vadd.f32 %v4978, %v4715
      %v5027 = vadd.f32 %v4979, %v4744
      %v5028 = vadd.f32 %v4980, %v4773
      %v5029 = vadd.f32 %v4981, %v4802
      %v5030 = vadd.f32 %v4982, %v4660
      %v5031 = vadd.f32 %v4983, %v4689
      %v5032 = vadd.f32 %v4984, %v4718
      %v5033 = vadd.f32 %v4985, %v4747
      %v5034 = vadd.f32 %v4986, %v4776
      %v5035 = vadd.f32 %v4987, %v4805
      %v5036 = vadd.f32 %v4988, %v4662
      %v5037 = vadd.f32 %v4989, %v4691
      %v5038 = vadd.f32 %v4990, %v4720
      %v5039 = vadd.f32 %v4991, %v4749
      %v5040 = vadd.f32 %v4992, %v4778
      %v5041 = vadd.f32 %v4993, %v4807
      %v5042 = vadd.f32 %v4994, %v4665
      %v5043 = vadd.f32 %v4995, %v4694
      %v5044 = vadd.f32 %v4996, %v4723
      %v5045 = vadd.f32 %v4997, %v4752
      %v5046 = vadd.f32 %v4998, %v4781
      %v5047 = vadd.f32 %v4999, %v4810
      %v5048 = vadd.f32 %v5000, %v4667
      %v5049 = vadd.f32 %v5001, %v4696
      %v5050 = vadd.f32 %v5002, %v4725
      %v5051 = vadd.f32 %v5003, %v4754
      %v5052 = vadd.f32 %v5004, %v4783
      %v5053 = vadd.f32 %v5005, %v4812
      %5054 = vst [vmem:[#allocation2] sm:$0xff] %v5006
      %5055 = vst [vmem:[#allocation2 + $0x8] sm:$0xff] %v5007
      %5056 = vst [vmem:[#allocation2 + $0x10] sm:$0xff] %v5008
      %5057 = vst [vmem:[#allocation2 + $0x18] sm:$0xff] %v5009
      %5058 = vst [vmem:[#allocation2 + $0x20] sm:$0xff] %v5010
      %5059 = vst [vmem:[#allocation2 + $0x28] sm:$0xff] %v5011
      %5060 = vst [vmem:[#allocation2 + $0x40] sm:$0xff] %v5012
      %5061 = vst [vmem:[#allocation2 + $0x48] sm:$0xff] %v5013
      %5062 = vst [vmem:[#allocation2 + $0x50] sm:$0xff] %v5014
      %5063 = vst [vmem:[#allocation2 + $0x58] sm:$0xff] %v5015
      %5064 = vst [vmem:[#allocation2 + $0x60] sm:$0xff] %v5016
      %5065 = vst [vmem:[#allocation2 + $0x68] sm:$0xff] %v5017
      %5066 = vst [vmem:[#allocation2 + $0x80] sm:$0xff] %v5018
      %5067 = vst [vmem:[#allocation2 + $0x88] sm:$0xff] %v5019
      %5068 = vst [vmem:[#allocation2 + $0x90] sm:$0xff] %v5020
      %5069 = vst [vmem:[#allocation2 + $0x98] sm:$0xff] %v5021
      %5070 = vst [vmem:[#allocation2 + $0xa0] sm:$0xff] %v5022
      %5071 = vst [vmem:[#allocation2 + $0xa8] sm:$0xff] %v5023
      %5072 = vst [vmem:[#allocation2 + $0xc0] sm:$0xff] %v5024
      %5073 = vst [vmem:[#allocation2 + $0xc8] sm:$0xff] %v5025
      %5074 = vst [vmem:[#allocation2 + $0xd0] sm:$0xff] %v5026
      %5075 = vst [vmem:[#allocation2 + $0xd8] sm:$0xff] %v5027
      %5076 = vst [vmem:[#allocation2 + $0xe0] sm:$0xff] %v5028
      %5077 = vst [vmem:[#allocation2 + $0xe8] sm:$0xff] %v5029
      %5078 = vst [vmem:[#allocation2 + $0x100] sm:$0xff] %v5030
      %5079 = vst [vmem:[#allocation2 + $0x108] sm:$0xff] %v5031
      %5080 = vst [vmem:[#allocation2 + $0x110] sm:$0xff] %v5032
      %5081 = vst [vmem:[#allocation2 + $0x118] sm:$0xff] %v5033
      %5082 = vst [vmem:[#allocation2 + $0x120] sm:$0xff] %v5034
      %5083 = vst [vmem:[#allocation2 + $0x128] sm:$0xff] %v5035
      %5084 = vst [vmem:[#allocation2 + $0x140] sm:$0xff] %v5036
      %5085 = vst [vmem:[#allocation2 + $0x148] sm:$0xff] %v5037
      %5086 = vst [vmem:[#allocation2 + $0x150] sm:$0xff] %v5038
      %5087 = vst [vmem:[#allocation2 + $0x158] sm:$0xff] %v5039
      %5088 = vst [vmem:[#allocation2 + $0x160] sm:$0xff] %v5040
      %5089 = vst [vmem:[#allocation2 + $0x168] sm:$0xff] %v5041
      %5090 = vst [vmem:[#allocation2 + $0x180] sm:$0xff] %v5042
      %5091 = vst [vmem:[#allocation2 + $0x188] sm:$0xff] %v5043
      %5092 = vst [vmem:[#allocation2 + $0x190] sm:$0xff] %v5044
      %5093 = vst [vmem:[#allocation2 + $0x198] sm:$0xff] %v5045
      %5094 = vst [vmem:[#allocation2 + $0x1a0] sm:$0xff] %v5046
      %5095 = vst [vmem:[#allocation2 + $0x1a8] sm:$0xff] %v5047
      %5096 = vst [vmem:[#allocation2 + $0x1c0] sm:$0xff] %v5048
      %5097 = vst [vmem:[#allocation2 + $0x1c8] sm:$0xff] %v5049
      %5098 = vst [vmem:[#allocation2 + $0x1d0] sm:$0xff] %v5050
      %5099 = vst [vmem:[#allocation2 + $0x1d8] sm:$0xff] %v5051
      %5100 = vst [vmem:[#allocation2 + $0x1e0] sm:$0xff] %v5052
      %5101 = vst [vmem:[#allocation2 + $0x1e8] sm:$0xff] %v5053
      %v5102 = vld [vmem:[#allocation2] sm:$0xff]
      %v5103 = vld [vmem:[#allocation2 + $0x8] sm:$0xff]
      %v5104 = vld [vmem:[#allocation2 + $0x10] sm:$0xff]
      %v5105 = vld [vmem:[#allocation2 + $0x18] sm:$0xff]
      %v5106 = vld [vmem:[#allocation2 + $0x20] sm:$0xff]
      %v5107 = vld [vmem:[#allocation2 + $0x28] sm:$0xff]
      %v5108 = vld [vmem:[#allocation2 + $0x30] sm:$0xff]
      %v5109 = vld [vmem:[#allocation2 + $0x38] sm:$0xff]
      %v5110 = vld [vmem:[#allocation2 + $0x40] sm:$0xff]
      %v5111 = vld [vmem:[#allocation2 + $0x48] sm:$0xff]
      %v5112 = vld [vmem:[#allocation2 + $0x50] sm:$0xff]
      %v5113 = vld [vmem:[#allocation2 + $0x58] sm:$0xff]
      %v5114 = vld [vmem:[#allocation2 + $0x60] sm:$0xff]
      %v5115 = vld [vmem:[#allocation2 + $0x68] sm:$0xff]
      %v5116 = vld [vmem:[#allocation2 + $0x70] sm:$0xff]
      %v5117 = vld [vmem:[#allocation2 + $0x78] sm:$0xff]
      %v5118 = vld [vmem:[#allocation2 + $0x80] sm:$0xff]
      %v5119 = vld [vmem:[#allocation2 + $0x88] sm:$0xff]
      %v5120 = vld [vmem:[#allocation2 + $0x90] sm:$0xff]
      %v5121 = vld [vmem:[#allocation2 + $0x98] sm:$0xff]
      %v5122 = vld [vmem:[#allocation2 + $0xa0] sm:$0xff]
      %v5123 = vld [vmem:[#allocation2 + $0xa8] sm:$0xff]
      %v5124 = vld [vmem:[#allocation2 + $0xb0] sm:$0xff]
      %v5125 = vld [vmem:[#allocation2 + $0xb8] sm:$0xff]
      %v5126 = vld [vmem:[#allocation2 + $0xc0] sm:$0xff]
      %v5127 = vld [vmem:[#allocation2 + $0xc8] sm:$0xff]
      %v5128 = vld [vmem:[#allocation2 + $0xd0] sm:$0xff]
      %v5129 = vld [vmem:[#allocation2 + $0xd8] sm:$0xff]
      %v5130 = vld [vmem:[#allocation2 + $0xe0] sm:$0xff]
      %v5131 = vld [vmem:[#allocation2 + $0xe8] sm:$0xff]
      %v5132 = vld [vmem:[#allocation2 + $0xf0] sm:$0xff]
      %v5133 = vld [vmem:[#allocation2 + $0xf8] sm:$0xff]
      %v5134 = vld [vmem:[#allocation2 + $0x100] sm:$0xff]
      %v5135 = vld [vmem:[#allocation2 + $0x108] sm:$0xff]
      %v5136 = vld [vmem:[#allocation2 + $0x110] sm:$0xff]
      %v5137 = vld [vmem:[#allocation2 + $0x118] sm:$0xff]
      %v5138 = vld [vmem:[#allocation2 + $0x120] sm:$0xff]
      %v5139 = vld [vmem:[#allocation2 + $0x128] sm:$0xff]
      %v5140 = vld [vmem:[#allocation2 + $0x130] sm:$0xff]
      %v5141 = vld [vmem:[#allocation2 + $0x138] sm:$0xff]
      %v5142 = vld [vmem:[#allocation2 + $0x140] sm:$0xff]
      %v5143 = vld [vmem:[#allocation2 + $0x148] sm:$0xff]
      %v5144 = vld [vmem:[#allocation2 + $0x150] sm:$0xff]
      %v5145 = vld [vmem:[#allocation2 + $0x158] sm:$0xff]
      %v5146 = vld [vmem:[#allocation2 + $0x160] sm:$0xff]
      %v5147 = vld [vmem:[#allocation2 + $0x168] sm:$0xff]
      %v5148 = vld [vmem:[#allocation2 + $0x170] sm:$0xff]
      %v5149 = vld [vmem:[#allocation2 + $0x178] sm:$0xff]
      %v5150 = vld [vmem:[#allocation2 + $0x180] sm:$0xff]
      %v5151 = vld [vmem:[#allocation2 + $0x188] sm:$0xff]
      %v5152 = vld [vmem:[#allocation2 + $0x190] sm:$0xff]
      %v5153 = vld [vmem:[#allocation2 + $0x198] sm:$0xff]
      %v5154 = vld [vmem:[#allocation2 + $0x1a0] sm:$0xff]
      %v5155 = vld [vmem:[#allocation2 + $0x1a8] sm:$0xff]
      %v5156 = vld [vmem:[#allocation2 + $0x1b0] sm:$0xff]
      %v5157 = vld [vmem:[#allocation2 + $0x1b8] sm:$0xff]
      %v5158 = vld [vmem:[#allocation2 + $0x1c0] sm:$0xff]
      %v5159 = vld [vmem:[#allocation2 + $0x1c8] sm:$0xff]
      %v5160 = vld [vmem:[#allocation2 + $0x1d0] sm:$0xff]
      %v5161 = vld [vmem:[#allocation2 + $0x1d8] sm:$0xff]
      %v5162 = vld [vmem:[#allocation2 + $0x1e0] sm:$0xff]
      %v5163 = vld [vmem:[#allocation2 + $0x1e8] sm:$0xff]
      %v5164 = vld [vmem:[#allocation2 + $0x1f0] sm:$0xff]
      %v5165 = vld [vmem:[#allocation2 + $0x1f8] sm:$0xff]
      %v5166 = vld [vmem:[%s16] sm:$0xf]
      %v5167 = vld [vmem:[%s16 + $0x4] sm:$0xf]
      %v5168 = vld [vmem:[%s16 + $0x8] sm:$0xf]
      %v5169 = vld [vmem:[%s16 + $0xc] sm:$0xf]
      %v5170 = vld [vmem:[%s16 + $0x10] sm:$0xf]
      %v5171 = vld [vmem:[%s16 + $0x14] sm:$0xf]
      %v5172 = vld [vmem:[%s16 + $0x18] sm:$0xf]
      %v5173 = vld [vmem:[%s16 + $0x1c] sm:$0xf]
      %v5174 = vld [vmem:[%s581] sm:$0xff]
      %v5175 = vld [vmem:[%s581 + $0x8] sm:$0xff]
      %v5176 = vld [vmem:[%s581 + $0x10] sm:$0xff]
      %v5177 = vld [vmem:[%s581 + $0x18] sm:$0xff]
      %v5178 = vld [vmem:[%s581 + $0x20] sm:$0xff]
      %v5179 = vld [vmem:[%s581 + $0x28] sm:$0xff]
      %v5180 = vld [vmem:[%s581 + $0x30] sm:$0xff]
      %v5181 = vld [vmem:[%s581 + $0x38] sm:$0xff]
      %v5182 = vld [vmem:[%s581 + $0x40] sm:$0xff]
      %v5183 = vld [vmem:[%s581 + $0x48] sm:$0xff]
      %v5184 = vld [vmem:[%s581 + $0x50] sm:$0xff]
      %v5185 = vld [vmem:[%s581 + $0x58] sm:$0xff]
      %v5186 = vld [vmem:[%s581 + $0x60] sm:$0xff]
      %v5187 = vld [vmem:[%s581 + $0x68] sm:$0xff]
      %v5188 = vld [vmem:[%s581 + $0x70] sm:$0xff]
      %v5189 = vld [vmem:[%s581 + $0x78] sm:$0xff]
      %v5190 = vld [vmem:[%s17] sm:$0xff]
      %v5191 = vld [vmem:[%s17 + $0x8] sm:$0xff]
      %v5192 = vld [vmem:[%s17 + $0x10] sm:$0xff]
      %v5193 = vld [vmem:[%s17 + $0x18] sm:$0xff]
      %v5194 = vld [vmem:[%s17 + $0x20] sm:$0xff]
      %v5195 = vld [vmem:[%s17 + $0x28] sm:$0xff]
      %v5196 = vld [vmem:[%s17 + $0x30] sm:$0xff]
      %v5197 = vld [vmem:[%s17 + $0x38] sm:$0xff]
      %5199 = vset.pattern.permute.xlu0 0
      %5200 = vperm.xlu0 %5199, %v5190
      %v5201 = vpop.permute.xlu0 %5200
      %5204 = vset.pattern.permute.xlu0 0
      %5205 = vperm.xlu0 %5204, %v5191
      %v5206 = vpop.permute.xlu0 %5205
      %5209 = vset.pattern.permute.xlu0 0
      %5210 = vperm.xlu0 %5209, %v5192
      %v5211 = vpop.permute.xlu0 %5210
      %5214 = vset.pattern.permute.xlu0 0
      %5215 = vperm.xlu0 %5214, %v5193
      %v5216 = vpop.permute.xlu0 %5215
      %5219 = vset.pattern.permute.xlu0 0
      %5220 = vperm.xlu0 %5219, %v5194
      %v5221 = vpop.permute.xlu0 %5220
      %5224 = vset.pattern.permute.xlu0 0
      %5225 = vperm.xlu0 %5224, %v5195
      %v5226 = vpop.permute.xlu0 %5225
      %5229 = vset.pattern.permute.xlu0 0
      %5230 = vperm.xlu0 %5229, %v5196
      %v5231 = vpop.permute.xlu0 %5230
      %5234 = vset.pattern.permute.xlu0 0
      %5235 = vperm.xlu0 %5234, %v5197
      %v5236 = vpop.permute.xlu0 %5235
      %v5246 = vunpack.c.l.b16 %v5166
      %v5247 = vunpack.c.l.b16 %v5167
      %v5248 = vunpack.c.l.b16 %v5168
      %v5249 = vunpack.c.l.b16 %v5169
      %v5250 = vunpack.c.l.b16 %v5170
      %v5251 = vunpack.c.l.b16 %v5171
      %v5252 = vunpack.c.l.b16 %v5172
      %v5253 = vunpack.c.l.b16 %v5173
      %v5254 = vpack.c.b16 %v5247, %v5246
      %v5255 = vpack.c.b16 %v5249, %v5248
      %v5256 = vpack.c.b16 %v5251, %v5250
      %v5257 = vpack.c.b16 %v5253, %v5252
      %v5274 = vunpack.c.l.b16 %v5174
      %v5275 = vunpack.c.h.b16 %v5174
      %v5276 = vunpack.c.l.b16 %v5175
      %v5277 = vunpack.c.h.b16 %v5175
      %v5278 = vunpack.c.l.b16 %v5176
      %v5279 = vunpack.c.h.b16 %v5176
      %v5280 = vunpack.c.l.b16 %v5177
      %v5281 = vunpack.c.h.b16 %v5177
      %v5282 = vunpack.c.l.b16 %v5178
      %v5283 = vunpack.c.h.b16 %v5178
      %v5284 = vunpack.c.l.b16 %v5179
      %v5285 = vunpack.c.h.b16 %v5179
      %v5286 = vunpack.c.l.b16 %v5180
      %v5287 = vunpack.c.h.b16 %v5180
      %v5288 = vunpack.c.l.b16 %v5181
      %v5289 = vunpack.c.h.b16 %v5181
      %v5290 = vunpack.c.l.b16 %v5182
      %v5291 = vunpack.c.h.b16 %v5182
      %v5292 = vunpack.c.l.b16 %v5183
      %v5293 = vunpack.c.h.b16 %v5183
      %v5294 = vunpack.c.l.b16 %v5184
      %v5295 = vunpack.c.h.b16 %v5184
      %v5296 = vunpack.c.l.b16 %v5185
      %v5297 = vunpack.c.h.b16 %v5185
      %v5298 = vunpack.c.l.b16 %v5186
      %v5299 = vunpack.c.h.b16 %v5186
      %v5300 = vunpack.c.l.b16 %v5187
      %v5301 = vunpack.c.h.b16 %v5187
      %v5302 = vunpack.c.l.b16 %v5188
      %v5303 = vunpack.c.h.b16 %v5188
      %v5304 = vunpack.c.l.b16 %v5189
      %v5305 = vunpack.c.h.b16 %v5189
      %v5306 = vpack.c.b16 %v5282, %v5274
      %v5307 = vpack.c.b16 %v5283, %v5275
      %v5308 = vpack.c.b16 %v5284, %v5276
      %v5309 = vpack.c.b16 %v5285, %v5277
      %v5310 = vpack.c.b16 %v5286, %v5278
      %v5311 = vpack.c.b16 %v5287, %v5279
      %v5312 = vpack.c.b16 %v5288, %v5280
      %v5313 = vpack.c.b16 %v5289, %v5281
      %v5314 = vpack.c.b16 %v5298, %v5290
      %v5315 = vpack.c.b16 %v5299, %v5291
      %v5316 = vpack.c.b16 %v5300, %v5292
      %v5317 = vpack.c.b16 %v5301, %v5293
      %v5318 = vpack.c.b16 %v5302, %v5294
      %v5319 = vpack.c.b16 %v5303, %v5295
      %v5320 = vpack.c.b16 %v5304, %v5296
      %v5321 = vpack.c.b16 %v5305, %v5297
      %v5339 = vsel %vm644, %v5254, 0
      %v5342 = vsel %vm644, %v5255, 0
      %v5345 = vsel %vm644, %v5256, 0
      %v5348 = vsel %vm644, %v5257, 0
      %5350 = vmatpush.bf16.msra.mxu0 0
      %5351 = vmatpush.bf16.msra.mxu0 0
      %5352 = vmatpush.bf16.msra.mxu0 0
      %5353 = vmatpush.bf16.msra.mxu0 0
      %5354 = vmatpush.bf16.msra.mxu0 0
      %5355 = vmatpush.bf16.msra.mxu0 0
      %5356 = vmatpush.bf16.msra.mxu0 %v5314
      %5357 = vmatpush.bf16.msra.mxu0 %v5306
      %5358 = vmatmul.bf16.gmra.mxu0 %v5339
      %v5359 = vpop.f32.mrf.mxu0
      %v5360 = vadd.f32 %v5201, %v5359
      %v5361 = vpop.f32.mrf.mxu0
      %v5362 = vadd.f32 %v5206, %v5361
      %5363 = vmatmul.bf16.gmra.mxu0 %v5342
      %v5364 = vpop.f32.mrf.mxu0
      %v5365 = vadd.f32 %v5211, %v5364
      %v5366 = vpop.f32.mrf.mxu0
      %v5367 = vadd.f32 %v5216, %v5366
      %5368 = vmatmul.bf16.gmra.mxu0 %v5345
      %v5369 = vpop.f32.mrf.mxu0
      %v5370 = vadd.f32 %v5221, %v5369
      %v5371 = vpop.f32.mrf.mxu0
      %v5372 = vadd.f32 %v5226, %v5371
      %5373 = vmatmul.bf16.gmra.mxu0 %v5348
      %v5374 = vpop.f32.mrf.mxu0
      %v5375 = vadd.f32 %v5231, %v5374
      %v5376 = vpop.f32.mrf.mxu0
      %v5377 = vadd.f32 %v5236, %v5376
      %5378 = vdwg.mxu0
      %5379 = vmatpush.bf16.msra.mxu0 0
      %5380 = vmatpush.bf16.msra.mxu0 0
      %5381 = vmatpush.bf16.msra.mxu0 0
      %5382 = vmatpush.bf16.msra.mxu0 0
      %5383 = vmatpush.bf16.msra.mxu0 0
      %5384 = vmatpush.bf16.msra.mxu0 0
      %5385 = vmatpush.bf16.msra.mxu0 %v5315
      %5386 = vmatpush.bf16.msra.mxu0 %v5307
      %5387 = vmatmul.bf16.gmra.mxu0 %v5339
      %v5388 = vpop.f32.mrf.mxu0
      %v5389 = vadd.f32 %v5201, %v5388
      %v5390 = vpop.f32.mrf.mxu0
      %v5391 = vadd.f32 %v5206, %v5390
      %5392 = vmatmul.bf16.gmra.mxu0 %v5342
      %v5393 = vpop.f32.mrf.mxu0
      %v5394 = vadd.f32 %v5211, %v5393
      %v5395 = vpop.f32.mrf.mxu0
      %v5396 = vadd.f32 %v5216, %v5395
      %5397 = vmatmul.bf16.gmra.mxu0 %v5345
      %v5398 = vpop.f32.mrf.mxu0
      %v5399 = vadd.f32 %v5221, %v5398
      %v5400 = vpop.f32.mrf.mxu0
      %v5401 = vadd.f32 %v5226, %v5400
      %5402 = vmatmul.bf16.gmra.mxu0 %v5348
      %v5403 = vpop.f32.mrf.mxu0
      %v5404 = vadd.f32 %v5231, %v5403
      %v5405 = vpop.f32.mrf.mxu0
      %v5406 = vadd.f32 %v5236, %v5405
      %5407 = vdwg.mxu0
      %5408 = vmatpush.bf16.msra.mxu0 0
      %5409 = vmatpush.bf16.msra.mxu0 0
      %5410 = vmatpush.bf16.msra.mxu0 0
      %5411 = vmatpush.bf16.msra.mxu0 0
      %5412 = vmatpush.bf16.msra.mxu0 0
      %5413 = vmatpush.bf16.msra.mxu0 0
      %5414 = vmatpush.bf16.msra.mxu0 %v5316
      %5415 = vmatpush.bf16.msra.mxu0 %v5308
      %5416 = vmatmul.bf16.gmra.mxu0 %v5339
      %v5417 = vpop.f32.mrf.mxu0
      %v5418 = vadd.f32 %v5201, %v5417
      %v5419 = vpop.f32.mrf.mxu0
      %v5420 = vadd.f32 %v5206, %v5419
      %5421 = vmatmul.bf16.gmra.mxu0 %v5342
      %v5422 = vpop.f32.mrf.mxu0
      %v5423 = vadd.f32 %v5211, %v5422
      %v5424 = vpop.f32.mrf.mxu0
      %v5425 = vadd.f32 %v5216, %v5424
      %5426 = vmatmul.bf16.gmra.mxu0 %v5345
      %v5427 = vpop.f32.mrf.mxu0
      %v5428 = vadd.f32 %v5221, %v5427
      %v5429 = vpop.f32.mrf.mxu0
      %v5430 = vadd.f32 %v5226, %v5429
      %5431 = vmatmul.bf16.gmra.mxu0 %v5348
      %v5432 = vpop.f32.mrf.mxu0
      %v5433 = vadd.f32 %v5231, %v5432
      %v5434 = vpop.f32.mrf.mxu0
      %v5435 = vadd.f32 %v5236, %v5434
      %5436 = vdwg.mxu0
      %5437 = vmatpush.bf16.msra.mxu0 0
      %5438 = vmatpush.bf16.msra.mxu0 0
      %5439 = vmatpush.bf16.msra.mxu0 0
      %5440 = vmatpush.bf16.msra.mxu0 0
      %5441 = vmatpush.bf16.msra.mxu0 0
      %5442 = vmatpush.bf16.msra.mxu0 0
      %5443 = vmatpush.bf16.msra.mxu0 %v5317
      %5444 = vmatpush.bf16.msra.mxu0 %v5309
      %5445 = vmatmul.bf16.gmra.mxu0 %v5339
      %v5446 = vpop.f32.mrf.mxu0
      %v5447 = vadd.f32 %v5201, %v5446
      %v5448 = vpop.f32.mrf.mxu0
      %v5449 = vadd.f32 %v5206, %v5448
      %5450 = vmatmul.bf16.gmra.mxu0 %v5342
      %v5451 = vpop.f32.mrf.mxu0
      %v5452 = vadd.f32 %v5211, %v5451
      %v5453 = vpop.f32.mrf.mxu0
      %v5454 = vadd.f32 %v5216, %v5453
      %5455 = vmatmul.bf16.gmra.mxu0 %v5345
      %v5456 = vpop.f32.mrf.mxu0
      %v5457 = vadd.f32 %v5221, %v5456
      %v5458 = vpop.f32.mrf.mxu0
      %v5459 = vadd.f32 %v5226, %v5458
      %5460 = vmatmul.bf16.gmra.mxu0 %v5348
      %v5461 = vpop.f32.mrf.mxu0
      %v5462 = vadd.f32 %v5231, %v5461
      %v5463 = vpop.f32.mrf.mxu0
      %v5464 = vadd.f32 %v5236, %v5463
      %5465 = vdwg.mxu0
      %5466 = vmatpush.bf16.msra.mxu0 0
      %5467 = vmatpush.bf16.msra.mxu0 0
      %5468 = vmatpush.bf16.msra.mxu0 0
      %5469 = vmatpush.bf16.msra.mxu0 0
      %5470 = vmatpush.bf16.msra.mxu0 0
      %5471 = vmatpush.bf16.msra.mxu0 0
      %5472 = vmatpush.bf16.msra.mxu0 %v5318
      %5473 = vmatpush.bf16.msra.mxu0 %v5310
      %5474 = vmatmul.bf16.gmra.mxu0 %v5339
      %v5475 = vpop.f32.mrf.mxu0
      %v5476 = vadd.f32 %v5201, %v5475
      %v5477 = vpop.f32.mrf.mxu0
      %v5478 = vadd.f32 %v5206, %v5477
      %5479 = vmatmul.bf16.gmra.mxu0 %v5342
      %v5480 = vpop.f32.mrf.mxu0
      %v5481 = vadd.f32 %v5211, %v5480
      %v5482 = vpop.f32.mrf.mxu0
      %v5483 = vadd.f32 %v5216, %v5482
      %5484 = vmatmul.bf16.gmra.mxu0 %v5345
      %v5485 = vpop.f32.mrf.mxu0
      %v5486 = vadd.f32 %v5221, %v5485
      %v5487 = vpop.f32.mrf.mxu0
      %v5488 = vadd.f32 %v5226, %v5487
      %5489 = vmatmul.bf16.gmra.mxu0 %v5348
      %v5490 = vpop.f32.mrf.mxu0
      %v5491 = vadd.f32 %v5231, %v5490
      %v5492 = vpop.f32.mrf.mxu0
      %v5493 = vadd.f32 %v5236, %v5492
      %5494 = vdwg.mxu0
      %5495 = vmatpush.bf16.msra.mxu0 0
      %5496 = vmatpush.bf16.msra.mxu0 0
      %5497 = vmatpush.bf16.msra.mxu0 0
      %5498 = vmatpush.bf16.msra.mxu0 0
      %5499 = vmatpush.bf16.msra.mxu0 0
      %5500 = vmatpush.bf16.msra.mxu0 0
      %5501 = vmatpush.bf16.msra.mxu0 %v5319
      %5502 = vmatpush.bf16.msra.mxu0 %v5311
      %5503 = vmatmul.bf16.gmra.mxu0 %v5339
      %v5504 = vpop.f32.mrf.mxu0
      %v5505 = vadd.f32 %v5201, %v5504
      %v5506 = vpop.f32.mrf.mxu0
      %v5507 = vadd.f32 %v5206, %v5506
      %5508 = vmatmul.bf16.gmra.mxu0 %v5342
      %v5509 = vpop.f32.mrf.mxu0
      %v5510 = vadd.f32 %v5211, %v5509
      %v5511 = vpop.f32.mrf.mxu0
      %v5512 = vadd.f32 %v5216, %v5511
      %5513 = vmatmul.bf16.gmra.mxu0 %v5345
      %v5514 = vpop.f32.mrf.mxu0
      %v5515 = vadd.f32 %v5221, %v5514
      %v5516 = vpop.f32.mrf.mxu0
      %v5517 = vadd.f32 %v5226, %v5516
      %5518 = vmatmul.bf16.gmra.mxu0 %v5348
      %v5519 = vpop.f32.mrf.mxu0
      %v5520 = vadd.f32 %v5231, %v5519
      %v5521 = vpop.f32.mrf.mxu0
      %v5522 = vadd.f32 %v5236, %v5521
      %5523 = vdwg.mxu0
      %5524 = vmatpush.bf16.msra.mxu0 0
      %5525 = vmatpush.bf16.msra.mxu0 0
      %5526 = vmatpush.bf16.msra.mxu0 0
      %5527 = vmatpush.bf16.msra.mxu0 0
      %5528 = vmatpush.bf16.msra.mxu0 0
      %5529 = vmatpush.bf16.msra.mxu0 0
      %5530 = vmatpush.bf16.msra.mxu0 %v5320
      %5531 = vmatpush.bf16.msra.mxu0 %v5312
      %5532 = vmatmul.bf16.gmra.mxu0 %v5339
      %v5533 = vpop.f32.mrf.mxu0
      %v5534 = vadd.f32 %v5201, %v5533
      %v5535 = vpop.f32.mrf.mxu0
      %v5536 = vadd.f32 %v5206, %v5535
      %5537 = vmatmul.bf16.gmra.mxu0 %v5342
      %v5538 = vpop.f32.mrf.mxu0
      %v5539 = vadd.f32 %v5211, %v5538
      %v5540 = vpop.f32.mrf.mxu0
      %v5541 = vadd.f32 %v5216, %v5540
      %5542 = vmatmul.bf16.gmra.mxu0 %v5345
      %v5543 = vpop.f32.mrf.mxu0
      %v5544 = vadd.f32 %v5221, %v5543
      %v5545 = vpop.f32.mrf.mxu0
      %v5546 = vadd.f32 %v5226, %v5545
      %5547 = vmatmul.bf16.gmra.mxu0 %v5348
      %v5548 = vpop.f32.mrf.mxu0
      %v5549 = vadd.f32 %v5231, %v5548
      %v5550 = vpop.f32.mrf.mxu0
      %v5551 = vadd.f32 %v5236, %v5550
      %5552 = vdwg.mxu0
      %5553 = vmatpush.bf16.msra.mxu0 0
      %5554 = vmatpush.bf16.msra.mxu0 0
      %5555 = vmatpush.bf16.msra.mxu0 0
      %5556 = vmatpush.bf16.msra.mxu0 0
      %5557 = vmatpush.bf16.msra.mxu0 0
      %5558 = vmatpush.bf16.msra.mxu0 0
      %5559 = vmatpush.bf16.msra.mxu0 %v5321
      %5560 = vmatpush.bf16.msra.mxu0 %v5313
      %5561 = vmatmul.bf16.gmra.mxu0 %v5339
      %v5562 = vpop.f32.mrf.mxu0
      %v5563 = vadd.f32 %v5201, %v5562
      %v5564 = vpop.f32.mrf.mxu0
      %v5565 = vadd.f32 %v5206, %v5564
      %5566 = vmatmul.bf16.gmra.mxu0 %v5342
      %v5567 = vpop.f32.mrf.mxu0
      %v5568 = vadd.f32 %v5211, %v5567
      %v5569 = vpop.f32.mrf.mxu0
      %v5570 = vadd.f32 %v5216, %v5569
      %5571 = vmatmul.bf16.gmra.mxu0 %v5345
      %v5572 = vpop.f32.mrf.mxu0
      %v5573 = vadd.f32 %v5221, %v5572
      %v5574 = vpop.f32.mrf.mxu0
      %v5575 = vadd.f32 %v5226, %v5574
      %5576 = vmatmul.bf16.gmra.mxu0 %v5348
      %v5577 = vpop.f32.mrf.mxu0
      %v5578 = vadd.f32 %v5231, %v5577
      %v5579 = vpop.f32.mrf.mxu0
      %v5580 = vadd.f32 %v5236, %v5579
      %5581 = vdwg.mxu0
      %v5582 = vadd.f32 %v5360, %v5102
      %v5583 = vadd.f32 %v5389, %v5103
      %v5584 = vadd.f32 %v5418, %v5104
      %v5585 = vadd.f32 %v5447, %v5105
      %v5586 = vadd.f32 %v5476, %v5106
      %v5587 = vadd.f32 %v5505, %v5107
      %v5588 = vadd.f32 %v5534, %v5108
      %v5589 = vadd.f32 %v5563, %v5109
      %v5590 = vadd.f32 %v5362, %v5110
      %v5591 = vadd.f32 %v5391, %v5111
      %v5592 = vadd.f32 %v5420, %v5112
      %v5593 = vadd.f32 %v5449, %v5113
      %v5594 = vadd.f32 %v5478, %v5114
      %v5595 = vadd.f32 %v5507, %v5115
      %v5596 = vadd.f32 %v5536, %v5116
      %v5597 = vadd.f32 %v5565, %v5117
      %v5598 = vadd.f32 %v5365, %v5118
      %v5599 = vadd.f32 %v5394, %v5119
      %v5600 = vadd.f32 %v5423, %v5120
      %v5601 = vadd.f32 %v5452, %v5121
      %v5602 = vadd.f32 %v5481, %v5122
      %v5603 = vadd.f32 %v5510, %v5123
      %v5604 = vadd.f32 %v5539, %v5124
      %v5605 = vadd.f32 %v5568, %v5125
      %v5606 = vadd.f32 %v5367, %v5126
      %v5607 = vadd.f32 %v5396, %v5127
      %v5608 = vadd.f32 %v5425, %v5128
      %v5609 = vadd.f32 %v5454, %v5129
      %v5610 = vadd.f32 %v5483, %v5130
      %v5611 = vadd.f32 %v5512, %v5131
      %v5612 = vadd.f32 %v5541, %v5132
      %v5613 = vadd.f32 %v5570, %v5133
      %v5614 = vadd.f32 %v5370, %v5134
      %v5615 = vadd.f32 %v5399, %v5135
      %v5616 = vadd.f32 %v5428, %v5136
      %v5617 = vadd.f32 %v5457, %v5137
      %v5618 = vadd.f32 %v5486, %v5138
      %v5619 = vadd.f32 %v5515, %v5139
      %v5620 = vadd.f32 %v5544, %v5140
      %v5621 = vadd.f32 %v5573, %v5141
      %v5622 = vadd.f32 %v5372, %v5142
      %v5623 = vadd.f32 %v5401, %v5143
      %v5624 = vadd.f32 %v5430, %v5144
      %v5625 = vadd.f32 %v5459, %v5145
      %v5626 = vadd.f32 %v5488, %v5146
      %v5627 = vadd.f32 %v5517, %v5147
      %v5628 = vadd.f32 %v5546, %v5148
      %v5629 = vadd.f32 %v5575, %v5149
      %v5630 = vadd.f32 %v5375, %v5150
      %v5631 = vadd.f32 %v5404, %v5151
      %v5632 = vadd.f32 %v5433, %v5152
      %v5633 = vadd.f32 %v5462, %v5153
      %v5634 = vadd.f32 %v5491, %v5154
      %v5635 = vadd.f32 %v5520, %v5155
      %v5636 = vadd.f32 %v5549, %v5156
      %v5637 = vadd.f32 %v5578, %v5157
      %v5638 = vadd.f32 %v5377, %v5158
      %v5639 = vadd.f32 %v5406, %v5159
      %v5640 = vadd.f32 %v5435, %v5160
      %v5641 = vadd.f32 %v5464, %v5161
      %v5642 = vadd.f32 %v5493, %v5162
      %v5643 = vadd.f32 %v5522, %v5163
      %v5644 = vadd.f32 %v5551, %v5164
      %v5645 = vadd.f32 %v5580, %v5165
      %v5646 = vpack.c.bf16 %v5583, %v5582
      %v5647 = vpack.c.bf16 %v5585, %v5584
      %v5648 = vpack.c.bf16 %v5587, %v5586
      %v5649 = vpack.c.bf16 %v5589, %v5588
      %v5650 = vpack.c.bf16 %v5591, %v5590
      %v5651 = vpack.c.bf16 %v5593, %v5592
      %v5652 = vpack.c.bf16 %v5595, %v5594
      %v5653 = vpack.c.bf16 %v5597, %v5596
      %v5654 = vpack.c.bf16 %v5599, %v5598
      %v5655 = vpack.c.bf16 %v5601, %v5600
      %v5656 = vpack.c.bf16 %v5603, %v5602
      %v5657 = vpack.c.bf16 %v5605, %v5604
      %v5658 = vpack.c.bf16 %v5607, %v5606
      %v5659 = vpack.c.bf16 %v5609, %v5608
      %v5660 = vpack.c.bf16 %v5611, %v5610
      %v5661 = vpack.c.bf16 %v5613, %v5612
      %v5662 = vpack.c.bf16 %v5615, %v5614
      %v5663 = vpack.c.bf16 %v5617, %v5616
      %v5664 = vpack.c.bf16 %v5619, %v5618
      %v5665 = vpack.c.bf16 %v5621, %v5620
      %v5666 = vpack.c.bf16 %v5623, %v5622
      %v5667 = vpack.c.bf16 %v5625, %v5624
      %v5668 = vpack.c.bf16 %v5627, %v5626
      %v5669 = vpack.c.bf16 %v5629, %v5628
      %v5670 = vpack.c.bf16 %v5631, %v5630
      %v5671 = vpack.c.bf16 %v5633, %v5632
      %v5672 = vpack.c.bf16 %v5635, %v5634
      %v5673 = vpack.c.bf16 %v5637, %v5636
      %v5674 = vpack.c.bf16 %v5639, %v5638
      %v5675 = vpack.c.bf16 %v5641, %v5640
      %v5676 = vpack.c.bf16 %v5643, %v5642
      %v5677 = vpack.c.bf16 %v5645, %v5644
      %5678 = vst [vmem:[%s589] sm:$0xff] %v5646
      %5679 = vst [vmem:[%s589 + $0x8] sm:$0xff] %v5647
      %5680 = vst [vmem:[%s589 + $0x10] sm:$0xff] %v5648
      %5681 = vst [vmem:[%s589 + $0x18] sm:$0xff] %v5649
      %5682 = vst [vmem:[%s589 + $0x20] sm:$0xff] %v5650
      %5683 = vst [vmem:[%s589 + $0x28] sm:$0xff] %v5651
      %5684 = vst [vmem:[%s589 + $0x30] sm:$0xff] %v5652
      %5685 = vst [vmem:[%s589 + $0x38] sm:$0xff] %v5653
      %5686 = vst [vmem:[%s589 + $0x40] sm:$0xff] %v5654
      %5687 = vst [vmem:[%s589 + $0x48] sm:$0xff] %v5655
      %5688 = vst [vmem:[%s589 + $0x50] sm:$0xff] %v5656
      %5689 = vst [vmem:[%s589 + $0x58] sm:$0xff] %v5657
      %5690 = vst [vmem:[%s589 + $0x60] sm:$0xff] %v5658
      %5691 = vst [vmem:[%s589 + $0x68] sm:$0xff] %v5659
      %5692 = vst [vmem:[%s589 + $0x70] sm:$0xff] %v5660
      %5693 = vst [vmem:[%s589 + $0x78] sm:$0xff] %v5661
      %5694 = vst [vmem:[%s589 + $0x80] sm:$0xff] %v5662
      %5695 = vst [vmem:[%s589 + $0x88] sm:$0xff] %v5663
      %5696 = vst [vmem:[%s589 + $0x90] sm:$0xff] %v5664
      %5697 = vst [vmem:[%s589 + $0x98] sm:$0xff] %v5665
      %5698 = vst [vmem:[%s589 + $0xa0] sm:$0xff] %v5666
      %5699 = vst [vmem:[%s589 + $0xa8] sm:$0xff] %v5667
      %5700 = vst [vmem:[%s589 + $0xb0] sm:$0xff] %v5668
      %5701 = vst [vmem:[%s589 + $0xb8] sm:$0xff] %v5669
      %5702 = vst [vmem:[%s589 + $0xc0] sm:$0xff] %v5670
      %5703 = vst [vmem:[%s589 + $0xc8] sm:$0xff] %v5671
      %5704 = vst [vmem:[%s589 + $0xd0] sm:$0xff] %v5672
      %5705 = vst [vmem:[%s589 + $0xd8] sm:$0xff] %v5673
      %5706 = vst [vmem:[%s589 + $0xe0] sm:$0xff] %v5674
      %5707 = vst [vmem:[%s589 + $0xe8] sm:$0xff] %v5675
      %5708 = vst [vmem:[%s589 + $0xf0] sm:$0xff] %v5676
      %5709 = vst [vmem:[%s589 + $0xf8] sm:$0xff] %v5677
      %p5710 = scmp.lt.s32.totalorder %s29, 1
      %s5711 = scalar_select %p5710, %s29, 1
      %s5712 = smul.addr %s5711, 64
      %s5713 = smul.addr %s5712, 4
      %s5714 = scalar_lea.vmem %s18, %s5713
      // Predicated region
      $region93: #{resnet_block_3d.1} parent=91 // pred_check
        %p5715 = pneg %p435
      $region94: #{resnet_block_3d.1} parent=91 // pred_check_branch
        %5717 = sbr.rel (%p5715) target = $region96
      $region95: #{resnet_block_3d.1} parent=91 // pred_region
        _
      $region96: #{resnet_block_3d.1} parent=91 // pred_fallthru
        _
    $region92: #{resnet_block_3d.1} parent=5 // pred_fallthru
      _
    %p5718 = scmp.le.s32.totalorder 2, %s24
    // Predicated region
    $region97: #{resnet_block_3d.1} parent=5 // pred_check
      %p5719 = pneg %p5718
    $region98: #{resnet_block_3d.1} parent=5 // pred_check_branch
      %5721 = sbr.rel (%p5719) target = $region100
    $region99: #{resnet_block_3d.1} parent=5 // pred_region
      %s5722 = ssub.s32 %s24, 2
      // Predicated region
      $region101: #{resnet_block_3d.1} parent=99 // pred_check
        %p5723 = pneg %p441
      $region102: #{resnet_block_3d.1} parent=99 // pred_check_branch
        %5725 = sbr.rel (%p5723) target = $region104
      $region103: #{resnet_block_3d.1} parent=99 // pred_region
        %p5726 = scmp.lt.s32.totalorder %s30, 1
        %s5727 = scalar_select %p5726, %s30, 1
        %s5728 = smul.addr %s5727, 64
        %s5729 = smul.addr %s5728, 4
        %s5730 = scalar_lea.vmem %s18, %s5729
      $region104: #{resnet_block_3d.1} parent=99 // pred_fallthru
        _
    $region100: #{resnet_block_3d.1} parent=5 // pred_fallthru
      _
  $region6: #{resnet_block_3d.1} parent=0 // loop_footer
    %s28 = sadd.s32 1, %s24
  $region7: #{resnet_block_3d.1} parent=0 // loop_footer_branch
    %23 = sbr.rel target = $region3
  $region8: #{resnet_block_3d.1} parent=0 // loop_exit
    _

</llo_original>
